<compile_context>
chip_gen: v5e
topology: v5e:2x2
jax: 0.10.0
libtpu: 0.0.40
codegen_flags: <defaults>
</compile_context>

<pallas_src>
import functools

import numpy as np
import jax
import jax.numpy as jnp
from jax import lax
from jax.experimental import pallas as pl
from jax.experimental.pallas import tpu as pltpu

T_PAD = 8  # tag rows padded to one sublane group


def _viterbi_batched_kernel(feats_ref, trans_ref, out_ref, bp_ref,
                            *, L, T, start_ix, stop_ix):
    """Batched Viterbi decode for one block of B_blk sequences.

    feats_ref : (L*T_PAD, B_blk) f32  VMEM   row t*8+n = feat[t, n] per sequence
    trans_ref : (T, T)           f32  SMEM   scalar transition scores
    out_ref   : (R_OUT, B_blk)   i32  VMEM   rows 0..L-1 path, L first-tag, L+1 bitcast(score)
    bp_ref    : (L*T_PAD, B_blk) i32  VMEM   scratch: backpointers
    """
    B = out_ref.shape[1]

    def frow(r):                       # one emission row across the batch lanes
        return feats_ref[pl.ds(r, 1), :]

    # Hoist the T*T transition scalars out of the loops (25 SMEM reads total).
    tr = [[trans_ref[n, p] for p in range(T)] for n in range(T)]

    # init forward_var: -10000 everywhere except START tag = 0
    fv = [jnp.full((1, B), -10000.0, jnp.float32) for _ in range(T)]
    fv[start_ix] = jnp.zeros((1, B), jnp.float32)

    # Forward recursion: fully unrolled add/compare/select per (next, prev)
    # pair.  Pure per-lane VPU work; backpointers go straight to VMEM scratch.
    for t in range(L):
        new_fv = []
        for n in range(T):
            best_val = fv[0] + tr[n][0]
            best_idx = jnp.zeros((1, B), jnp.int32)
            for p in range(1, T):
                cand = fv[p] + tr[n][p]
                better = cand > best_val            # strict: first index wins ties
                best_val = jnp.where(better, cand, best_val)
                best_idx = jnp.where(better, jnp.int32(p), best_idx)
            bp_ref[pl.ds(t * T_PAD + n, 1), :] = best_idx
            new_fv.append(best_val + frow(t * T_PAD + n))
        fv = new_fv

    # Terminal step: + transitions[STOP], per-lane argmax over tags.
    best_val = fv[0] + tr[stop_ix][0]
    best_tag = jnp.zeros((1, B), jnp.int32)
    for p in range(1, T):
        cand = fv[p] + tr[stop_ix][p]
        better = cand > best_val
        best_val = jnp.where(better, cand, best_val)
        best_tag = jnp.where(better, jnp.int32(p), best_tag)

    out_ref[...] = jnp.zeros_like(out_ref)          # deterministic padding rows

    # Fused backpointer chase: per-lane selects over the T backpointer rows.
    tag = best_tag
    out_ref[pl.ds(L - 1, 1), :] = tag
    for t in range(L - 1, -1, -1):
        nxt = bp_ref[pl.ds(t * T_PAD, 1), :]
        for n in range(1, T):
            nxt = jnp.where(tag == n, bp_ref[pl.ds(t * T_PAD + n, 1), :], nxt)
        tag = nxt
        if t > 0:
            out_ref[pl.ds(t - 1, 1), :] = tag
    out_ref[pl.ds(L, 1), :] = tag                   # first tag: must equal START
    out_ref[pl.ds(L + 1, 1), :] = pltpu.bitcast(best_val, jnp.int32)


def make_crf_decoder(L, T, start_ix, stop_ix, *, b_blk=128):
    """Returns a jitted decode(transitions, feats[B, L, T]) -> (scores, paths, first_tags)."""
    assert T <= T_PAD, "tagset must fit in one sublane group (<= 8 tags)"
    r_out = ((L + 2 + 7) // 8) * 8
    kernel = functools.partial(_viterbi_batched_kernel, L=L, T=T,
                               start_ix=start_ix, stop_ix=stop_ix)

    @jax.jit
    def decode(transitions, feats):
        B = feats.shape[0]
        b_pad = ((B + b_blk - 1) // b_blk) * b_blk

        # batch-on-lanes / tags-on-sublane-rows layout (folded under this jit)
        f = jnp.transpose(feats.astype(jnp.float32), (1, 2, 0))        # (L, T, B)
        f = jnp.pad(f, ((0, 0), (0, T_PAD - T), (0, b_pad - B)))
        f = f.reshape(L * T_PAD, b_pad)

        out = pl.pallas_call(
            kernel,
            out_shape=jax.ShapeDtypeStruct((r_out, b_pad), jnp.int32),
            grid=(b_pad // b_blk,),
            in_specs=[
                pl.BlockSpec((L * T_PAD, b_blk), lambda b: (0, b)),
                pl.BlockSpec(memory_space=pltpu.MemorySpace.SMEM),      # (T, T) scalars
            ],
            out_specs=pl.BlockSpec((r_out, b_blk), lambda b: (0, b)),
            scratch_shapes=[pltpu.VMEM((L * T_PAD, b_blk), jnp.int32)],
            compiler_params=pltpu.CompilerParams(
                dimension_semantics=("parallel",),
                vmem_limit_bytes=32 * 1024 * 1024),
        )(f, transitions.astype(jnp.float32))

        paths = out[:L, :B].T                                    # (B, L)
        first = out[L, :B]                                       # (B,)
        scores = lax.bitcast_convert_type(out[L + 1, :B], jnp.float32)
        return scores, paths, first

    return decode


def crf_forward(decode, transitions, feature):
    """Single-sequence forward() matching the PyTorch module: (score, tag_seq)."""
    scores, paths, first = decode(transitions, feature[None])
    return scores[0], paths[0], first[0]


def ref_viterbi(feats, transitions, start_ix, stop_ix):
    """Pure NumPy reference mirroring the PyTorch _viterbi_decode."""
    Tt = transitions.shape[0]
    fv = np.full((Tt,), -10000.0, dtype=np.float32)
    fv[start_ix] = 0.0
    bptrs = []
    for feat in feats:
        nv = transitions + fv[None, :]          # [next, prev]
        bp = np.argmax(nv, axis=1)
        fv = nv.max(axis=1) + feat
        bptrs.append(bp)
    term = fv + transitions[stop_ix]
    best = int(np.argmax(term))
    score = float(term[best])
    path = [best]
    for bp in reversed(bptrs):
        best = int(bp[best])
        path.append(best)
    start = path.pop()
    assert start == start_ix
    path.reverse()
    return score, path


if __name__ == "__main__":
    START_TAG, STOP_TAG = "<START>", "<STOP>"
    tag_to_ix = {"B": 0, "I": 1, "O": 2, START_TAG: 3, STOP_TAG: 4}
    T = len(tag_to_ix)
    L = 8      # sequence length
    B = 256    # batch of sequences decoded in a single launch (grid of 2 blocks)

    key = jax.random.PRNGKey(0)
    k1, k2 = jax.random.split(key)

    # Deterministic parameter init mirroring CRF.__init__ (randn + START/STOP masking).
    transitions = jax.random.normal(k1, (T, T), dtype=jnp.float32)
    transitions = transitions.at[tag_to_ix[START_TAG], :].set(-10000.0)
    transitions = transitions.at[:, tag_to_ix[STOP_TAG]].set(-10000.0)

    feats = jax.random.normal(k2, (B, L, T), dtype=jnp.float32)

    decode = make_crf_decoder(L, T, tag_to_ix[START_TAG], tag_to_ix[STOP_TAG], b_blk=128)

    scores, paths, firsts = decode(transitions, feats)
    scores, paths, firsts = jax.block_until_ready((scores, paths, firsts))

    scores_np = np.asarray(scores)
    paths_np = np.asarray(paths)
    firsts_np = np.asarray(firsts)
    feats_np = np.asarray(feats)
    trans_np = np.asarray(transitions)

    # Verify every sequence in the batch against the NumPy reference.
    for b in range(B):
        ref_score, ref_path = ref_viterbi(feats_np[b], trans_np,
                                          tag_to_ix[START_TAG], tag_to_ix[STOP_TAG])
        assert int(firsts_np[b]) == tag_to_ix[START_TAG], "backtrace did not end at START"
        assert np.allclose(float(scores_np[b]), ref_score, rtol=1e-5, atol=1e-3), (
            b, float(scores_np[b]), ref_score)
        assert [int(x) for x in paths_np[b]] == ref_path, (b, paths_np[b], ref_path)

    # Single-sequence forward() (module semantics) reuses the same decoder.
    s0, p0, f0 = crf_forward(decode, transitions, feats[0])
    s0, p0, f0 = jax.block_until_ready((s0, p0, f0))
    assert int(f0) == tag_to_ix[START_TAG]
    assert np.allclose(float(s0), float(scores_np[0]), rtol=1e-5, atol=1e-3)
    assert [int(x) for x in np.asarray(p0)] == [int(x) for x in paths_np[0]]

    print("KERNEL_OK")
</pallas_src>

<mosaic_0001>
module attributes {stable_mosaic.version = 11 : i64} {
  func.func @_viterbi_batched_kernel(%arg0: i32, %arg1: memref<64x128xf32, #tpu.memory_space<vmem>>, %arg2: memref<5x5xf32, #tpu.memory_space<smem>>, %arg3: memref<16x128xi32, #tpu.memory_space<vmem>>, %arg4: memref<64x128xi32, #tpu.memory_space<vmem>>) attributes {dimension_semantics = [#tpu.dimension_semantics<parallel>], iteration_bounds = array<i64: 2>, scalar_prefetch = 0 : i64, scratch_operands = 1 : i64, tpu.core_type = #tpu.core_type<tc>, window_params = [{transform_indices = @transform_0, window_bounds = array<i64: 64, 128>}, {transform_indices = @transform_1, window_bounds = array<i64: 5, 5>}, {transform_indices = @transform_2, window_bounds = array<i64: 16, 128>}]} {
    %c0 = arith.constant 0 : index
    %c0_0 = arith.constant 0 : index
    %0 = memref.load %arg2[%c0, %c0_0] : memref<5x5xf32, #tpu.memory_space<smem>>
    %c0_1 = arith.constant 0 : index
    %c1 = arith.constant 1 : index
    %1 = memref.load %arg2[%c0_1, %c1] : memref<5x5xf32, #tpu.memory_space<smem>>
    %c0_2 = arith.constant 0 : index
    %c2 = arith.constant 2 : index
    %2 = memref.load %arg2[%c0_2, %c2] : memref<5x5xf32, #tpu.memory_space<smem>>
    %c0_3 = arith.constant 0 : index
    %c3 = arith.constant 3 : index
    %3 = memref.load %arg2[%c0_3, %c3] : memref<5x5xf32, #tpu.memory_space<smem>>
    %c0_4 = arith.constant 0 : index
    %c4 = arith.constant 4 : index
    %4 = memref.load %arg2[%c0_4, %c4] : memref<5x5xf32, #tpu.memory_space<smem>>
    %c1_5 = arith.constant 1 : index
    %c0_6 = arith.constant 0 : index
    %5 = memref.load %arg2[%c1_5, %c0_6] : memref<5x5xf32, #tpu.memory_space<smem>>
    %c1_7 = arith.constant 1 : index
    %c1_8 = arith.constant 1 : index
    %6 = memref.load %arg2[%c1_7, %c1_8] : memref<5x5xf32, #tpu.memory_space<smem>>
    %c1_9 = arith.constant 1 : index
    %c2_10 = arith.constant 2 : index
    %7 = memref.load %arg2[%c1_9, %c2_10] : memref<5x5xf32, #tpu.memory_space<smem>>
    %c1_11 = arith.constant 1 : index
    %c3_12 = arith.constant 3 : index
    %8 = memref.load %arg2[%c1_11, %c3_12] : memref<5x5xf32, #tpu.memory_space<smem>>
    %c1_13 = arith.constant 1 : index
    %c4_14 = arith.constant 4 : index
    %9 = memref.load %arg2[%c1_13, %c4_14] : memref<5x5xf32, #tpu.memory_space<smem>>
    %c2_15 = arith.constant 2 : index
    %c0_16 = arith.constant 0 : index
    %10 = memref.load %arg2[%c2_15, %c0_16] : memref<5x5xf32, #tpu.memory_space<smem>>
    %c2_17 = arith.constant 2 : index
    %c1_18 = arith.constant 1 : index
    %11 = memref.load %arg2[%c2_17, %c1_18] : memref<5x5xf32, #tpu.memory_space<smem>>
    %c2_19 = arith.constant 2 : index
    %c2_20 = arith.constant 2 : index
    %12 = memref.load %arg2[%c2_19, %c2_20] : memref<5x5xf32, #tpu.memory_space<smem>>
    %c2_21 = arith.constant 2 : index
    %c3_22 = arith.constant 3 : index
    %13 = memref.load %arg2[%c2_21, %c3_22] : memref<5x5xf32, #tpu.memory_space<smem>>
    %c2_23 = arith.constant 2 : index
    %c4_24 = arith.constant 4 : index
    %14 = memref.load %arg2[%c2_23, %c4_24] : memref<5x5xf32, #tpu.memory_space<smem>>
    %c3_25 = arith.constant 3 : index
    %c0_26 = arith.constant 0 : index
    %15 = memref.load %arg2[%c3_25, %c0_26] : memref<5x5xf32, #tpu.memory_space<smem>>
    %c3_27 = arith.constant 3 : index
    %c1_28 = arith.constant 1 : index
    %16 = memref.load %arg2[%c3_27, %c1_28] : memref<5x5xf32, #tpu.memory_space<smem>>
    %c3_29 = arith.constant 3 : index
    %c2_30 = arith.constant 2 : index
    %17 = memref.load %arg2[%c3_29, %c2_30] : memref<5x5xf32, #tpu.memory_space<smem>>
    %c3_31 = arith.constant 3 : index
    %c3_32 = arith.constant 3 : index
    %18 = memref.load %arg2[%c3_31, %c3_32] : memref<5x5xf32, #tpu.memory_space<smem>>
    %c3_33 = arith.constant 3 : index
    %c4_34 = arith.constant 4 : index
    %19 = memref.load %arg2[%c3_33, %c4_34] : memref<5x5xf32, #tpu.memory_space<smem>>
    %c4_35 = arith.constant 4 : index
    %c0_36 = arith.constant 0 : index
    %20 = memref.load %arg2[%c4_35, %c0_36] : memref<5x5xf32, #tpu.memory_space<smem>>
    %c4_37 = arith.constant 4 : index
    %c1_38 = arith.constant 1 : index
    %21 = memref.load %arg2[%c4_37, %c1_38] : memref<5x5xf32, #tpu.memory_space<smem>>
    %c4_39 = arith.constant 4 : index
    %c2_40 = arith.constant 2 : index
    %22 = memref.load %arg2[%c4_39, %c2_40] : memref<5x5xf32, #tpu.memory_space<smem>>
    %c4_41 = arith.constant 4 : index
    %c3_42 = arith.constant 3 : index
    %23 = memref.load %arg2[%c4_41, %c3_42] : memref<5x5xf32, #tpu.memory_space<smem>>
    %c4_43 = arith.constant 4 : index
    %c4_44 = arith.constant 4 : index
    %24 = memref.load %arg2[%c4_43, %c4_44] : memref<5x5xf32, #tpu.memory_space<smem>>
    %cst = arith.constant -1.000000e+04 : f32
    %25 = vector.broadcast %cst : f32 to vector<1x128xf32>
    %cst_45 = arith.constant -1.000000e+04 : f32
    %26 = vector.broadcast %cst_45 : f32 to vector<1x128xf32>
    %cst_46 = arith.constant -1.000000e+04 : f32
    %27 = vector.broadcast %cst_46 : f32 to vector<1x128xf32>
    %cst_47 = arith.constant -1.000000e+04 : f32
    %28 = vector.broadcast %cst_47 : f32 to vector<1x128xf32>
    %cst_48 = arith.constant 0.000000e+00 : f32
    %29 = vector.broadcast %cst_48 : f32 to vector<1x128xf32>
    %30 = vector.broadcast %0 : f32 to vector<1x128xf32>
    %31 = arith.addf %25, %30 : vector<1x128xf32>
    %c0_i32 = arith.constant 0 : i32
    %32 = vector.broadcast %c0_i32 : i32 to vector<1x128xi32>
    %33 = vector.broadcast %1 : f32 to vector<1x128xf32>
    %34 = arith.addf %26, %33 : vector<1x128xf32>
    %35 = arith.cmpf ogt, %34, %31 : vector<1x128xf32>
    %36 = arith.select %35, %34, %31 : vector<1x128xi1>, vector<1x128xf32>
    %c1_i32 = arith.constant 1 : i32
    %37 = vector.broadcast %c1_i32 : i32 to vector<1x128xi32>
    %38 = arith.select %35, %37, %32 : vector<1x128xi1>, vector<1x128xi32>
    %39 = vector.broadcast %2 : f32 to vector<1x128xf32>
    %40 = arith.addf %27, %39 : vector<1x128xf32>
    %41 = arith.cmpf ogt, %40, %36 : vector<1x128xf32>
    %42 = arith.select %41, %40, %36 : vector<1x128xi1>, vector<1x128xf32>
    %c2_i32 = arith.constant 2 : i32
    %43 = vector.broadcast %c2_i32 : i32 to vector<1x128xi32>
    %44 = arith.select %41, %43, %38 : vector<1x128xi1>, vector<1x128xi32>
    %45 = vector.broadcast %3 : f32 to vector<1x128xf32>
    %46 = arith.addf %29, %45 : vector<1x128xf32>
    %47 = arith.cmpf ogt, %46, %42 : vector<1x128xf32>
    %48 = arith.select %47, %46, %42 : vector<1x128xi1>, vector<1x128xf32>
    %c3_i32 = arith.constant 3 : i32
    %49 = vector.broadcast %c3_i32 : i32 to vector<1x128xi32>
    %50 = arith.select %47, %49, %44 : vector<1x128xi1>, vector<1x128xi32>
    %51 = vector.broadcast %4 : f32 to vector<1x128xf32>
    %52 = arith.addf %28, %51 : vector<1x128xf32>
    %53 = arith.cmpf ogt, %52, %48 : vector<1x128xf32>
    %54 = arith.select %53, %52, %48 : vector<1x128xi1>, vector<1x128xf32>
    %c4_i32 = arith.constant 4 : i32
    %55 = vector.broadcast %c4_i32 : i32 to vector<1x128xi32>
    %56 = arith.select %53, %55, %50 : vector<1x128xi1>, vector<1x128xi32>
    %c0_49 = arith.constant 0 : index
    %c0_50 = arith.constant 0 : index
    %57 = vector.load %arg4[%c0_49, %c0_50] : memref<64x128xi32, #tpu.memory_space<vmem>>, vector<1x128xi32>
    tpu.vector_store %arg4[%c0_49, %c0_50], %56 {strides = array<i32>} : memref<64x128xi32, #tpu.memory_space<vmem>>, vector<1x128xi32>,
    %c0_51 = arith.constant 0 : index
    %c0_52 = arith.constant 0 : index
    %58 = vector.load %arg1[%c0_51, %c0_52] : memref<64x128xf32, #tpu.memory_space<vmem>>, vector<1x128xf32>
    %59 = arith.addf %54, %58 : vector<1x128xf32>
    %60 = vector.broadcast %5 : f32 to vector<1x128xf32>
    %61 = arith.addf %25, %60 : vector<1x128xf32>
    %c0_i32_53 = arith.constant 0 : i32
    %62 = vector.broadcast %c0_i32_53 : i32 to vector<1x128xi32>
    %63 = vector.broadcast %6 : f32 to vector<1x128xf32>
    %64 = arith.addf %26, %63 : vector<1x128xf32>
    %65 = arith.cmpf ogt, %64, %61 : vector<1x128xf32>
    %66 = arith.select %65, %64, %61 : vector<1x128xi1>, vector<1x128xf32>
    %c1_i32_54 = arith.constant 1 : i32
    %67 = vector.broadcast %c1_i32_54 : i32 to vector<1x128xi32>
    %68 = arith.select %65, %67, %62 : vector<1x128xi1>, vector<1x128xi32>
    %69 = vector.broadcast %7 : f32 to vector<1x128xf32>
    %70 = arith.addf %27, %69 : vector<1x128xf32>
    %71 = arith.cmpf ogt, %70, %66 : vector<1x128xf32>
    %72 = arith.select %71, %70, %66 : vector<1x128xi1>, vector<1x128xf32>
    %c2_i32_55 = arith.constant 2 : i32
    %73 = vector.broadcast %c2_i32_55 : i32 to vector<1x128xi32>
    %74 = arith.select %71, %73, %68 : vector<1x128xi1>, vector<1x128xi32>
    %75 = vector.broadcast %8 : f32 to vector<1x128xf32>
    %76 = arith.addf %29, %75 : vector<1x128xf32>
    %77 = arith.cmpf ogt, %76, %72 : vector<1x128xf32>
    %78 = arith.select %77, %76, %72 : vector<1x128xi1>, vector<1x128xf32>
    %c3_i32_56 = arith.constant 3 : i32
    %79 = vector.broadcast %c3_i32_56 : i32 to vector<1x128xi32>
    %80 = arith.select %77, %79, %74 : vector<1x128xi1>, vector<1x128xi32>
    %81 = vector.broadcast %9 : f32 to vector<1x128xf32>
    %82 = arith.addf %28, %81 : vector<1x128xf32>
    %83 = arith.cmpf ogt, %82, %78 : vector<1x128xf32>
    %84 = arith.select %83, %82, %78 : vector<1x128xi1>, vector<1x128xf32>
    %c4_i32_57 = arith.constant 4 : i32
    %85 = vector.broadcast %c4_i32_57 : i32 to vector<1x128xi32>
    %86 = arith.select %83, %85, %80 : vector<1x128xi1>, vector<1x128xi32>
    %c1_58 = arith.constant 1 : index
    %c0_59 = arith.constant 0 : index
    %87 = vector.load %arg4[%c1_58, %c0_59] : memref<64x128xi32, #tpu.memory_space<vmem>>, vector<1x128xi32>
    tpu.vector_store %arg4[%c1_58, %c0_59], %86 {strides = array<i32>} : memref<64x128xi32, #tpu.memory_space<vmem>>, vector<1x128xi32>,
    %c1_60 = arith.constant 1 : index
    %c0_61 = arith.constant 0 : index
    %88 = vector.load %arg1[%c1_60, %c0_61] : memref<64x128xf32, #tpu.memory_space<vmem>>, vector<1x128xf32>
    %89 = arith.addf %84, %88 : vector<1x128xf32>
    %90 = vector.broadcast %10 : f32 to vector<1x128xf32>
    %91 = arith.addf %25, %90 : vector<1x128xf32>
    %c0_i32_62 = arith.constant 0 : i32
    %92 = vector.broadcast %c0_i32_62 : i32 to vector<1x128xi32>
    %93 = vector.broadcast %11 : f32 to vector<1x128xf32>
    %94 = arith.addf %26, %93 : vector<1x128xf32>
    %95 = arith.cmpf ogt, %94, %91 : vector<1x128xf32>
    %96 = arith.select %95, %94, %91 : vector<1x128xi1>, vector<1x128xf32>
    %c1_i32_63 = arith.constant 1 : i32
    %97 = vector.broadcast %c1_i32_63 : i32 to vector<1x128xi32>
    %98 = arith.select %95, %97, %92 : vector<1x128xi1>, vector<1x128xi32>
    %99 = vector.broadcast %12 : f32 to vector<1x128xf32>
    %100 = arith.addf %27, %99 : vector<1x128xf32>
    %101 = arith.cmpf ogt, %100, %96 : vector<1x128xf32>
    %102 = arith.select %101, %100, %96 : vector<1x128xi1>, vector<1x128xf32>
    %c2_i32_64 = arith.constant 2 : i32
    %103 = vector.broadcast %c2_i32_64 : i32 to vector<1x128xi32>
    %104 = arith.select %101, %103, %98 : vector<1x128xi1>, vector<1x128xi32>
    %105 = vector.broadcast %13 : f32 to vector<1x128xf32>
    %106 = arith.addf %29, %105 : vector<1x128xf32>
    %107 = arith.cmpf ogt, %106, %102 : vector<1x128xf32>
    %108 = arith.select %107, %106, %102 : vector<1x128xi1>, vector<1x128xf32>
    %c3_i32_65 = arith.constant 3 : i32
    %109 = vector.broadcast %c3_i32_65 : i32 to vector<1x128xi32>
    %110 = arith.select %107, %109, %104 : vector<1x128xi1>, vector<1x128xi32>
    %111 = vector.broadcast %14 : f32 to vector<1x128xf32>
    %112 = arith.addf %28, %111 : vector<1x128xf32>
    %113 = arith.cmpf ogt, %112, %108 : vector<1x128xf32>
    %114 = arith.select %113, %112, %108 : vector<1x128xi1>, vector<1x128xf32>
    %c4_i32_66 = arith.constant 4 : i32
    %115 = vector.broadcast %c4_i32_66 : i32 to vector<1x128xi32>
    %116 = arith.select %113, %115, %110 : vector<1x128xi1>, vector<1x128xi32>
    %c2_67 = arith.constant 2 : index
    %c0_68 = arith.constant 0 : index
    %117 = vector.load %arg4[%c2_67, %c0_68] : memref<64x128xi32, #tpu.memory_space<vmem>>, vector<1x128xi32>
    tpu.vector_store %arg4[%c2_67, %c0_68], %116 {strides = array<i32>} : memref<64x128xi32, #tpu.memory_space<vmem>>, vector<1x128xi32>,
    %c2_69 = arith.constant 2 : index
    %c0_70 = arith.constant 0 : index
    %118 = vector.load %arg1[%c2_69, %c0_70] : memref<64x128xf32, #tpu.memory_space<vmem>>, vector<1x128xf32>
    %119 = arith.addf %114, %118 : vector<1x128xf32>
    %120 = vector.broadcast %15 : f32 to vector<1x128xf32>
    %121 = arith.addf %25, %120 : vector<1x128xf32>
    %c0_i32_71 = arith.constant 0 : i32
    %122 = vector.broadcast %c0_i32_71 : i32 to vector<1x128xi32>
    %123 = vector.broadcast %16 : f32 to vector<1x128xf32>
    %124 = arith.addf %26, %123 : vector<1x128xf32>
    %125 = arith.cmpf ogt, %124, %121 : vector<1x128xf32>
    %126 = arith.select %125, %124, %121 : vector<1x128xi1>, vector<1x128xf32>
    %c1_i32_72 = arith.constant 1 : i32
    %127 = vector.broadcast %c1_i32_72 : i32 to vector<1x128xi32>
    %128 = arith.select %125, %127, %122 : vector<1x128xi1>, vector<1x128xi32>
    %129 = vector.broadcast %17 : f32 to vector<1x128xf32>
    %130 = arith.addf %27, %129 : vector<1x128xf32>
    %131 = arith.cmpf ogt, %130, %126 : vector<1x128xf32>
    %132 = arith.select %131, %130, %126 : vector<1x128xi1>, vector<1x128xf32>
    %c2_i32_73 = arith.constant 2 : i32
    %133 = vector.broadcast %c2_i32_73 : i32 to vector<1x128xi32>
    %134 = arith.select %131, %133, %128 : vector<1x128xi1>, vector<1x128xi32>
    %135 = vector.broadcast %18 : f32 to vector<1x128xf32>
    %136 = arith.addf %29, %135 : vector<1x128xf32>
    %137 = arith.cmpf ogt, %136, %132 : vector<1x128xf32>
    %138 = arith.select %137, %136, %132 : vector<1x128xi1>, vector<1x128xf32>
    %c3_i32_74 = arith.constant 3 : i32
    %139 = vector.broadcast %c3_i32_74 : i32 to vector<1x128xi32>
    %140 = arith.select %137, %139, %134 : vector<1x128xi1>, vector<1x128xi32>
    %141 = vector.broadcast %19 : f32 to vector<1x128xf32>
    %142 = arith.addf %28, %141 : vector<1x128xf32>
    %143 = arith.cmpf ogt, %142, %138 : vector<1x128xf32>
    %144 = arith.select %143, %142, %138 : vector<1x128xi1>, vector<1x128xf32>
    %c4_i32_75 = arith.constant 4 : i32
    %145 = vector.broadcast %c4_i32_75 : i32 to vector<1x128xi32>
    %146 = arith.select %143, %145, %140 : vector<1x128xi1>, vector<1x128xi32>
    %c3_76 = arith.constant 3 : index
    %c0_77 = arith.constant 0 : index
    %147 = vector.load %arg4[%c3_76, %c0_77] : memref<64x128xi32, #tpu.memory_space<vmem>>, vector<1x128xi32>
    tpu.vector_store %arg4[%c3_76, %c0_77], %146 {strides = array<i32>} : memref<64x128xi32, #tpu.memory_space<vmem>>, vector<1x128xi32>,
    %c3_78 = arith.constant 3 : index
    %c0_79 = arith.constant 0 : index
    %148 = vector.load %arg1[%c3_78, %c0_79] : memref<64x128xf32, #tpu.memory_space<vmem>>, vector<1x128xf32>
    %149 = arith.addf %144, %148 : vector<1x128xf32>
    %150 = vector.broadcast %20 : f32 to vector<1x128xf32>
    %151 = arith.addf %25, %150 : vector<1x128xf32>
    %c0_i32_80 = arith.constant 0 : i32
    %152 = vector.broadcast %c0_i32_80 : i32 to vector<1x128xi32>
    %153 = vector.broadcast %21 : f32 to vector<1x128xf32>
    %154 = arith.addf %26, %153 : vector<1x128xf32>
    %155 = arith.cmpf ogt, %154, %151 : vector<1x128xf32>
    %156 = arith.select %155, %154, %151 : vector<1x128xi1>, vector<1x128xf32>
    %c1_i32_81 = arith.constant 1 : i32
    %157 = vector.broadcast %c1_i32_81 : i32 to vector<1x128xi32>
    %158 = arith.select %155, %157, %152 : vector<1x128xi1>, vector<1x128xi32>
    %159 = vector.broadcast %22 : f32 to vector<1x128xf32>
    %160 = arith.addf %27, %159 : vector<1x128xf32>
    %161 = arith.cmpf ogt, %160, %156 : vector<1x128xf32>
    %162 = arith.select %161, %160, %156 : vector<1x128xi1>, vector<1x128xf32>
    %c2_i32_82 = arith.constant 2 : i32
    %163 = vector.broadcast %c2_i32_82 : i32 to vector<1x128xi32>
    %164 = arith.select %161, %163, %158 : vector<1x128xi1>, vector<1x128xi32>
    %165 = vector.broadcast %23 : f32 to vector<1x128xf32>
    %166 = arith.addf %29, %165 : vector<1x128xf32>
    %167 = arith.cmpf ogt, %166, %162 : vector<1x128xf32>
    %168 = arith.select %167, %166, %162 : vector<1x128xi1>, vector<1x128xf32>
    %c3_i32_83 = arith.constant 3 : i32
    %169 = vector.broadcast %c3_i32_83 : i32 to vector<1x128xi32>
    %170 = arith.select %167, %169, %164 : vector<1x128xi1>, vector<1x128xi32>
    %171 = vector.broadcast %24 : f32 to vector<1x128xf32>
    %172 = arith.addf %28, %171 : vector<1x128xf32>
    %173 = arith.cmpf ogt, %172, %168 : vector<1x128xf32>
    %174 = arith.select %173, %172, %168 : vector<1x128xi1>, vector<1x128xf32>
    %c4_i32_84 = arith.constant 4 : i32
    %175 = vector.broadcast %c4_i32_84 : i32 to vector<1x128xi32>
    %176 = arith.select %173, %175, %170 : vector<1x128xi1>, vector<1x128xi32>
    %c4_85 = arith.constant 4 : index
    %c0_86 = arith.constant 0 : index
    %177 = vector.load %arg4[%c4_85, %c0_86] : memref<64x128xi32, #tpu.memory_space<vmem>>, vector<1x128xi32>
    tpu.vector_store %arg4[%c4_85, %c0_86], %176 {strides = array<i32>} : memref<64x128xi32, #tpu.memory_space<vmem>>, vector<1x128xi32>,
    %c4_87 = arith.constant 4 : index
    %c0_88 = arith.constant 0 : index
    %178 = vector.load %arg1[%c4_87, %c0_88] : memref<64x128xf32, #tpu.memory_space<vmem>>, vector<1x128xf32>
    %179 = arith.addf %174, %178 : vector<1x128xf32>
    %180 = vector.broadcast %0 : f32 to vector<1x128xf32>
    %181 = arith.addf %59, %180 : vector<1x128xf32>
    %c0_i32_89 = arith.constant 0 : i32
    %182 = vector.broadcast %c0_i32_89 : i32 to vector<1x128xi32>
    %183 = vector.broadcast %1 : f32 to vector<1x128xf32>
    %184 = arith.addf %89, %183 : vector<1x128xf32>
    %185 = arith.cmpf ogt, %184, %181 : vector<1x128xf32>
    %186 = arith.select %185, %184, %181 : vector<1x128xi1>, vector<1x128xf32>
    %c1_i32_90 = arith.constant 1 : i32
    %187 = vector.broadcast %c1_i32_90 : i32 to vector<1x128xi32>
    %188 = arith.select %185, %187, %182 : vector<1x128xi1>, vector<1x128xi32>
    %189 = vector.broadcast %2 : f32 to vector<1x128xf32>
    %190 = arith.addf %119, %189 : vector<1x128xf32>
    %191 = arith.cmpf ogt, %190, %186 : vector<1x128xf32>
    %192 = arith.select %191, %190, %186 : vector<1x128xi1>, vector<1x128xf32>
    %c2_i32_91 = arith.constant 2 : i32
    %193 = vector.broadcast %c2_i32_91 : i32 to vector<1x128xi32>
    %194 = arith.select %191, %193, %188 : vector<1x128xi1>, vector<1x128xi32>
    %195 = vector.broadcast %3 : f32 to vector<1x128xf32>
    %196 = arith.addf %149, %195 : vector<1x128xf32>
    %197 = arith.cmpf ogt, %196, %192 : vector<1x128xf32>
    %198 = arith.select %197, %196, %192 : vector<1x128xi1>, vector<1x128xf32>
    %c3_i32_92 = arith.constant 3 : i32
    %199 = vector.broadcast %c3_i32_92 : i32 to vector<1x128xi32>
    %200 = arith.select %197, %199, %194 : vector<1x128xi1>, vector<1x128xi32>
    %201 = vector.broadcast %4 : f32 to vector<1x128xf32>
    %202 = arith.addf %179, %201 : vector<1x128xf32>
    %203 = arith.cmpf ogt, %202, %198 : vector<1x128xf32>
    %204 = arith.select %203, %202, %198 : vector<1x128xi1>, vector<1x128xf32>
    %c4_i32_93 = arith.constant 4 : i32
    %205 = vector.broadcast %c4_i32_93 : i32 to vector<1x128xi32>
    %206 = arith.select %203, %205, %200 : vector<1x128xi1>, vector<1x128xi32>
    %c8 = arith.constant 8 : index
    %c0_94 = arith.constant 0 : index
    %207 = vector.load %arg4[%c8, %c0_94] : memref<64x128xi32, #tpu.memory_space<vmem>>, vector<1x128xi32>
    tpu.vector_store %arg4[%c8, %c0_94], %206 {strides = array<i32>} : memref<64x128xi32, #tpu.memory_space<vmem>>, vector<1x128xi32>,
    %c8_95 = arith.constant 8 : index
    %c0_96 = arith.constant 0 : index
    %208 = vector.load %arg1[%c8_95, %c0_96] : memref<64x128xf32, #tpu.memory_space<vmem>>, vector<1x128xf32>
    %209 = arith.addf %204, %208 : vector<1x128xf32>
    %210 = vector.broadcast %5 : f32 to vector<1x128xf32>
    %211 = arith.addf %59, %210 : vector<1x128xf32>
    %c0_i32_97 = arith.constant 0 : i32
    %212 = vector.broadcast %c0_i32_97 : i32 to vector<1x128xi32>
    %213 = vector.broadcast %6 : f32 to vector<1x128xf32>
    %214 = arith.addf %89, %213 : vector<1x128xf32>
    %215 = arith.cmpf ogt, %214, %211 : vector<1x128xf32>
    %216 = arith.select %215, %214, %211 : vector<1x128xi1>, vector<1x128xf32>
    %c1_i32_98 = arith.constant 1 : i32
    %217 = vector.broadcast %c1_i32_98 : i32 to vector<1x128xi32>
    %218 = arith.select %215, %217, %212 : vector<1x128xi1>, vector<1x128xi32>
    %219 = vector.broadcast %7 : f32 to vector<1x128xf32>
    %220 = arith.addf %119, %219 : vector<1x128xf32>
    %221 = arith.cmpf ogt, %220, %216 : vector<1x128xf32>
    %222 = arith.select %221, %220, %216 : vector<1x128xi1>, vector<1x128xf32>
    %c2_i32_99 = arith.constant 2 : i32
    %223 = vector.broadcast %c2_i32_99 : i32 to vector<1x128xi32>
    %224 = arith.select %221, %223, %218 : vector<1x128xi1>, vector<1x128xi32>
    %225 = vector.broadcast %8 : f32 to vector<1x128xf32>
    %226 = arith.addf %149, %225 : vector<1x128xf32>
    %227 = arith.cmpf ogt, %226, %222 : vector<1x128xf32>
    %228 = arith.select %227, %226, %222 : vector<1x128xi1>, vector<1x128xf32>
    %c3_i32_100 = arith.constant 3 : i32
    %229 = vector.broadcast %c3_i32_100 : i32 to vector<1x128xi32>
    %230 = arith.select %227, %229, %224 : vector<1x128xi1>, vector<1x128xi32>
    %231 = vector.broadcast %9 : f32 to vector<1x128xf32>
    %232 = arith.addf %179, %231 : vector<1x128xf32>
    %233 = arith.cmpf ogt, %232, %228 : vector<1x128xf32>
    %234 = arith.select %233, %232, %228 : vector<1x128xi1>, vector<1x128xf32>
    %c4_i32_101 = arith.constant 4 : i32
    %235 = vector.broadcast %c4_i32_101 : i32 to vector<1x128xi32>
    %236 = arith.select %233, %235, %230 : vector<1x128xi1>, vector<1x128xi32>
    %c9 = arith.constant 9 : index
    %c0_102 = arith.constant 0 : index
    %237 = vector.load %arg4[%c9, %c0_102] : memref<64x128xi32, #tpu.memory_space<vmem>>, vector<1x128xi32>
    tpu.vector_store %arg4[%c9, %c0_102], %236 {strides = array<i32>} : memref<64x128xi32, #tpu.memory_space<vmem>>, vector<1x128xi32>,
    %c9_103 = arith.constant 9 : index
    %c0_104 = arith.constant 0 : index
    %238 = vector.load %arg1[%c9_103, %c0_104] : memref<64x128xf32, #tpu.memory_space<vmem>>, vector<1x128xf32>
    %239 = arith.addf %234, %238 : vector<1x128xf32>
    %240 = vector.broadcast %10 : f32 to vector<1x128xf32>
    %241 = arith.addf %59, %240 : vector<1x128xf32>
    %c0_i32_105 = arith.constant 0 : i32
    %242 = vector.broadcast %c0_i32_105 : i32 to vector<1x128xi32>
    %243 = vector.broadcast %11 : f32 to vector<1x128xf32>
    %244 = arith.addf %89, %243 : vector<1x128xf32>
    %245 = arith.cmpf ogt, %244, %241 : vector<1x128xf32>
    %246 = arith.select %245, %244, %241 : vector<1x128xi1>, vector<1x128xf32>
    %c1_i32_106 = arith.constant 1 : i32
    %247 = vector.broadcast %c1_i32_106 : i32 to vector<1x128xi32>
    %248 = arith.select %245, %247, %242 : vector<1x128xi1>, vector<1x128xi32>
    %249 = vector.broadcast %12 : f32 to vector<1x128xf32>
    %250 = arith.addf %119, %249 : vector<1x128xf32>
    %251 = arith.cmpf ogt, %250, %246 : vector<1x128xf32>
    %252 = arith.select %251, %250, %246 : vector<1x128xi1>, vector<1x128xf32>
    %c2_i32_107 = arith.constant 2 : i32
    %253 = vector.broadcast %c2_i32_107 : i32 to vector<1x128xi32>
    %254 = arith.select %251, %253, %248 : vector<1x128xi1>, vector<1x128xi32>
    %255 = vector.broadcast %13 : f32 to vector<1x128xf32>
    %256 = arith.addf %149, %255 : vector<1x128xf32>
    %257 = arith.cmpf ogt, %256, %252 : vector<1x128xf32>
    %258 = arith.select %257, %256, %252 : vector<1x128xi1>, vector<1x128xf32>
    %c3_i32_108 = arith.constant 3 : i32
    %259 = vector.broadcast %c3_i32_108 : i32 to vector<1x128xi32>
    %260 = arith.select %257, %259, %254 : vector<1x128xi1>, vector<1x128xi32>
    %261 = vector.broadcast %14 : f32 to vector<1x128xf32>
    %262 = arith.addf %179, %261 : vector<1x128xf32>
    %263 = arith.cmpf ogt, %262, %258 : vector<1x128xf32>
    %264 = arith.select %263, %262, %258 : vector<1x128xi1>, vector<1x128xf32>
    %c4_i32_109 = arith.constant 4 : i32
    %265 = vector.broadcast %c4_i32_109 : i32 to vector<1x128xi32>
    %266 = arith.select %263, %265, %260 : vector<1x128xi1>, vector<1x128xi32>
    %c10 = arith.constant 10 : index
    %c0_110 = arith.constant 0 : index
    %267 = vector.load %arg4[%c10, %c0_110] : memref<64x128xi32, #tpu.memory_space<vmem>>, vector<1x128xi32>
    tpu.vector_store %arg4[%c10, %c0_110], %266 {strides = array<i32>} : memref<64x128xi32, #tpu.memory_space<vmem>>, vector<1x128xi32>,
    %c10_111 = arith.constant 10 : index
    %c0_112 = arith.constant 0 : index
    %268 = vector.load %arg1[%c10_111, %c0_112] : memref<64x128xf32, #tpu.memory_space<vmem>>, vector<1x128xf32>
    %269 = arith.addf %264, %268 : vector<1x128xf32>
    %270 = vector.broadcast %15 : f32 to vector<1x128xf32>
    %271 = arith.addf %59, %270 : vector<1x128xf32>
    %c0_i32_113 = arith.constant 0 : i32
    %272 = vector.broadcast %c0_i32_113 : i32 to vector<1x128xi32>
    %273 = vector.broadcast %16 : f32 to vector<1x128xf32>
    %274 = arith.addf %89, %273 : vector<1x128xf32>
    %275 = arith.cmpf ogt, %274, %271 : vector<1x128xf32>
    %276 = arith.select %275, %274, %271 : vector<1x128xi1>, vector<1x128xf32>
    %c1_i32_114 = arith.constant 1 : i32
    %277 = vector.broadcast %c1_i32_114 : i32 to vector<1x128xi32>
    %278 = arith.select %275, %277, %272 : vector<1x128xi1>, vector<1x128xi32>
    %279 = vector.broadcast %17 : f32 to vector<1x128xf32>
    %280 = arith.addf %119, %279 : vector<1x128xf32>
    %281 = arith.cmpf ogt, %280, %276 : vector<1x128xf32>
    %282 = arith.select %281, %280, %276 : vector<1x128xi1>, vector<1x128xf32>
    %c2_i32_115 = arith.constant 2 : i32
    %283 = vector.broadcast %c2_i32_115 : i32 to vector<1x128xi32>
    %284 = arith.select %281, %283, %278 : vector<1x128xi1>, vector<1x128xi32>
    %285 = vector.broadcast %18 : f32 to vector<1x128xf32>
    %286 = arith.addf %149, %285 : vector<1x128xf32>
    %287 = arith.cmpf ogt, %286, %282 : vector<1x128xf32>
    %288 = arith.select %287, %286, %282 : vector<1x128xi1>, vector<1x128xf32>
    %c3_i32_116 = arith.constant 3 : i32
    %289 = vector.broadcast %c3_i32_116 : i32 to vector<1x128xi32>
    %290 = arith.select %287, %289, %284 : vector<1x128xi1>, vector<1x128xi32>
    %291 = vector.broadcast %19 : f32 to vector<1x128xf32>
    %292 = arith.addf %179, %291 : vector<1x128xf32>
    %293 = arith.cmpf ogt, %292, %288 : vector<1x128xf32>
    %294 = arith.select %293, %292, %288 : vector<1x128xi1>, vector<1x128xf32>
    %c4_i32_117 = arith.constant 4 : i32
    %295 = vector.broadcast %c4_i32_117 : i32 to vector<1x128xi32>
    %296 = arith.select %293, %295, %290 : vector<1x128xi1>, vector<1x128xi32>
    %c11 = arith.constant 11 : index
    %c0_118 = arith.constant 0 : index
    %297 = vector.load %arg4[%c11, %c0_118] : memref<64x128xi32, #tpu.memory_space<vmem>>, vector<1x128xi32>
    tpu.vector_store %arg4[%c11, %c0_118], %296 {strides = array<i32>} : memref<64x128xi32, #tpu.memory_space<vmem>>, vector<1x128xi32>,
    %c11_119 = arith.constant 11 : index
    %c0_120 = arith.constant 0 : index
    %298 = vector.load %arg1[%c11_119, %c0_120] : memref<64x128xf32, #tpu.memory_space<vmem>>, vector<1x128xf32>
    %299 = arith.addf %294, %298 : vector<1x128xf32>
    %300 = vector.broadcast %20 : f32 to vector<1x128xf32>
    %301 = arith.addf %59, %300 : vector<1x128xf32>
    %c0_i32_121 = arith.constant 0 : i32
    %302 = vector.broadcast %c0_i32_121 : i32 to vector<1x128xi32>
    %303 = vector.broadcast %21 : f32 to vector<1x128xf32>
    %304 = arith.addf %89, %303 : vector<1x128xf32>
    %305 = arith.cmpf ogt, %304, %301 : vector<1x128xf32>
    %306 = arith.select %305, %304, %301 : vector<1x128xi1>, vector<1x128xf32>
    %c1_i32_122 = arith.constant 1 : i32
    %307 = vector.broadcast %c1_i32_122 : i32 to vector<1x128xi32>
    %308 = arith.select %305, %307, %302 : vector<1x128xi1>, vector<1x128xi32>
    %309 = vector.broadcast %22 : f32 to vector<1x128xf32>
    %310 = arith.addf %119, %309 : vector<1x128xf32>
    %311 = arith.cmpf ogt, %310, %306 : vector<1x128xf32>
    %312 = arith.select %311, %310, %306 : vector<1x128xi1>, vector<1x128xf32>
    %c2_i32_123 = arith.constant 2 : i32
    %313 = vector.broadcast %c2_i32_123 : i32 to vector<1x128xi32>
    %314 = arith.select %311, %313, %308 : vector<1x128xi1>, vector<1x128xi32>
    %315 = vector.broadcast %23 : f32 to vector<1x128xf32>
    %316 = arith.addf %149, %315 : vector<1x128xf32>
    %317 = arith.cmpf ogt, %316, %312 : vector<1x128xf32>
    %318 = arith.select %317, %316, %312 : vector<1x128xi1>, vector<1x128xf32>
    %c3_i32_124 = arith.constant 3 : i32
    %319 = vector.broadcast %c3_i32_124 : i32 to vector<1x128xi32>
    %320 = arith.select %317, %319, %314 : vector<1x128xi1>, vector<1x128xi32>
    %321 = vector.broadcast %24 : f32 to vector<1x128xf32>
    %322 = arith.addf %179, %321 : vector<1x128xf32>
    %323 = arith.cmpf ogt, %322, %318 : vector<1x128xf32>
    %324 = arith.select %323, %322, %318 : vector<1x128xi1>, vector<1x128xf32>
    %c4_i32_125 = arith.constant 4 : i32
    %325 = vector.broadcast %c4_i32_125 : i32 to vector<1x128xi32>
    %326 = arith.select %323, %325, %320 : vector<1x128xi1>, vector<1x128xi32>
    %c12 = arith.constant 12 : index
    %c0_126 = arith.constant 0 : index
    %327 = vector.load %arg4[%c12, %c0_126] : memref<64x128xi32, #tpu.memory_space<vmem>>, vector<1x128xi32>
    tpu.vector_store %arg4[%c12, %c0_126], %326 {strides = array<i32>} : memref<64x128xi32, #tpu.memory_space<vmem>>, vector<1x128xi32>,
    %c12_127 = arith.constant 12 : index
    %c0_128 = arith.constant 0 : index
    %328 = vector.load %arg1[%c12_127, %c0_128] : memref<64x128xf32, #tpu.memory_space<vmem>>, vector<1x128xf32>
    %329 = arith.addf %324, %328 : vector<1x128xf32>
    %330 = vector.broadcast %0 : f32 to vector<1x128xf32>
    %331 = arith.addf %209, %330 : vector<1x128xf32>
    %c0_i32_129 = arith.constant 0 : i32
    %332 = vector.broadcast %c0_i32_129 : i32 to vector<1x128xi32>
    %333 = vector.broadcast %1 : f32 to vector<1x128xf32>
    %334 = arith.addf %239, %333 : vector<1x128xf32>
    %335 = arith.cmpf ogt, %334, %331 : vector<1x128xf32>
    %336 = arith.select %335, %334, %331 : vector<1x128xi1>, vector<1x128xf32>
    %c1_i32_130 = arith.constant 1 : i32
    %337 = vector.broadcast %c1_i32_130 : i32 to vector<1x128xi32>
    %338 = arith.select %335, %337, %332 : vector<1x128xi1>, vector<1x128xi32>
    %339 = vector.broadcast %2 : f32 to vector<1x128xf32>
    %340 = arith.addf %269, %339 : vector<1x128xf32>
    %341 = arith.cmpf ogt, %340, %336 : vector<1x128xf32>
    %342 = arith.select %341, %340, %336 : vector<1x128xi1>, vector<1x128xf32>
    %c2_i32_131 = arith.constant 2 : i32
    %343 = vector.broadcast %c2_i32_131 : i32 to vector<1x128xi32>
    %344 = arith.select %341, %343, %338 : vector<1x128xi1>, vector<1x128xi32>
    %345 = vector.broadcast %3 : f32 to vector<1x128xf32>
    %346 = arith.addf %299, %345 : vector<1x128xf32>
    %347 = arith.cmpf ogt, %346, %342 : vector<1x128xf32>
    %348 = arith.select %347, %346, %342 : vector<1x128xi1>, vector<1x128xf32>
    %c3_i32_132 = arith.constant 3 : i32
    %349 = vector.broadcast %c3_i32_132 : i32 to vector<1x128xi32>
    %350 = arith.select %347, %349, %344 : vector<1x128xi1>, vector<1x128xi32>
    %351 = vector.broadcast %4 : f32 to vector<1x128xf32>
    %352 = arith.addf %329, %351 : vector<1x128xf32>
    %353 = arith.cmpf ogt, %352, %348 : vector<1x128xf32>
    %354 = arith.select %353, %352, %348 : vector<1x128xi1>, vector<1x128xf32>
    %c4_i32_133 = arith.constant 4 : i32
    %355 = vector.broadcast %c4_i32_133 : i32 to vector<1x128xi32>
    %356 = arith.select %353, %355, %350 : vector<1x128xi1>, vector<1x128xi32>
    %c16 = arith.constant 16 : index
    %c0_134 = arith.constant 0 : index
    %357 = vector.load %arg4[%c16, %c0_134] : memref<64x128xi32, #tpu.memory_space<vmem>>, vector<1x128xi32>
    tpu.vector_store %arg4[%c16, %c0_134], %356 {strides = array<i32>} : memref<64x128xi32, #tpu.memory_space<vmem>>, vector<1x128xi32>,
    %c16_135 = arith.constant 16 : index
    %c0_136 = arith.constant 0 : index
    %358 = vector.load %arg1[%c16_135, %c0_136] : memref<64x128xf32, #tpu.memory_space<vmem>>, vector<1x128xf32>
    %359 = arith.addf %354, %358 : vector<1x128xf32>
    %360 = vector.broadcast %5 : f32 to vector<1x128xf32>
    %361 = arith.addf %209, %360 : vector<1x128xf32>
    %c0_i32_137 = arith.constant 0 : i32
    %362 = vector.broadcast %c0_i32_137 : i32 to vector<1x128xi32>
    %363 = vector.broadcast %6 : f32 to vector<1x128xf32>
    %364 = arith.addf %239, %363 : vector<1x128xf32>
    %365 = arith.cmpf ogt, %364, %361 : vector<1x128xf32>
    %366 = arith.select %365, %364, %361 : vector<1x128xi1>, vector<1x128xf32>
    %c1_i32_138 = arith.constant 1 : i32
    %367 = vector.broadcast %c1_i32_138 : i32 to vector<1x128xi32>
    %368 = arith.select %365, %367, %362 : vector<1x128xi1>, vector<1x128xi32>
    %369 = vector.broadcast %7 : f32 to vector<1x128xf32>
    %370 = arith.addf %269, %369 : vector<1x128xf32>
    %371 = arith.cmpf ogt, %370, %366 : vector<1x128xf32>
    %372 = arith.select %371, %370, %366 : vector<1x128xi1>, vector<1x128xf32>
    %c2_i32_139 = arith.constant 2 : i32
    %373 = vector.broadcast %c2_i32_139 : i32 to vector<1x128xi32>
    %374 = arith.select %371, %373, %368 : vector<1x128xi1>, vector<1x128xi32>
    %375 = vector.broadcast %8 : f32 to vector<1x128xf32>
    %376 = arith.addf %299, %375 : vector<1x128xf32>
    %377 = arith.cmpf ogt, %376, %372 : vector<1x128xf32>
    %378 = arith.select %377, %376, %372 : vector<1x128xi1>, vector<1x128xf32>
    %c3_i32_140 = arith.constant 3 : i32
    %379 = vector.broadcast %c3_i32_140 : i32 to vector<1x128xi32>
    %380 = arith.select %377, %379, %374 : vector<1x128xi1>, vector<1x128xi32>
    %381 = vector.broadcast %9 : f32 to vector<1x128xf32>
    %382 = arith.addf %329, %381 : vector<1x128xf32>
    %383 = arith.cmpf ogt, %382, %378 : vector<1x128xf32>
    %384 = arith.select %383, %382, %378 : vector<1x128xi1>, vector<1x128xf32>
    %c4_i32_141 = arith.constant 4 : i32
    %385 = vector.broadcast %c4_i32_141 : i32 to vector<1x128xi32>
    %386 = arith.select %383, %385, %380 : vector<1x128xi1>, vector<1x128xi32>
    %c17 = arith.constant 17 : index
    %c0_142 = arith.constant 0 : index
    %387 = vector.load %arg4[%c17, %c0_142] : memref<64x128xi32, #tpu.memory_space<vmem>>, vector<1x128xi32>
    tpu.vector_store %arg4[%c17, %c0_142], %386 {strides = array<i32>} : memref<64x128xi32, #tpu.memory_space<vmem>>, vector<1x128xi32>,
    %c17_143 = arith.constant 17 : index
    %c0_144 = arith.constant 0 : index
    %388 = vector.load %arg1[%c17_143, %c0_144] : memref<64x128xf32, #tpu.memory_space<vmem>>, vector<1x128xf32>
    %389 = arith.addf %384, %388 : vector<1x128xf32>
    %390 = vector.broadcast %10 : f32 to vector<1x128xf32>
    %391 = arith.addf %209, %390 : vector<1x128xf32>
    %c0_i32_145 = arith.constant 0 : i32
    %392 = vector.broadcast %c0_i32_145 : i32 to vector<1x128xi32>
    %393 = vector.broadcast %11 : f32 to vector<1x128xf32>
    %394 = arith.addf %239, %393 : vector<1x128xf32>
    %395 = arith.cmpf ogt, %394, %391 : vector<1x128xf32>
    %396 = arith.select %395, %394, %391 : vector<1x128xi1>, vector<1x128xf32>
    %c1_i32_146 = arith.constant 1 : i32
    %397 = vector.broadcast %c1_i32_146 : i32 to vector<1x128xi32>
    %398 = arith.select %395, %397, %392 : vector<1x128xi1>, vector<1x128xi32>
    %399 = vector.broadcast %12 : f32 to vector<1x128xf32>
    %400 = arith.addf %269, %399 : vector<1x128xf32>
    %401 = arith.cmpf ogt, %400, %396 : vector<1x128xf32>
    %402 = arith.select %401, %400, %396 : vector<1x128xi1>, vector<1x128xf32>
    %c2_i32_147 = arith.constant 2 : i32
    %403 = vector.broadcast %c2_i32_147 : i32 to vector<1x128xi32>
    %404 = arith.select %401, %403, %398 : vector<1x128xi1>, vector<1x128xi32>
    %405 = vector.broadcast %13 : f32 to vector<1x128xf32>
    %406 = arith.addf %299, %405 : vector<1x128xf32>
    %407 = arith.cmpf ogt, %406, %402 : vector<1x128xf32>
    %408 = arith.select %407, %406, %402 : vector<1x128xi1>, vector<1x128xf32>
    %c3_i32_148 = arith.constant 3 : i32
    %409 = vector.broadcast %c3_i32_148 : i32 to vector<1x128xi32>
    %410 = arith.select %407, %409, %404 : vector<1x128xi1>, vector<1x128xi32>
    %411 = vector.broadcast %14 : f32 to vector<1x128xf32>
    %412 = arith.addf %329, %411 : vector<1x128xf32>
    %413 = arith.cmpf ogt, %412, %408 : vector<1x128xf32>
    %414 = arith.select %413, %412, %408 : vector<1x128xi1>, vector<1x128xf32>
    %c4_i32_149 = arith.constant 4 : i32
    %415 = vector.broadcast %c4_i32_149 : i32 to vector<1x128xi32>
    %416 = arith.select %413, %415, %410 : vector<1x128xi1>, vector<1x128xi32>
    %c18 = arith.constant 18 : index
    %c0_150 = arith.constant 0 : index
    %417 = vector.load %arg4[%c18, %c0_150] : memref<64x128xi32, #tpu.memory_space<vmem>>, vector<1x128xi32>
    tpu.vector_store %arg4[%c18, %c0_150], %416 {strides = array<i32>} : memref<64x128xi32, #tpu.memory_space<vmem>>, vector<1x128xi32>,
    %c18_151 = arith.constant 18 : index
    %c0_152 = arith.constant 0 : index
    %418 = vector.load %arg1[%c18_151, %c0_152] : memref<64x128xf32, #tpu.memory_space<vmem>>, vector<1x128xf32>
    %419 = arith.addf %414, %418 : vector<1x128xf32>
    %420 = vector.broadcast %15 : f32 to vector<1x128xf32>
    %421 = arith.addf %209, %420 : vector<1x128xf32>
    %c0_i32_153 = arith.constant 0 : i32
    %422 = vector.broadcast %c0_i32_153 : i32 to vector<1x128xi32>
    %423 = vector.broadcast %16 : f32 to vector<1x128xf32>
    %424 = arith.addf %239, %423 : vector<1x128xf32>
    %425 = arith.cmpf ogt, %424, %421 : vector<1x128xf32>
    %426 = arith.select %425, %424, %421 : vector<1x128xi1>, vector<1x128xf32>
    %c1_i32_154 = arith.constant 1 : i32
    %427 = vector.broadcast %c1_i32_154 : i32 to vector<1x128xi32>
    %428 = arith.select %425, %427, %422 : vector<1x128xi1>, vector<1x128xi32>
    %429 = vector.broadcast %17 : f32 to vector<1x128xf32>
    %430 = arith.addf %269, %429 : vector<1x128xf32>
    %431 = arith.cmpf ogt, %430, %426 : vector<1x128xf32>
    %432 = arith.select %431, %430, %426 : vector<1x128xi1>, vector<1x128xf32>
    %c2_i32_155 = arith.constant 2 : i32
    %433 = vector.broadcast %c2_i32_155 : i32 to vector<1x128xi32>
    %434 = arith.select %431, %433, %428 : vector<1x128xi1>, vector<1x128xi32>
    %435 = vector.broadcast %18 : f32 to vector<1x128xf32>
    %436 = arith.addf %299, %435 : vector<1x128xf32>
    %437 = arith.cmpf ogt, %436, %432 : vector<1x128xf32>
    %438 = arith.select %437, %436, %432 : vector<1x128xi1>, vector<1x128xf32>
    %c3_i32_156 = arith.constant 3 : i32
    %439 = vector.broadcast %c3_i32_156 : i32 to vector<1x128xi32>
    %440 = arith.select %437, %439, %434 : vector<1x128xi1>, vector<1x128xi32>
    %441 = vector.broadcast %19 : f32 to vector<1x128xf32>
    %442 = arith.addf %329, %441 : vector<1x128xf32>
    %443 = arith.cmpf ogt, %442, %438 : vector<1x128xf32>
    %444 = arith.select %443, %442, %438 : vector<1x128xi1>, vector<1x128xf32>
    %c4_i32_157 = arith.constant 4 : i32
    %445 = vector.broadcast %c4_i32_157 : i32 to vector<1x128xi32>
    %446 = arith.select %443, %445, %440 : vector<1x128xi1>, vector<1x128xi32>
    %c19 = arith.constant 19 : index
    %c0_158 = arith.constant 0 : index
    %447 = vector.load %arg4[%c19, %c0_158] : memref<64x128xi32, #tpu.memory_space<vmem>>, vector<1x128xi32>
    tpu.vector_store %arg4[%c19, %c0_158], %446 {strides = array<i32>} : memref<64x128xi32, #tpu.memory_space<vmem>>, vector<1x128xi32>,
    %c19_159 = arith.constant 19 : index
    %c0_160 = arith.constant 0 : index
    %448 = vector.load %arg1[%c19_159, %c0_160] : memref<64x128xf32, #tpu.memory_space<vmem>>, vector<1x128xf32>
    %449 = arith.addf %444, %448 : vector<1x128xf32>
    %450 = vector.broadcast %20 : f32 to vector<1x128xf32>
    %451 = arith.addf %209, %450 : vector<1x128xf32>
    %c0_i32_161 = arith.constant 0 : i32
    %452 = vector.broadcast %c0_i32_161 : i32 to vector<1x128xi32>
    %453 = vector.broadcast %21 : f32 to vector<1x128xf32>
    %454 = arith.addf %239, %453 : vector<1x128xf32>
    %455 = arith.cmpf ogt, %454, %451 : vector<1x128xf32>
    %456 = arith.select %455, %454, %451 : vector<1x128xi1>, vector<1x128xf32>
    %c1_i32_162 = arith.constant 1 : i32
    %457 = vector.broadcast %c1_i32_162 : i32 to vector<1x128xi32>
    %458 = arith.select %455, %457, %452 : vector<1x128xi1>, vector<1x128xi32>
    %459 = vector.broadcast %22 : f32 to vector<1x128xf32>
    %460 = arith.addf %269, %459 : vector<1x128xf32>
    %461 = arith.cmpf ogt, %460, %456 : vector<1x128xf32>
    %462 = arith.select %461, %460, %456 : vector<1x128xi1>, vector<1x128xf32>
    %c2_i32_163 = arith.constant 2 : i32
    %463 = vector.broadcast %c2_i32_163 : i32 to vector<1x128xi32>
    %464 = arith.select %461, %463, %458 : vector<1x128xi1>, vector<1x128xi32>
    %465 = vector.broadcast %23 : f32 to vector<1x128xf32>
    %466 = arith.addf %299, %465 : vector<1x128xf32>
    %467 = arith.cmpf ogt, %466, %462 : vector<1x128xf32>
    %468 = arith.select %467, %466, %462 : vector<1x128xi1>, vector<1x128xf32>
    %c3_i32_164 = arith.constant 3 : i32
    %469 = vector.broadcast %c3_i32_164 : i32 to vector<1x128xi32>
    %470 = arith.select %467, %469, %464 : vector<1x128xi1>, vector<1x128xi32>
    %471 = vector.broadcast %24 : f32 to vector<1x128xf32>
    %472 = arith.addf %329, %471 : vector<1x128xf32>
    %473 = arith.cmpf ogt, %472, %468 : vector<1x128xf32>
    %474 = arith.select %473, %472, %468 : vector<1x128xi1>, vector<1x128xf32>
    %c4_i32_165 = arith.constant 4 : i32
    %475 = vector.broadcast %c4_i32_165 : i32 to vector<1x128xi32>
    %476 = arith.select %473, %475, %470 : vector<1x128xi1>, vector<1x128xi32>
    %c20 = arith.constant 20 : index
    %c0_166 = arith.constant 0 : index
    %477 = vector.load %arg4[%c20, %c0_166] : memref<64x128xi32, #tpu.memory_space<vmem>>, vector<1x128xi32>
    tpu.vector_store %arg4[%c20, %c0_166], %476 {strides = array<i32>} : memref<64x128xi32, #tpu.memory_space<vmem>>, vector<1x128xi32>,
    %c20_167 = arith.constant 20 : index
    %c0_168 = arith.constant 0 : index
    %478 = vector.load %arg1[%c20_167, %c0_168] : memref<64x128xf32, #tpu.memory_space<vmem>>, vector<1x128xf32>
    %479 = arith.addf %474, %478 : vector<1x128xf32>
    %480 = vector.broadcast %0 : f32 to vector<1x128xf32>
    %481 = arith.addf %359, %480 : vector<1x128xf32>
    %c0_i32_169 = arith.constant 0 : i32
    %482 = vector.broadcast %c0_i32_169 : i32 to vector<1x128xi32>
    %483 = vector.broadcast %1 : f32 to vector<1x128xf32>
    %484 = arith.addf %389, %483 : vector<1x128xf32>
    %485 = arith.cmpf ogt, %484, %481 : vector<1x128xf32>
    %486 = arith.select %485, %484, %481 : vector<1x128xi1>, vector<1x128xf32>
    %c1_i32_170 = arith.constant 1 : i32
    %487 = vector.broadcast %c1_i32_170 : i32 to vector<1x128xi32>
    %488 = arith.select %485, %487, %482 : vector<1x128xi1>, vector<1x128xi32>
    %489 = vector.broadcast %2 : f32 to vector<1x128xf32>
    %490 = arith.addf %419, %489 : vector<1x128xf32>
    %491 = arith.cmpf ogt, %490, %486 : vector<1x128xf32>
    %492 = arith.select %491, %490, %486 : vector<1x128xi1>, vector<1x128xf32>
    %c2_i32_171 = arith.constant 2 : i32
    %493 = vector.broadcast %c2_i32_171 : i32 to vector<1x128xi32>
    %494 = arith.select %491, %493, %488 : vector<1x128xi1>, vector<1x128xi32>
    %495 = vector.broadcast %3 : f32 to vector<1x128xf32>
    %496 = arith.addf %449, %495 : vector<1x128xf32>
    %497 = arith.cmpf ogt, %496, %492 : vector<1x128xf32>
    %498 = arith.select %497, %496, %492 : vector<1x128xi1>, vector<1x128xf32>
    %c3_i32_172 = arith.constant 3 : i32
    %499 = vector.broadcast %c3_i32_172 : i32 to vector<1x128xi32>
    %500 = arith.select %497, %499, %494 : vector<1x128xi1>, vector<1x128xi32>
    %501 = vector.broadcast %4 : f32 to vector<1x128xf32>
    %502 = arith.addf %479, %501 : vector<1x128xf32>
    %503 = arith.cmpf ogt, %502, %498 : vector<1x128xf32>
    %504 = arith.select %503, %502, %498 : vector<1x128xi1>, vector<1x128xf32>
    %c4_i32_173 = arith.constant 4 : i32
    %505 = vector.broadcast %c4_i32_173 : i32 to vector<1x128xi32>
    %506 = arith.select %503, %505, %500 : vector<1x128xi1>, vector<1x128xi32>
    %c24 = arith.constant 24 : index
    %c0_174 = arith.constant 0 : index
    %507 = vector.load %arg4[%c24, %c0_174] : memref<64x128xi32, #tpu.memory_space<vmem>>, vector<1x128xi32>
    tpu.vector_store %arg4[%c24, %c0_174], %506 {strides = array<i32>} : memref<64x128xi32, #tpu.memory_space<vmem>>, vector<1x128xi32>,
    %c24_175 = arith.constant 24 : index
    %c0_176 = arith.constant 0 : index
    %508 = vector.load %arg1[%c24_175, %c0_176] : memref<64x128xf32, #tpu.memory_space<vmem>>, vector<1x128xf32>
    %509 = arith.addf %504, %508 : vector<1x128xf32>
    %510 = vector.broadcast %5 : f32 to vector<1x128xf32>
    %511 = arith.addf %359, %510 : vector<1x128xf32>
    %c0_i32_177 = arith.constant 0 : i32
    %512 = vector.broadcast %c0_i32_177 : i32 to vector<1x128xi32>
    %513 = vector.broadcast %6 : f32 to vector<1x128xf32>
    %514 = arith.addf %389, %513 : vector<1x128xf32>
    %515 = arith.cmpf ogt, %514, %511 : vector<1x128xf32>
    %516 = arith.select %515, %514, %511 : vector<1x128xi1>, vector<1x128xf32>
    %c1_i32_178 = arith.constant 1 : i32
    %517 = vector.broadcast %c1_i32_178 : i32 to vector<1x128xi32>
    %518 = arith.select %515, %517, %512 : vector<1x128xi1>, vector<1x128xi32>
    %519 = vector.broadcast %7 : f32 to vector<1x128xf32>
    %520 = arith.addf %419, %519 : vector<1x128xf32>
    %521 = arith.cmpf ogt, %520, %516 : vector<1x128xf32>
    %522 = arith.select %521, %520, %516 : vector<1x128xi1>, vector<1x128xf32>
    %c2_i32_179 = arith.constant 2 : i32
    %523 = vector.broadcast %c2_i32_179 : i32 to vector<1x128xi32>
    %524 = arith.select %521, %523, %518 : vector<1x128xi1>, vector<1x128xi32>
    %525 = vector.broadcast %8 : f32 to vector<1x128xf32>
    %526 = arith.addf %449, %525 : vector<1x128xf32>
    %527 = arith.cmpf ogt, %526, %522 : vector<1x128xf32>
    %528 = arith.select %527, %526, %522 : vector<1x128xi1>, vector<1x128xf32>
    %c3_i32_180 = arith.constant 3 : i32
    %529 = vector.broadcast %c3_i32_180 : i32 to vector<1x128xi32>
    %530 = arith.select %527, %529, %524 : vector<1x128xi1>, vector<1x128xi32>
    %531 = vector.broadcast %9 : f32 to vector<1x128xf32>
    %532 = arith.addf %479, %531 : vector<1x128xf32>
    %533 = arith.cmpf ogt, %532, %528 : vector<1x128xf32>
    %534 = arith.select %533, %532, %528 : vector<1x128xi1>, vector<1x128xf32>
    %c4_i32_181 = arith.constant 4 : i32
    %535 = vector.broadcast %c4_i32_181 : i32 to vector<1x128xi32>
    %536 = arith.select %533, %535, %530 : vector<1x128xi1>, vector<1x128xi32>
    %c25 = arith.constant 25 : index
    %c0_182 = arith.constant 0 : index
    %537 = vector.load %arg4[%c25, %c0_182] : memref<64x128xi32, #tpu.memory_space<vmem>>, vector<1x128xi32>
    tpu.vector_store %arg4[%c25, %c0_182], %536 {strides = array<i32>} : memref<64x128xi32, #tpu.memory_space<vmem>>, vector<1x128xi32>,
    %c25_183 = arith.constant 25 : index
    %c0_184 = arith.constant 0 : index
    %538 = vector.load %arg1[%c25_183, %c0_184] : memref<64x128xf32, #tpu.memory_space<vmem>>, vector<1x128xf32>
    %539 = arith.addf %534, %538 : vector<1x128xf32>
    %540 = vector.broadcast %10 : f32 to vector<1x128xf32>
    %541 = arith.addf %359, %540 : vector<1x128xf32>
    %c0_i32_185 = arith.constant 0 : i32
    %542 = vector.broadcast %c0_i32_185 : i32 to vector<1x128xi32>
    %543 = vector.broadcast %11 : f32 to vector<1x128xf32>
    %544 = arith.addf %389, %543 : vector<1x128xf32>
    %545 = arith.cmpf ogt, %544, %541 : vector<1x128xf32>
    %546 = arith.select %545, %544, %541 : vector<1x128xi1>, vector<1x128xf32>
    %c1_i32_186 = arith.constant 1 : i32
    %547 = vector.broadcast %c1_i32_186 : i32 to vector<1x128xi32>
    %548 = arith.select %545, %547, %542 : vector<1x128xi1>, vector<1x128xi32>
    %549 = vector.broadcast %12 : f32 to vector<1x128xf32>
    %550 = arith.addf %419, %549 : vector<1x128xf32>
    %551 = arith.cmpf ogt, %550, %546 : vector<1x128xf32>
    %552 = arith.select %551, %550, %546 : vector<1x128xi1>, vector<1x128xf32>
    %c2_i32_187 = arith.constant 2 : i32
    %553 = vector.broadcast %c2_i32_187 : i32 to vector<1x128xi32>
    %554 = arith.select %551, %553, %548 : vector<1x128xi1>, vector<1x128xi32>
    %555 = vector.broadcast %13 : f32 to vector<1x128xf32>
    %556 = arith.addf %449, %555 : vector<1x128xf32>
    %557 = arith.cmpf ogt, %556, %552 : vector<1x128xf32>
    %558 = arith.select %557, %556, %552 : vector<1x128xi1>, vector<1x128xf32>
    %c3_i32_188 = arith.constant 3 : i32
    %559 = vector.broadcast %c3_i32_188 : i32 to vector<1x128xi32>
    %560 = arith.select %557, %559, %554 : vector<1x128xi1>, vector<1x128xi32>
    %561 = vector.broadcast %14 : f32 to vector<1x128xf32>
    %562 = arith.addf %479, %561 : vector<1x128xf32>
    %563 = arith.cmpf ogt, %562, %558 : vector<1x128xf32>
    %564 = arith.select %563, %562, %558 : vector<1x128xi1>, vector<1x128xf32>
    %c4_i32_189 = arith.constant 4 : i32
    %565 = vector.broadcast %c4_i32_189 : i32 to vector<1x128xi32>
    %566 = arith.select %563, %565, %560 : vector<1x128xi1>, vector<1x128xi32>
    %c26 = arith.constant 26 : index
    %c0_190 = arith.constant 0 : index
    %567 = vector.load %arg4[%c26, %c0_190] : memref<64x128xi32, #tpu.memory_space<vmem>>, vector<1x128xi32>
    tpu.vector_store %arg4[%c26, %c0_190], %566 {strides = array<i32>} : memref<64x128xi32, #tpu.memory_space<vmem>>, vector<1x128xi32>,
    %c26_191 = arith.constant 26 : index
    %c0_192 = arith.constant 0 : index
    %568 = vector.load %arg1[%c26_191, %c0_192] : memref<64x128xf32, #tpu.memory_space<vmem>>, vector<1x128xf32>
    %569 = arith.addf %564, %568 : vector<1x128xf32>
    %570 = vector.broadcast %15 : f32 to vector<1x128xf32>
    %571 = arith.addf %359, %570 : vector<1x128xf32>
    %c0_i32_193 = arith.constant 0 : i32
    %572 = vector.broadcast %c0_i32_193 : i32 to vector<1x128xi32>
    %573 = vector.broadcast %16 : f32 to vector<1x128xf32>
    %574 = arith.addf %389, %573 : vector<1x128xf32>
    %575 = arith.cmpf ogt, %574, %571 : vector<1x128xf32>
    %576 = arith.select %575, %574, %571 : vector<1x128xi1>, vector<1x128xf32>
    %c1_i32_194 = arith.constant 1 : i32
    %577 = vector.broadcast %c1_i32_194 : i32 to vector<1x128xi32>
    %578 = arith.select %575, %577, %572 : vector<1x128xi1>, vector<1x128xi32>
    %579 = vector.broadcast %17 : f32 to vector<1x128xf32>
    %580 = arith.addf %419, %579 : vector<1x128xf32>
    %581 = arith.cmpf ogt, %580, %576 : vector<1x128xf32>
    %582 = arith.select %581, %580, %576 : vector<1x128xi1>, vector<1x128xf32>
    %c2_i32_195 = arith.constant 2 : i32
    %583 = vector.broadcast %c2_i32_195 : i32 to vector<1x128xi32>
    %584 = arith.select %581, %583, %578 : vector<1x128xi1>, vector<1x128xi32>
    %585 = vector.broadcast %18 : f32 to vector<1x128xf32>
    %586 = arith.addf %449, %585 : vector<1x128xf32>
    %587 = arith.cmpf ogt, %586, %582 : vector<1x128xf32>
    %588 = arith.select %587, %586, %582 : vector<1x128xi1>, vector<1x128xf32>
    %c3_i32_196 = arith.constant 3 : i32
    %589 = vector.broadcast %c3_i32_196 : i32 to vector<1x128xi32>
    %590 = arith.select %587, %589, %584 : vector<1x128xi1>, vector<1x128xi32>
    %591 = vector.broadcast %19 : f32 to vector<1x128xf32>
    %592 = arith.addf %479, %591 : vector<1x128xf32>
    %593 = arith.cmpf ogt, %592, %588 : vector<1x128xf32>
    %594 = arith.select %593, %592, %588 : vector<1x128xi1>, vector<1x128xf32>
    %c4_i32_197 = arith.constant 4 : i32
    %595 = vector.broadcast %c4_i32_197 : i32 to vector<1x128xi32>
    %596 = arith.select %593, %595, %590 : vector<1x128xi1>, vector<1x128xi32>
    %c27 = arith.constant 27 : index
    %c0_198 = arith.constant 0 : index
    %597 = vector.load %arg4[%c27, %c0_198] : memref<64x128xi32, #tpu.memory_space<vmem>>, vector<1x128xi32>
    tpu.vector_store %arg4[%c27, %c0_198], %596 {strides = array<i32>} : memref<64x128xi32, #tpu.memory_space<vmem>>, vector<1x128xi32>,
    %c27_199 = arith.constant 27 : index
    %c0_200 = arith.constant 0 : index
    %598 = vector.load %arg1[%c27_199, %c0_200] : memref<64x128xf32, #tpu.memory_space<vmem>>, vector<1x128xf32>
    %599 = arith.addf %594, %598 : vector<1x128xf32>
    %600 = vector.broadcast %20 : f32 to vector<1x128xf32>
    %601 = arith.addf %359, %600 : vector<1x128xf32>
    %c0_i32_201 = arith.constant 0 : i32
    %602 = vector.broadcast %c0_i32_201 : i32 to vector<1x128xi32>
    %603 = vector.broadcast %21 : f32 to vector<1x128xf32>
    %604 = arith.addf %389, %603 : vector<1x128xf32>
    %605 = arith.cmpf ogt, %604, %601 : vector<1x128xf32>
    %606 = arith.select %605, %604, %601 : vector<1x128xi1>, vector<1x128xf32>
    %c1_i32_202 = arith.constant 1 : i32
    %607 = vector.broadcast %c1_i32_202 : i32 to vector<1x128xi32>
    %608 = arith.select %605, %607, %602 : vector<1x128xi1>, vector<1x128xi32>
    %609 = vector.broadcast %22 : f32 to vector<1x128xf32>
    %610 = arith.addf %419, %609 : vector<1x128xf32>
    %611 = arith.cmpf ogt, %610, %606 : vector<1x128xf32>
    %612 = arith.select %611, %610, %606 : vector<1x128xi1>, vector<1x128xf32>
    %c2_i32_203 = arith.constant 2 : i32
    %613 = vector.broadcast %c2_i32_203 : i32 to vector<1x128xi32>
    %614 = arith.select %611, %613, %608 : vector<1x128xi1>, vector<1x128xi32>
    %615 = vector.broadcast %23 : f32 to vector<1x128xf32>
    %616 = arith.addf %449, %615 : vector<1x128xf32>
    %617 = arith.cmpf ogt, %616, %612 : vector<1x128xf32>
    %618 = arith.select %617, %616, %612 : vector<1x128xi1>, vector<1x128xf32>
    %c3_i32_204 = arith.constant 3 : i32
    %619 = vector.broadcast %c3_i32_204 : i32 to vector<1x128xi32>
    %620 = arith.select %617, %619, %614 : vector<1x128xi1>, vector<1x128xi32>
    %621 = vector.broadcast %24 : f32 to vector<1x128xf32>
    %622 = arith.addf %479, %621 : vector<1x128xf32>
    %623 = arith.cmpf ogt, %622, %618 : vector<1x128xf32>
    %624 = arith.select %623, %622, %618 : vector<1x128xi1>, vector<1x128xf32>
    %c4_i32_205 = arith.constant 4 : i32
    %625 = vector.broadcast %c4_i32_205 : i32 to vector<1x128xi32>
    %626 = arith.select %623, %625, %620 : vector<1x128xi1>, vector<1x128xi32>
    %c28 = arith.constant 28 : index
    %c0_206 = arith.constant 0 : index
    %627 = vector.load %arg4[%c28, %c0_206] : memref<64x128xi32, #tpu.memory_space<vmem>>, vector<1x128xi32>
    tpu.vector_store %arg4[%c28, %c0_206], %626 {strides = array<i32>} : memref<64x128xi32, #tpu.memory_space<vmem>>, vector<1x128xi32>,
    %c28_207 = arith.constant 28 : index
    %c0_208 = arith.constant 0 : index
    %628 = vector.load %arg1[%c28_207, %c0_208] : memref<64x128xf32, #tpu.memory_space<vmem>>, vector<1x128xf32>
    %629 = arith.addf %624, %628 : vector<1x128xf32>
    %630 = vector.broadcast %0 : f32 to vector<1x128xf32>
    %631 = arith.addf %509, %630 : vector<1x128xf32>
    %c0_i32_209 = arith.constant 0 : i32
    %632 = vector.broadcast %c0_i32_209 : i32 to vector<1x128xi32>
    %633 = vector.broadcast %1 : f32 to vector<1x128xf32>
    %634 = arith.addf %539, %633 : vector<1x128xf32>
    %635 = arith.cmpf ogt, %634, %631 : vector<1x128xf32>
    %636 = arith.select %635, %634, %631 : vector<1x128xi1>, vector<1x128xf32>
    %c1_i32_210 = arith.constant 1 : i32
    %637 = vector.broadcast %c1_i32_210 : i32 to vector<1x128xi32>
    %638 = arith.select %635, %637, %632 : vector<1x128xi1>, vector<1x128xi32>
    %639 = vector.broadcast %2 : f32 to vector<1x128xf32>
    %640 = arith.addf %569, %639 : vector<1x128xf32>
    %641 = arith.cmpf ogt, %640, %636 : vector<1x128xf32>
    %642 = arith.select %641, %640, %636 : vector<1x128xi1>, vector<1x128xf32>
    %c2_i32_211 = arith.constant 2 : i32
    %643 = vector.broadcast %c2_i32_211 : i32 to vector<1x128xi32>
    %644 = arith.select %641, %643, %638 : vector<1x128xi1>, vector<1x128xi32>
    %645 = vector.broadcast %3 : f32 to vector<1x128xf32>
    %646 = arith.addf %599, %645 : vector<1x128xf32>
    %647 = arith.cmpf ogt, %646, %642 : vector<1x128xf32>
    %648 = arith.select %647, %646, %642 : vector<1x128xi1>, vector<1x128xf32>
    %c3_i32_212 = arith.constant 3 : i32
    %649 = vector.broadcast %c3_i32_212 : i32 to vector<1x128xi32>
    %650 = arith.select %647, %649, %644 : vector<1x128xi1>, vector<1x128xi32>
    %651 = vector.broadcast %4 : f32 to vector<1x128xf32>
    %652 = arith.addf %629, %651 : vector<1x128xf32>
    %653 = arith.cmpf ogt, %652, %648 : vector<1x128xf32>
    %654 = arith.select %653, %652, %648 : vector<1x128xi1>, vector<1x128xf32>
    %c4_i32_213 = arith.constant 4 : i32
    %655 = vector.broadcast %c4_i32_213 : i32 to vector<1x128xi32>
    %656 = arith.select %653, %655, %650 : vector<1x128xi1>, vector<1x128xi32>
    %c32 = arith.constant 32 : index
    %c0_214 = arith.constant 0 : index
    %657 = vector.load %arg4[%c32, %c0_214] : memref<64x128xi32, #tpu.memory_space<vmem>>, vector<1x128xi32>
    tpu.vector_store %arg4[%c32, %c0_214], %656 {strides = array<i32>} : memref<64x128xi32, #tpu.memory_space<vmem>>, vector<1x128xi32>,
    %c32_215 = arith.constant 32 : index
    %c0_216 = arith.constant 0 : index
    %658 = vector.load %arg1[%c32_215, %c0_216] : memref<64x128xf32, #tpu.memory_space<vmem>>, vector<1x128xf32>
    %659 = arith.addf %654, %658 : vector<1x128xf32>
    %660 = vector.broadcast %5 : f32 to vector<1x128xf32>
    %661 = arith.addf %509, %660 : vector<1x128xf32>
    %c0_i32_217 = arith.constant 0 : i32
    %662 = vector.broadcast %c0_i32_217 : i32 to vector<1x128xi32>
    %663 = vector.broadcast %6 : f32 to vector<1x128xf32>
    %664 = arith.addf %539, %663 : vector<1x128xf32>
    %665 = arith.cmpf ogt, %664, %661 : vector<1x128xf32>
    %666 = arith.select %665, %664, %661 : vector<1x128xi1>, vector<1x128xf32>
    %c1_i32_218 = arith.constant 1 : i32
    %667 = vector.broadcast %c1_i32_218 : i32 to vector<1x128xi32>
    %668 = arith.select %665, %667, %662 : vector<1x128xi1>, vector<1x128xi32>
    %669 = vector.broadcast %7 : f32 to vector<1x128xf32>
    %670 = arith.addf %569, %669 : vector<1x128xf32>
    %671 = arith.cmpf ogt, %670, %666 : vector<1x128xf32>
    %672 = arith.select %671, %670, %666 : vector<1x128xi1>, vector<1x128xf32>
    %c2_i32_219 = arith.constant 2 : i32
    %673 = vector.broadcast %c2_i32_219 : i32 to vector<1x128xi32>
    %674 = arith.select %671, %673, %668 : vector<1x128xi1>, vector<1x128xi32>
    %675 = vector.broadcast %8 : f32 to vector<1x128xf32>
    %676 = arith.addf %599, %675 : vector<1x128xf32>
    %677 = arith.cmpf ogt, %676, %672 : vector<1x128xf32>
    %678 = arith.select %677, %676, %672 : vector<1x128xi1>, vector<1x128xf32>
    %c3_i32_220 = arith.constant 3 : i32
    %679 = vector.broadcast %c3_i32_220 : i32 to vector<1x128xi32>
    %680 = arith.select %677, %679, %674 : vector<1x128xi1>, vector<1x128xi32>
    %681 = vector.broadcast %9 : f32 to vector<1x128xf32>
    %682 = arith.addf %629, %681 : vector<1x128xf32>
    %683 = arith.cmpf ogt, %682, %678 : vector<1x128xf32>
    %684 = arith.select %683, %682, %678 : vector<1x128xi1>, vector<1x128xf32>
    %c4_i32_221 = arith.constant 4 : i32
    %685 = vector.broadcast %c4_i32_221 : i32 to vector<1x128xi32>
    %686 = arith.select %683, %685, %680 : vector<1x128xi1>, vector<1x128xi32>
    %c33 = arith.constant 33 : index
    %c0_222 = arith.constant 0 : index
    %687 = vector.load %arg4[%c33, %c0_222] : memref<64x128xi32, #tpu.memory_space<vmem>>, vector<1x128xi32>
    tpu.vector_store %arg4[%c33, %c0_222], %686 {strides = array<i32>} : memref<64x128xi32, #tpu.memory_space<vmem>>, vector<1x128xi32>,
    %c33_223 = arith.constant 33 : index
    %c0_224 = arith.constant 0 : index
    %688 = vector.load %arg1[%c33_223, %c0_224] : memref<64x128xf32, #tpu.memory_space<vmem>>, vector<1x128xf32>
    %689 = arith.addf %684, %688 : vector<1x128xf32>
    %690 = vector.broadcast %10 : f32 to vector<1x128xf32>
    %691 = arith.addf %509, %690 : vector<1x128xf32>
    %c0_i32_225 = arith.constant 0 : i32
    %692 = vector.broadcast %c0_i32_225 : i32 to vector<1x128xi32>
    %693 = vector.broadcast %11 : f32 to vector<1x128xf32>
    %694 = arith.addf %539, %693 : vector<1x128xf32>
    %695 = arith.cmpf ogt, %694, %691 : vector<1x128xf32>
    %696 = arith.select %695, %694, %691 : vector<1x128xi1>, vector<1x128xf32>
    %c1_i32_226 = arith.constant 1 : i32
    %697 = vector.broadcast %c1_i32_226 : i32 to vector<1x128xi32>
    %698 = arith.select %695, %697, %692 : vector<1x128xi1>, vector<1x128xi32>
    %699 = vector.broadcast %12 : f32 to vector<1x128xf32>
    %700 = arith.addf %569, %699 : vector<1x128xf32>
    %701 = arith.cmpf ogt, %700, %696 : vector<1x128xf32>
    %702 = arith.select %701, %700, %696 : vector<1x128xi1>, vector<1x128xf32>
    %c2_i32_227 = arith.constant 2 : i32
    %703 = vector.broadcast %c2_i32_227 : i32 to vector<1x128xi32>
    %704 = arith.select %701, %703, %698 : vector<1x128xi1>, vector<1x128xi32>
    %705 = vector.broadcast %13 : f32 to vector<1x128xf32>
    %706 = arith.addf %599, %705 : vector<1x128xf32>
    %707 = arith.cmpf ogt, %706, %702 : vector<1x128xf32>
    %708 = arith.select %707, %706, %702 : vector<1x128xi1>, vector<1x128xf32>
    %c3_i32_228 = arith.constant 3 : i32
    %709 = vector.broadcast %c3_i32_228 : i32 to vector<1x128xi32>
    %710 = arith.select %707, %709, %704 : vector<1x128xi1>, vector<1x128xi32>
    %711 = vector.broadcast %14 : f32 to vector<1x128xf32>
    %712 = arith.addf %629, %711 : vector<1x128xf32>
    %713 = arith.cmpf ogt, %712, %708 : vector<1x128xf32>
    %714 = arith.select %713, %712, %708 : vector<1x128xi1>, vector<1x128xf32>
    %c4_i32_229 = arith.constant 4 : i32
    %715 = vector.broadcast %c4_i32_229 : i32 to vector<1x128xi32>
    %716 = arith.select %713, %715, %710 : vector<1x128xi1>, vector<1x128xi32>
    %c34 = arith.constant 34 : index
    %c0_230 = arith.constant 0 : index
    %717 = vector.load %arg4[%c34, %c0_230] : memref<64x128xi32, #tpu.memory_space<vmem>>, vector<1x128xi32>
    tpu.vector_store %arg4[%c34, %c0_230], %716 {strides = array<i32>} : memref<64x128xi32, #tpu.memory_space<vmem>>, vector<1x128xi32>,
    %c34_231 = arith.constant 34 : index
    %c0_232 = arith.constant 0 : index
    %718 = vector.load %arg1[%c34_231, %c0_232] : memref<64x128xf32, #tpu.memory_space<vmem>>, vector<1x128xf32>
    %719 = arith.addf %714, %718 : vector<1x128xf32>
    %720 = vector.broadcast %15 : f32 to vector<1x128xf32>
    %721 = arith.addf %509, %720 : vector<1x128xf32>
    %c0_i32_233 = arith.constant 0 : i32
    %722 = vector.broadcast %c0_i32_233 : i32 to vector<1x128xi32>
    %723 = vector.broadcast %16 : f32 to vector<1x128xf32>
    %724 = arith.addf %539, %723 : vector<1x128xf32>
    %725 = arith.cmpf ogt, %724, %721 : vector<1x128xf32>
    %726 = arith.select %725, %724, %721 : vector<1x128xi1>, vector<1x128xf32>
    %c1_i32_234 = arith.constant 1 : i32
    %727 = vector.broadcast %c1_i32_234 : i32 to vector<1x128xi32>
    %728 = arith.select %725, %727, %722 : vector<1x128xi1>, vector<1x128xi32>
    %729 = vector.broadcast %17 : f32 to vector<1x128xf32>
    %730 = arith.addf %569, %729 : vector<1x128xf32>
    %731 = arith.cmpf ogt, %730, %726 : vector<1x128xf32>
    %732 = arith.select %731, %730, %726 : vector<1x128xi1>, vector<1x128xf32>
    %c2_i32_235 = arith.constant 2 : i32
    %733 = vector.broadcast %c2_i32_235 : i32 to vector<1x128xi32>
    %734 = arith.select %731, %733, %728 : vector<1x128xi1>, vector<1x128xi32>
    %735 = vector.broadcast %18 : f32 to vector<1x128xf32>
    %736 = arith.addf %599, %735 : vector<1x128xf32>
    %737 = arith.cmpf ogt, %736, %732 : vector<1x128xf32>
    %738 = arith.select %737, %736, %732 : vector<1x128xi1>, vector<1x128xf32>
    %c3_i32_236 = arith.constant 3 : i32
    %739 = vector.broadcast %c3_i32_236 : i32 to vector<1x128xi32>
    %740 = arith.select %737, %739, %734 : vector<1x128xi1>, vector<1x128xi32>
    %741 = vector.broadcast %19 : f32 to vector<1x128xf32>
    %742 = arith.addf %629, %741 : vector<1x128xf32>
    %743 = arith.cmpf ogt, %742, %738 : vector<1x128xf32>
    %744 = arith.select %743, %742, %738 : vector<1x128xi1>, vector<1x128xf32>
    %c4_i32_237 = arith.constant 4 : i32
    %745 = vector.broadcast %c4_i32_237 : i32 to vector<1x128xi32>
    %746 = arith.select %743, %745, %740 : vector<1x128xi1>, vector<1x128xi32>
    %c35 = arith.constant 35 : index
    %c0_238 = arith.constant 0 : index
    %747 = vector.load %arg4[%c35, %c0_238] : memref<64x128xi32, #tpu.memory_space<vmem>>, vector<1x128xi32>
    tpu.vector_store %arg4[%c35, %c0_238], %746 {strides = array<i32>} : memref<64x128xi32, #tpu.memory_space<vmem>>, vector<1x128xi32>,
    %c35_239 = arith.constant 35 : index
    %c0_240 = arith.constant 0 : index
    %748 = vector.load %arg1[%c35_239, %c0_240] : memref<64x128xf32, #tpu.memory_space<vmem>>, vector<1x128xf32>
    %749 = arith.addf %744, %748 : vector<1x128xf32>
    %750 = vector.broadcast %20 : f32 to vector<1x128xf32>
    %751 = arith.addf %509, %750 : vector<1x128xf32>
    %c0_i32_241 = arith.constant 0 : i32
    %752 = vector.broadcast %c0_i32_241 : i32 to vector<1x128xi32>
    %753 = vector.broadcast %21 : f32 to vector<1x128xf32>
    %754 = arith.addf %539, %753 : vector<1x128xf32>
    %755 = arith.cmpf ogt, %754, %751 : vector<1x128xf32>
    %756 = arith.select %755, %754, %751 : vector<1x128xi1>, vector<1x128xf32>
    %c1_i32_242 = arith.constant 1 : i32
    %757 = vector.broadcast %c1_i32_242 : i32 to vector<1x128xi32>
    %758 = arith.select %755, %757, %752 : vector<1x128xi1>, vector<1x128xi32>
    %759 = vector.broadcast %22 : f32 to vector<1x128xf32>
    %760 = arith.addf %569, %759 : vector<1x128xf32>
    %761 = arith.cmpf ogt, %760, %756 : vector<1x128xf32>
    %762 = arith.select %761, %760, %756 : vector<1x128xi1>, vector<1x128xf32>
    %c2_i32_243 = arith.constant 2 : i32
    %763 = vector.broadcast %c2_i32_243 : i32 to vector<1x128xi32>
    %764 = arith.select %761, %763, %758 : vector<1x128xi1>, vector<1x128xi32>
    %765 = vector.broadcast %23 : f32 to vector<1x128xf32>
    %766 = arith.addf %599, %765 : vector<1x128xf32>
    %767 = arith.cmpf ogt, %766, %762 : vector<1x128xf32>
    %768 = arith.select %767, %766, %762 : vector<1x128xi1>, vector<1x128xf32>
    %c3_i32_244 = arith.constant 3 : i32
    %769 = vector.broadcast %c3_i32_244 : i32 to vector<1x128xi32>
    %770 = arith.select %767, %769, %764 : vector<1x128xi1>, vector<1x128xi32>
    %771 = vector.broadcast %24 : f32 to vector<1x128xf32>
    %772 = arith.addf %629, %771 : vector<1x128xf32>
    %773 = arith.cmpf ogt, %772, %768 : vector<1x128xf32>
    %774 = arith.select %773, %772, %768 : vector<1x128xi1>, vector<1x128xf32>
    %c4_i32_245 = arith.constant 4 : i32
    %775 = vector.broadcast %c4_i32_245 : i32 to vector<1x128xi32>
    %776 = arith.select %773, %775, %770 : vector<1x128xi1>, vector<1x128xi32>
    %c36 = arith.constant 36 : index
    %c0_246 = arith.constant 0 : index
    %777 = vector.load %arg4[%c36, %c0_246] : memref<64x128xi32, #tpu.memory_space<vmem>>, vector<1x128xi32>
    tpu.vector_store %arg4[%c36, %c0_246], %776 {strides = array<i32>} : memref<64x128xi32, #tpu.memory_space<vmem>>, vector<1x128xi32>,
    %c36_247 = arith.constant 36 : index
    %c0_248 = arith.constant 0 : index
    %778 = vector.load %arg1[%c36_247, %c0_248] : memref<64x128xf32, #tpu.memory_space<vmem>>, vector<1x128xf32>
    %779 = arith.addf %774, %778 : vector<1x128xf32>
    %780 = vector.broadcast %0 : f32 to vector<1x128xf32>
    %781 = arith.addf %659, %780 : vector<1x128xf32>
    %c0_i32_249 = arith.constant 0 : i32
    %782 = vector.broadcast %c0_i32_249 : i32 to vector<1x128xi32>
    %783 = vector.broadcast %1 : f32 to vector<1x128xf32>
    %784 = arith.addf %689, %783 : vector<1x128xf32>
    %785 = arith.cmpf ogt, %784, %781 : vector<1x128xf32>
    %786 = arith.select %785, %784, %781 : vector<1x128xi1>, vector<1x128xf32>
    %c1_i32_250 = arith.constant 1 : i32
    %787 = vector.broadcast %c1_i32_250 : i32 to vector<1x128xi32>
    %788 = arith.select %785, %787, %782 : vector<1x128xi1>, vector<1x128xi32>
    %789 = vector.broadcast %2 : f32 to vector<1x128xf32>
    %790 = arith.addf %719, %789 : vector<1x128xf32>
    %791 = arith.cmpf ogt, %790, %786 : vector<1x128xf32>
    %792 = arith.select %791, %790, %786 : vector<1x128xi1>, vector<1x128xf32>
    %c2_i32_251 = arith.constant 2 : i32
    %793 = vector.broadcast %c2_i32_251 : i32 to vector<1x128xi32>
    %794 = arith.select %791, %793, %788 : vector<1x128xi1>, vector<1x128xi32>
    %795 = vector.broadcast %3 : f32 to vector<1x128xf32>
    %796 = arith.addf %749, %795 : vector<1x128xf32>
    %797 = arith.cmpf ogt, %796, %792 : vector<1x128xf32>
    %798 = arith.select %797, %796, %792 : vector<1x128xi1>, vector<1x128xf32>
    %c3_i32_252 = arith.constant 3 : i32
    %799 = vector.broadcast %c3_i32_252 : i32 to vector<1x128xi32>
    %800 = arith.select %797, %799, %794 : vector<1x128xi1>, vector<1x128xi32>
    %801 = vector.broadcast %4 : f32 to vector<1x128xf32>
    %802 = arith.addf %779, %801 : vector<1x128xf32>
    %803 = arith.cmpf ogt, %802, %798 : vector<1x128xf32>
    %804 = arith.select %803, %802, %798 : vector<1x128xi1>, vector<1x128xf32>
    %c4_i32_253 = arith.constant 4 : i32
    %805 = vector.broadcast %c4_i32_253 : i32 to vector<1x128xi32>
    %806 = arith.select %803, %805, %800 : vector<1x128xi1>, vector<1x128xi32>
    %c40 = arith.constant 40 : index
    %c0_254 = arith.constant 0 : index
    %807 = vector.load %arg4[%c40, %c0_254] : memref<64x128xi32, #tpu.memory_space<vmem>>, vector<1x128xi32>
    tpu.vector_store %arg4[%c40, %c0_254], %806 {strides = array<i32>} : memref<64x128xi32, #tpu.memory_space<vmem>>, vector<1x128xi32>,
    %c40_255 = arith.constant 40 : index
    %c0_256 = arith.constant 0 : index
    %808 = vector.load %arg1[%c40_255, %c0_256] : memref<64x128xf32, #tpu.memory_space<vmem>>, vector<1x128xf32>
    %809 = arith.addf %804, %808 : vector<1x128xf32>
    %810 = vector.broadcast %5 : f32 to vector<1x128xf32>
    %811 = arith.addf %659, %810 : vector<1x128xf32>
    %c0_i32_257 = arith.constant 0 : i32
    %812 = vector.broadcast %c0_i32_257 : i32 to vector<1x128xi32>
    %813 = vector.broadcast %6 : f32 to vector<1x128xf32>
    %814 = arith.addf %689, %813 : vector<1x128xf32>
    %815 = arith.cmpf ogt, %814, %811 : vector<1x128xf32>
    %816 = arith.select %815, %814, %811 : vector<1x128xi1>, vector<1x128xf32>
    %c1_i32_258 = arith.constant 1 : i32
    %817 = vector.broadcast %c1_i32_258 : i32 to vector<1x128xi32>
    %818 = arith.select %815, %817, %812 : vector<1x128xi1>, vector<1x128xi32>
    %819 = vector.broadcast %7 : f32 to vector<1x128xf32>
    %820 = arith.addf %719, %819 : vector<1x128xf32>
    %821 = arith.cmpf ogt, %820, %816 : vector<1x128xf32>
    %822 = arith.select %821, %820, %816 : vector<1x128xi1>, vector<1x128xf32>
    %c2_i32_259 = arith.constant 2 : i32
    %823 = vector.broadcast %c2_i32_259 : i32 to vector<1x128xi32>
    %824 = arith.select %821, %823, %818 : vector<1x128xi1>, vector<1x128xi32>
    %825 = vector.broadcast %8 : f32 to vector<1x128xf32>
    %826 = arith.addf %749, %825 : vector<1x128xf32>
    %827 = arith.cmpf ogt, %826, %822 : vector<1x128xf32>
    %828 = arith.select %827, %826, %822 : vector<1x128xi1>, vector<1x128xf32>
    %c3_i32_260 = arith.constant 3 : i32
    %829 = vector.broadcast %c3_i32_260 : i32 to vector<1x128xi32>
    %830 = arith.select %827, %829, %824 : vector<1x128xi1>, vector<1x128xi32>
    %831 = vector.broadcast %9 : f32 to vector<1x128xf32>
    %832 = arith.addf %779, %831 : vector<1x128xf32>
    %833 = arith.cmpf ogt, %832, %828 : vector<1x128xf32>
    %834 = arith.select %833, %832, %828 : vector<1x128xi1>, vector<1x128xf32>
    %c4_i32_261 = arith.constant 4 : i32
    %835 = vector.broadcast %c4_i32_261 : i32 to vector<1x128xi32>
    %836 = arith.select %833, %835, %830 : vector<1x128xi1>, vector<1x128xi32>
    %c41 = arith.constant 41 : index
    %c0_262 = arith.constant 0 : index
    %837 = vector.load %arg4[%c41, %c0_262] : memref<64x128xi32, #tpu.memory_space<vmem>>, vector<1x128xi32>
    tpu.vector_store %arg4[%c41, %c0_262], %836 {strides = array<i32>} : memref<64x128xi32, #tpu.memory_space<vmem>>, vector<1x128xi32>,
    %c41_263 = arith.constant 41 : index
    %c0_264 = arith.constant 0 : index
    %838 = vector.load %arg1[%c41_263, %c0_264] : memref<64x128xf32, #tpu.memory_space<vmem>>, vector<1x128xf32>
    %839 = arith.addf %834, %838 : vector<1x128xf32>
    %840 = vector.broadcast %10 : f32 to vector<1x128xf32>
    %841 = arith.addf %659, %840 : vector<1x128xf32>
    %c0_i32_265 = arith.constant 0 : i32
    %842 = vector.broadcast %c0_i32_265 : i32 to vector<1x128xi32>
    %843 = vector.broadcast %11 : f32 to vector<1x128xf32>
    %844 = arith.addf %689, %843 : vector<1x128xf32>
    %845 = arith.cmpf ogt, %844, %841 : vector<1x128xf32>
    %846 = arith.select %845, %844, %841 : vector<1x128xi1>, vector<1x128xf32>
    %c1_i32_266 = arith.constant 1 : i32
    %847 = vector.broadcast %c1_i32_266 : i32 to vector<1x128xi32>
    %848 = arith.select %845, %847, %842 : vector<1x128xi1>, vector<1x128xi32>
    %849 = vector.broadcast %12 : f32 to vector<1x128xf32>
    %850 = arith.addf %719, %849 : vector<1x128xf32>
    %851 = arith.cmpf ogt, %850, %846 : vector<1x128xf32>
    %852 = arith.select %851, %850, %846 : vector<1x128xi1>, vector<1x128xf32>
    %c2_i32_267 = arith.constant 2 : i32
    %853 = vector.broadcast %c2_i32_267 : i32 to vector<1x128xi32>
    %854 = arith.select %851, %853, %848 : vector<1x128xi1>, vector<1x128xi32>
    %855 = vector.broadcast %13 : f32 to vector<1x128xf32>
    %856 = arith.addf %749, %855 : vector<1x128xf32>
    %857 = arith.cmpf ogt, %856, %852 : vector<1x128xf32>
    %858 = arith.select %857, %856, %852 : vector<1x128xi1>, vector<1x128xf32>
    %c3_i32_268 = arith.constant 3 : i32
    %859 = vector.broadcast %c3_i32_268 : i32 to vector<1x128xi32>
    %860 = arith.select %857, %859, %854 : vector<1x128xi1>, vector<1x128xi32>
    %861 = vector.broadcast %14 : f32 to vector<1x128xf32>
    %862 = arith.addf %779, %861 : vector<1x128xf32>
    %863 = arith.cmpf ogt, %862, %858 : vector<1x128xf32>
    %864 = arith.select %863, %862, %858 : vector<1x128xi1>, vector<1x128xf32>
    %c4_i32_269 = arith.constant 4 : i32
    %865 = vector.broadcast %c4_i32_269 : i32 to vector<1x128xi32>
    %866 = arith.select %863, %865, %860 : vector<1x128xi1>, vector<1x128xi32>
    %c42 = arith.constant 42 : index
    %c0_270 = arith.constant 0 : index
    %867 = vector.load %arg4[%c42, %c0_270] : memref<64x128xi32, #tpu.memory_space<vmem>>, vector<1x128xi32>
    tpu.vector_store %arg4[%c42, %c0_270], %866 {strides = array<i32>} : memref<64x128xi32, #tpu.memory_space<vmem>>, vector<1x128xi32>,
    %c42_271 = arith.constant 42 : index
    %c0_272 = arith.constant 0 : index
    %868 = vector.load %arg1[%c42_271, %c0_272] : memref<64x128xf32, #tpu.memory_space<vmem>>, vector<1x128xf32>
    %869 = arith.addf %864, %868 : vector<1x128xf32>
    %870 = vector.broadcast %15 : f32 to vector<1x128xf32>
    %871 = arith.addf %659, %870 : vector<1x128xf32>
    %c0_i32_273 = arith.constant 0 : i32
    %872 = vector.broadcast %c0_i32_273 : i32 to vector<1x128xi32>
    %873 = vector.broadcast %16 : f32 to vector<1x128xf32>
    %874 = arith.addf %689, %873 : vector<1x128xf32>
    %875 = arith.cmpf ogt, %874, %871 : vector<1x128xf32>
    %876 = arith.select %875, %874, %871 : vector<1x128xi1>, vector<1x128xf32>
    %c1_i32_274 = arith.constant 1 : i32
    %877 = vector.broadcast %c1_i32_274 : i32 to vector<1x128xi32>
    %878 = arith.select %875, %877, %872 : vector<1x128xi1>, vector<1x128xi32>
    %879 = vector.broadcast %17 : f32 to vector<1x128xf32>
    %880 = arith.addf %719, %879 : vector<1x128xf32>
    %881 = arith.cmpf ogt, %880, %876 : vector<1x128xf32>
    %882 = arith.select %881, %880, %876 : vector<1x128xi1>, vector<1x128xf32>
    %c2_i32_275 = arith.constant 2 : i32
    %883 = vector.broadcast %c2_i32_275 : i32 to vector<1x128xi32>
    %884 = arith.select %881, %883, %878 : vector<1x128xi1>, vector<1x128xi32>
    %885 = vector.broadcast %18 : f32 to vector<1x128xf32>
    %886 = arith.addf %749, %885 : vector<1x128xf32>
    %887 = arith.cmpf ogt, %886, %882 : vector<1x128xf32>
    %888 = arith.select %887, %886, %882 : vector<1x128xi1>, vector<1x128xf32>
    %c3_i32_276 = arith.constant 3 : i32
    %889 = vector.broadcast %c3_i32_276 : i32 to vector<1x128xi32>
    %890 = arith.select %887, %889, %884 : vector<1x128xi1>, vector<1x128xi32>
    %891 = vector.broadcast %19 : f32 to vector<1x128xf32>
    %892 = arith.addf %779, %891 : vector<1x128xf32>
    %893 = arith.cmpf ogt, %892, %888 : vector<1x128xf32>
    %894 = arith.select %893, %892, %888 : vector<1x128xi1>, vector<1x128xf32>
    %c4_i32_277 = arith.constant 4 : i32
    %895 = vector.broadcast %c4_i32_277 : i32 to vector<1x128xi32>
    %896 = arith.select %893, %895, %890 : vector<1x128xi1>, vector<1x128xi32>
    %c43 = arith.constant 43 : index
    %c0_278 = arith.constant 0 : index
    %897 = vector.load %arg4[%c43, %c0_278] : memref<64x128xi32, #tpu.memory_space<vmem>>, vector<1x128xi32>
    tpu.vector_store %arg4[%c43, %c0_278], %896 {strides = array<i32>} : memref<64x128xi32, #tpu.memory_space<vmem>>, vector<1x128xi32>,
    %c43_279 = arith.constant 43 : index
    %c0_280 = arith.constant 0 : index
    %898 = vector.load %arg1[%c43_279, %c0_280] : memref<64x128xf32, #tpu.memory_space<vmem>>, vector<1x128xf32>
    %899 = arith.addf %894, %898 : vector<1x128xf32>
    %900 = vector.broadcast %20 : f32 to vector<1x128xf32>
    %901 = arith.addf %659, %900 : vector<1x128xf32>
    %c0_i32_281 = arith.constant 0 : i32
    %902 = vector.broadcast %c0_i32_281 : i32 to vector<1x128xi32>
    %903 = vector.broadcast %21 : f32 to vector<1x128xf32>
    %904 = arith.addf %689, %903 : vector<1x128xf32>
    %905 = arith.cmpf ogt, %904, %901 : vector<1x128xf32>
    %906 = arith.select %905, %904, %901 : vector<1x128xi1>, vector<1x128xf32>
    %c1_i32_282 = arith.constant 1 : i32
    %907 = vector.broadcast %c1_i32_282 : i32 to vector<1x128xi32>
    %908 = arith.select %905, %907, %902 : vector<1x128xi1>, vector<1x128xi32>
    %909 = vector.broadcast %22 : f32 to vector<1x128xf32>
    %910 = arith.addf %719, %909 : vector<1x128xf32>
    %911 = arith.cmpf ogt, %910, %906 : vector<1x128xf32>
    %912 = arith.select %911, %910, %906 : vector<1x128xi1>, vector<1x128xf32>
    %c2_i32_283 = arith.constant 2 : i32
    %913 = vector.broadcast %c2_i32_283 : i32 to vector<1x128xi32>
    %914 = arith.select %911, %913, %908 : vector<1x128xi1>, vector<1x128xi32>
    %915 = vector.broadcast %23 : f32 to vector<1x128xf32>
    %916 = arith.addf %749, %915 : vector<1x128xf32>
    %917 = arith.cmpf ogt, %916, %912 : vector<1x128xf32>
    %918 = arith.select %917, %916, %912 : vector<1x128xi1>, vector<1x128xf32>
    %c3_i32_284 = arith.constant 3 : i32
    %919 = vector.broadcast %c3_i32_284 : i32 to vector<1x128xi32>
    %920 = arith.select %917, %919, %914 : vector<1x128xi1>, vector<1x128xi32>
    %921 = vector.broadcast %24 : f32 to vector<1x128xf32>
    %922 = arith.addf %779, %921 : vector<1x128xf32>
    %923 = arith.cmpf ogt, %922, %918 : vector<1x128xf32>
    %924 = arith.select %923, %922, %918 : vector<1x128xi1>, vector<1x128xf32>
    %c4_i32_285 = arith.constant 4 : i32
    %925 = vector.broadcast %c4_i32_285 : i32 to vector<1x128xi32>
    %926 = arith.select %923, %925, %920 : vector<1x128xi1>, vector<1x128xi32>
    %c44 = arith.constant 44 : index
    %c0_286 = arith.constant 0 : index
    %927 = vector.load %arg4[%c44, %c0_286] : memref<64x128xi32, #tpu.memory_space<vmem>>, vector<1x128xi32>
    tpu.vector_store %arg4[%c44, %c0_286], %926 {strides = array<i32>} : memref<64x128xi32, #tpu.memory_space<vmem>>, vector<1x128xi32>,
    %c44_287 = arith.constant 44 : index
    %c0_288 = arith.constant 0 : index
    %928 = vector.load %arg1[%c44_287, %c0_288] : memref<64x128xf32, #tpu.memory_space<vmem>>, vector<1x128xf32>
    %929 = arith.addf %924, %928 : vector<1x128xf32>
    %930 = vector.broadcast %0 : f32 to vector<1x128xf32>
    %931 = arith.addf %809, %930 : vector<1x128xf32>
    %c0_i32_289 = arith.constant 0 : i32
    %932 = vector.broadcast %c0_i32_289 : i32 to vector<1x128xi32>
    %933 = vector.broadcast %1 : f32 to vector<1x128xf32>
    %934 = arith.addf %839, %933 : vector<1x128xf32>
    %935 = arith.cmpf ogt, %934, %931 : vector<1x128xf32>
    %936 = arith.select %935, %934, %931 : vector<1x128xi1>, vector<1x128xf32>
    %c1_i32_290 = arith.constant 1 : i32
    %937 = vector.broadcast %c1_i32_290 : i32 to vector<1x128xi32>
    %938 = arith.select %935, %937, %932 : vector<1x128xi1>, vector<1x128xi32>
    %939 = vector.broadcast %2 : f32 to vector<1x128xf32>
    %940 = arith.addf %869, %939 : vector<1x128xf32>
    %941 = arith.cmpf ogt, %940, %936 : vector<1x128xf32>
    %942 = arith.select %941, %940, %936 : vector<1x128xi1>, vector<1x128xf32>
    %c2_i32_291 = arith.constant 2 : i32
    %943 = vector.broadcast %c2_i32_291 : i32 to vector<1x128xi32>
    %944 = arith.select %941, %943, %938 : vector<1x128xi1>, vector<1x128xi32>
    %945 = vector.broadcast %3 : f32 to vector<1x128xf32>
    %946 = arith.addf %899, %945 : vector<1x128xf32>
    %947 = arith.cmpf ogt, %946, %942 : vector<1x128xf32>
    %948 = arith.select %947, %946, %942 : vector<1x128xi1>, vector<1x128xf32>
    %c3_i32_292 = arith.constant 3 : i32
    %949 = vector.broadcast %c3_i32_292 : i32 to vector<1x128xi32>
    %950 = arith.select %947, %949, %944 : vector<1x128xi1>, vector<1x128xi32>
    %951 = vector.broadcast %4 : f32 to vector<1x128xf32>
    %952 = arith.addf %929, %951 : vector<1x128xf32>
    %953 = arith.cmpf ogt, %952, %948 : vector<1x128xf32>
    %954 = arith.select %953, %952, %948 : vector<1x128xi1>, vector<1x128xf32>
    %c4_i32_293 = arith.constant 4 : i32
    %955 = vector.broadcast %c4_i32_293 : i32 to vector<1x128xi32>
    %956 = arith.select %953, %955, %950 : vector<1x128xi1>, vector<1x128xi32>
    %c48 = arith.constant 48 : index
    %c0_294 = arith.constant 0 : index
    %957 = vector.load %arg4[%c48, %c0_294] : memref<64x128xi32, #tpu.memory_space<vmem>>, vector<1x128xi32>
    tpu.vector_store %arg4[%c48, %c0_294], %956 {strides = array<i32>} : memref<64x128xi32, #tpu.memory_space<vmem>>, vector<1x128xi32>,
    %c48_295 = arith.constant 48 : index
    %c0_296 = arith.constant 0 : index
    %958 = vector.load %arg1[%c48_295, %c0_296] : memref<64x128xf32, #tpu.memory_space<vmem>>, vector<1x128xf32>
    %959 = arith.addf %954, %958 : vector<1x128xf32>
    %960 = vector.broadcast %5 : f32 to vector<1x128xf32>
    %961 = arith.addf %809, %960 : vector<1x128xf32>
    %c0_i32_297 = arith.constant 0 : i32
    %962 = vector.broadcast %c0_i32_297 : i32 to vector<1x128xi32>
    %963 = vector.broadcast %6 : f32 to vector<1x128xf32>
    %964 = arith.addf %839, %963 : vector<1x128xf32>
    %965 = arith.cmpf ogt, %964, %961 : vector<1x128xf32>
    %966 = arith.select %965, %964, %961 : vector<1x128xi1>, vector<1x128xf32>
    %c1_i32_298 = arith.constant 1 : i32
    %967 = vector.broadcast %c1_i32_298 : i32 to vector<1x128xi32>
    %968 = arith.select %965, %967, %962 : vector<1x128xi1>, vector<1x128xi32>
    %969 = vector.broadcast %7 : f32 to vector<1x128xf32>
    %970 = arith.addf %869, %969 : vector<1x128xf32>
    %971 = arith.cmpf ogt, %970, %966 : vector<1x128xf32>
    %972 = arith.select %971, %970, %966 : vector<1x128xi1>, vector<1x128xf32>
    %c2_i32_299 = arith.constant 2 : i32
    %973 = vector.broadcast %c2_i32_299 : i32 to vector<1x128xi32>
    %974 = arith.select %971, %973, %968 : vector<1x128xi1>, vector<1x128xi32>
    %975 = vector.broadcast %8 : f32 to vector<1x128xf32>
    %976 = arith.addf %899, %975 : vector<1x128xf32>
    %977 = arith.cmpf ogt, %976, %972 : vector<1x128xf32>
    %978 = arith.select %977, %976, %972 : vector<1x128xi1>, vector<1x128xf32>
    %c3_i32_300 = arith.constant 3 : i32
    %979 = vector.broadcast %c3_i32_300 : i32 to vector<1x128xi32>
    %980 = arith.select %977, %979, %974 : vector<1x128xi1>, vector<1x128xi32>
    %981 = vector.broadcast %9 : f32 to vector<1x128xf32>
    %982 = arith.addf %929, %981 : vector<1x128xf32>
    %983 = arith.cmpf ogt, %982, %978 : vector<1x128xf32>
    %984 = arith.select %983, %982, %978 : vector<1x128xi1>, vector<1x128xf32>
    %c4_i32_301 = arith.constant 4 : i32
    %985 = vector.broadcast %c4_i32_301 : i32 to vector<1x128xi32>
    %986 = arith.select %983, %985, %980 : vector<1x128xi1>, vector<1x128xi32>
    %c49 = arith.constant 49 : index
    %c0_302 = arith.constant 0 : index
    %987 = vector.load %arg4[%c49, %c0_302] : memref<64x128xi32, #tpu.memory_space<vmem>>, vector<1x128xi32>
    tpu.vector_store %arg4[%c49, %c0_302], %986 {strides = array<i32>} : memref<64x128xi32, #tpu.memory_space<vmem>>, vector<1x128xi32>,
    %c49_303 = arith.constant 49 : index
    %c0_304 = arith.constant 0 : index
    %988 = vector.load %arg1[%c49_303, %c0_304] : memref<64x128xf32, #tpu.memory_space<vmem>>, vector<1x128xf32>
    %989 = arith.addf %984, %988 : vector<1x128xf32>
    %990 = vector.broadcast %10 : f32 to vector<1x128xf32>
    %991 = arith.addf %809, %990 : vector<1x128xf32>
    %c0_i32_305 = arith.constant 0 : i32
    %992 = vector.broadcast %c0_i32_305 : i32 to vector<1x128xi32>
    %993 = vector.broadcast %11 : f32 to vector<1x128xf32>
    %994 = arith.addf %839, %993 : vector<1x128xf32>
    %995 = arith.cmpf ogt, %994, %991 : vector<1x128xf32>
    %996 = arith.select %995, %994, %991 : vector<1x128xi1>, vector<1x128xf32>
    %c1_i32_306 = arith.constant 1 : i32
    %997 = vector.broadcast %c1_i32_306 : i32 to vector<1x128xi32>
    %998 = arith.select %995, %997, %992 : vector<1x128xi1>, vector<1x128xi32>
    %999 = vector.broadcast %12 : f32 to vector<1x128xf32>
    %1000 = arith.addf %869, %999 : vector<1x128xf32>
    %1001 = arith.cmpf ogt, %1000, %996 : vector<1x128xf32>
    %1002 = arith.select %1001, %1000, %996 : vector<1x128xi1>, vector<1x128xf32>
    %c2_i32_307 = arith.constant 2 : i32
    %1003 = vector.broadcast %c2_i32_307 : i32 to vector<1x128xi32>
    %1004 = arith.select %1001, %1003, %998 : vector<1x128xi1>, vector<1x128xi32>
    %1005 = vector.broadcast %13 : f32 to vector<1x128xf32>
    %1006 = arith.addf %899, %1005 : vector<1x128xf32>
    %1007 = arith.cmpf ogt, %1006, %1002 : vector<1x128xf32>
    %1008 = arith.select %1007, %1006, %1002 : vector<1x128xi1>, vector<1x128xf32>
    %c3_i32_308 = arith.constant 3 : i32
    %1009 = vector.broadcast %c3_i32_308 : i32 to vector<1x128xi32>
    %1010 = arith.select %1007, %1009, %1004 : vector<1x128xi1>, vector<1x128xi32>
    %1011 = vector.broadcast %14 : f32 to vector<1x128xf32>
    %1012 = arith.addf %929, %1011 : vector<1x128xf32>
    %1013 = arith.cmpf ogt, %1012, %1008 : vector<1x128xf32>
    %1014 = arith.select %1013, %1012, %1008 : vector<1x128xi1>, vector<1x128xf32>
    %c4_i32_309 = arith.constant 4 : i32
    %1015 = vector.broadcast %c4_i32_309 : i32 to vector<1x128xi32>
    %1016 = arith.select %1013, %1015, %1010 : vector<1x128xi1>, vector<1x128xi32>
    %c50 = arith.constant 50 : index
    %c0_310 = arith.constant 0 : index
    %1017 = vector.load %arg4[%c50, %c0_310] : memref<64x128xi32, #tpu.memory_space<vmem>>, vector<1x128xi32>
    tpu.vector_store %arg4[%c50, %c0_310], %1016 {strides = array<i32>} : memref<64x128xi32, #tpu.memory_space<vmem>>, vector<1x128xi32>,
    %c50_311 = arith.constant 50 : index
    %c0_312 = arith.constant 0 : index
    %1018 = vector.load %arg1[%c50_311, %c0_312] : memref<64x128xf32, #tpu.memory_space<vmem>>, vector<1x128xf32>
    %1019 = arith.addf %1014, %1018 : vector<1x128xf32>
    %1020 = vector.broadcast %15 : f32 to vector<1x128xf32>
    %1021 = arith.addf %809, %1020 : vector<1x128xf32>
    %c0_i32_313 = arith.constant 0 : i32
    %1022 = vector.broadcast %c0_i32_313 : i32 to vector<1x128xi32>
    %1023 = vector.broadcast %16 : f32 to vector<1x128xf32>
    %1024 = arith.addf %839, %1023 : vector<1x128xf32>
    %1025 = arith.cmpf ogt, %1024, %1021 : vector<1x128xf32>
    %1026 = arith.select %1025, %1024, %1021 : vector<1x128xi1>, vector<1x128xf32>
    %c1_i32_314 = arith.constant 1 : i32
    %1027 = vector.broadcast %c1_i32_314 : i32 to vector<1x128xi32>
    %1028 = arith.select %1025, %1027, %1022 : vector<1x128xi1>, vector<1x128xi32>
    %1029 = vector.broadcast %17 : f32 to vector<1x128xf32>
    %1030 = arith.addf %869, %1029 : vector<1x128xf32>
    %1031 = arith.cmpf ogt, %1030, %1026 : vector<1x128xf32>
    %1032 = arith.select %1031, %1030, %1026 : vector<1x128xi1>, vector<1x128xf32>
    %c2_i32_315 = arith.constant 2 : i32
    %1033 = vector.broadcast %c2_i32_315 : i32 to vector<1x128xi32>
    %1034 = arith.select %1031, %1033, %1028 : vector<1x128xi1>, vector<1x128xi32>
    %1035 = vector.broadcast %18 : f32 to vector<1x128xf32>
    %1036 = arith.addf %899, %1035 : vector<1x128xf32>
    %1037 = arith.cmpf ogt, %1036, %1032 : vector<1x128xf32>
    %1038 = arith.select %1037, %1036, %1032 : vector<1x128xi1>, vector<1x128xf32>
    %c3_i32_316 = arith.constant 3 : i32
    %1039 = vector.broadcast %c3_i32_316 : i32 to vector<1x128xi32>
    %1040 = arith.select %1037, %1039, %1034 : vector<1x128xi1>, vector<1x128xi32>
    %1041 = vector.broadcast %19 : f32 to vector<1x128xf32>
    %1042 = arith.addf %929, %1041 : vector<1x128xf32>
    %1043 = arith.cmpf ogt, %1042, %1038 : vector<1x128xf32>
    %1044 = arith.select %1043, %1042, %1038 : vector<1x128xi1>, vector<1x128xf32>
    %c4_i32_317 = arith.constant 4 : i32
    %1045 = vector.broadcast %c4_i32_317 : i32 to vector<1x128xi32>
    %1046 = arith.select %1043, %1045, %1040 : vector<1x128xi1>, vector<1x128xi32>
    %c51 = arith.constant 51 : index
    %c0_318 = arith.constant 0 : index
    %1047 = vector.load %arg4[%c51, %c0_318] : memref<64x128xi32, #tpu.memory_space<vmem>>, vector<1x128xi32>
    tpu.vector_store %arg4[%c51, %c0_318], %1046 {strides = array<i32>} : memref<64x128xi32, #tpu.memory_space<vmem>>, vector<1x128xi32>,
    %c51_319 = arith.constant 51 : index
    %c0_320 = arith.constant 0 : index
    %1048 = vector.load %arg1[%c51_319, %c0_320] : memref<64x128xf32, #tpu.memory_space<vmem>>, vector<1x128xf32>
    %1049 = arith.addf %1044, %1048 : vector<1x128xf32>
    %1050 = vector.broadcast %20 : f32 to vector<1x128xf32>
    %1051 = arith.addf %809, %1050 : vector<1x128xf32>
    %c0_i32_321 = arith.constant 0 : i32
    %1052 = vector.broadcast %c0_i32_321 : i32 to vector<1x128xi32>
    %1053 = vector.broadcast %21 : f32 to vector<1x128xf32>
    %1054 = arith.addf %839, %1053 : vector<1x128xf32>
    %1055 = arith.cmpf ogt, %1054, %1051 : vector<1x128xf32>
    %1056 = arith.select %1055, %1054, %1051 : vector<1x128xi1>, vector<1x128xf32>
    %c1_i32_322 = arith.constant 1 : i32
    %1057 = vector.broadcast %c1_i32_322 : i32 to vector<1x128xi32>
    %1058 = arith.select %1055, %1057, %1052 : vector<1x128xi1>, vector<1x128xi32>
    %1059 = vector.broadcast %22 : f32 to vector<1x128xf32>
    %1060 = arith.addf %869, %1059 : vector<1x128xf32>
    %1061 = arith.cmpf ogt, %1060, %1056 : vector<1x128xf32>
    %1062 = arith.select %1061, %1060, %1056 : vector<1x128xi1>, vector<1x128xf32>
    %c2_i32_323 = arith.constant 2 : i32
    %1063 = vector.broadcast %c2_i32_323 : i32 to vector<1x128xi32>
    %1064 = arith.select %1061, %1063, %1058 : vector<1x128xi1>, vector<1x128xi32>
    %1065 = vector.broadcast %23 : f32 to vector<1x128xf32>
    %1066 = arith.addf %899, %1065 : vector<1x128xf32>
    %1067 = arith.cmpf ogt, %1066, %1062 : vector<1x128xf32>
    %1068 = arith.select %1067, %1066, %1062 : vector<1x128xi1>, vector<1x128xf32>
    %c3_i32_324 = arith.constant 3 : i32
    %1069 = vector.broadcast %c3_i32_324 : i32 to vector<1x128xi32>
    %1070 = arith.select %1067, %1069, %1064 : vector<1x128xi1>, vector<1x128xi32>
    %1071 = vector.broadcast %24 : f32 to vector<1x128xf32>
    %1072 = arith.addf %929, %1071 : vector<1x128xf32>
    %1073 = arith.cmpf ogt, %1072, %1068 : vector<1x128xf32>
    %1074 = arith.select %1073, %1072, %1068 : vector<1x128xi1>, vector<1x128xf32>
    %c4_i32_325 = arith.constant 4 : i32
    %1075 = vector.broadcast %c4_i32_325 : i32 to vector<1x128xi32>
    %1076 = arith.select %1073, %1075, %1070 : vector<1x128xi1>, vector<1x128xi32>
    %c52 = arith.constant 52 : index
    %c0_326 = arith.constant 0 : index
    %1077 = vector.load %arg4[%c52, %c0_326] : memref<64x128xi32, #tpu.memory_space<vmem>>, vector<1x128xi32>
    tpu.vector_store %arg4[%c52, %c0_326], %1076 {strides = array<i32>} : memref<64x128xi32, #tpu.memory_space<vmem>>, vector<1x128xi32>,
    %c52_327 = arith.constant 52 : index
    %c0_328 = arith.constant 0 : index
    %1078 = vector.load %arg1[%c52_327, %c0_328] : memref<64x128xf32, #tpu.memory_space<vmem>>, vector<1x128xf32>
    %1079 = arith.addf %1074, %1078 : vector<1x128xf32>
    %1080 = vector.broadcast %0 : f32 to vector<1x128xf32>
    %1081 = arith.addf %959, %1080 : vector<1x128xf32>
    %c0_i32_329 = arith.constant 0 : i32
    %1082 = vector.broadcast %c0_i32_329 : i32 to vector<1x128xi32>
    %1083 = vector.broadcast %1 : f32 to vector<1x128xf32>
    %1084 = arith.addf %989, %1083 : vector<1x128xf32>
    %1085 = arith.cmpf ogt, %1084, %1081 : vector<1x128xf32>
    %1086 = arith.select %1085, %1084, %1081 : vector<1x128xi1>, vector<1x128xf32>
    %c1_i32_330 = arith.constant 1 : i32
    %1087 = vector.broadcast %c1_i32_330 : i32 to vector<1x128xi32>
    %1088 = arith.select %1085, %1087, %1082 : vector<1x128xi1>, vector<1x128xi32>
    %1089 = vector.broadcast %2 : f32 to vector<1x128xf32>
    %1090 = arith.addf %1019, %1089 : vector<1x128xf32>
    %1091 = arith.cmpf ogt, %1090, %1086 : vector<1x128xf32>
    %1092 = arith.select %1091, %1090, %1086 : vector<1x128xi1>, vector<1x128xf32>
    %c2_i32_331 = arith.constant 2 : i32
    %1093 = vector.broadcast %c2_i32_331 : i32 to vector<1x128xi32>
    %1094 = arith.select %1091, %1093, %1088 : vector<1x128xi1>, vector<1x128xi32>
    %1095 = vector.broadcast %3 : f32 to vector<1x128xf32>
    %1096 = arith.addf %1049, %1095 : vector<1x128xf32>
    %1097 = arith.cmpf ogt, %1096, %1092 : vector<1x128xf32>
    %1098 = arith.select %1097, %1096, %1092 : vector<1x128xi1>, vector<1x128xf32>
    %c3_i32_332 = arith.constant 3 : i32
    %1099 = vector.broadcast %c3_i32_332 : i32 to vector<1x128xi32>
    %1100 = arith.select %1097, %1099, %1094 : vector<1x128xi1>, vector<1x128xi32>
    %1101 = vector.broadcast %4 : f32 to vector<1x128xf32>
    %1102 = arith.addf %1079, %1101 : vector<1x128xf32>
    %1103 = arith.cmpf ogt, %1102, %1098 : vector<1x128xf32>
    %1104 = arith.select %1103, %1102, %1098 : vector<1x128xi1>, vector<1x128xf32>
    %c4_i32_333 = arith.constant 4 : i32
    %1105 = vector.broadcast %c4_i32_333 : i32 to vector<1x128xi32>
    %1106 = arith.select %1103, %1105, %1100 : vector<1x128xi1>, vector<1x128xi32>
    %c56 = arith.constant 56 : index
    %c0_334 = arith.constant 0 : index
    %1107 = vector.load %arg4[%c56, %c0_334] : memref<64x128xi32, #tpu.memory_space<vmem>>, vector<1x128xi32>
    tpu.vector_store %arg4[%c56, %c0_334], %1106 {strides = array<i32>} : memref<64x128xi32, #tpu.memory_space<vmem>>, vector<1x128xi32>,
    %c56_335 = arith.constant 56 : index
    %c0_336 = arith.constant 0 : index
    %1108 = vector.load %arg1[%c56_335, %c0_336] : memref<64x128xf32, #tpu.memory_space<vmem>>, vector<1x128xf32>
    %1109 = arith.addf %1104, %1108 : vector<1x128xf32>
    %1110 = vector.broadcast %5 : f32 to vector<1x128xf32>
    %1111 = arith.addf %959, %1110 : vector<1x128xf32>
    %c0_i32_337 = arith.constant 0 : i32
    %1112 = vector.broadcast %c0_i32_337 : i32 to vector<1x128xi32>
    %1113 = vector.broadcast %6 : f32 to vector<1x128xf32>
    %1114 = arith.addf %989, %1113 : vector<1x128xf32>
    %1115 = arith.cmpf ogt, %1114, %1111 : vector<1x128xf32>
    %1116 = arith.select %1115, %1114, %1111 : vector<1x128xi1>, vector<1x128xf32>
    %c1_i32_338 = arith.constant 1 : i32
    %1117 = vector.broadcast %c1_i32_338 : i32 to vector<1x128xi32>
    %1118 = arith.select %1115, %1117, %1112 : vector<1x128xi1>, vector<1x128xi32>
    %1119 = vector.broadcast %7 : f32 to vector<1x128xf32>
    %1120 = arith.addf %1019, %1119 : vector<1x128xf32>
    %1121 = arith.cmpf ogt, %1120, %1116 : vector<1x128xf32>
    %1122 = arith.select %1121, %1120, %1116 : vector<1x128xi1>, vector<1x128xf32>
    %c2_i32_339 = arith.constant 2 : i32
    %1123 = vector.broadcast %c2_i32_339 : i32 to vector<1x128xi32>
    %1124 = arith.select %1121, %1123, %1118 : vector<1x128xi1>, vector<1x128xi32>
    %1125 = vector.broadcast %8 : f32 to vector<1x128xf32>
    %1126 = arith.addf %1049, %1125 : vector<1x128xf32>
    %1127 = arith.cmpf ogt, %1126, %1122 : vector<1x128xf32>
    %1128 = arith.select %1127, %1126, %1122 : vector<1x128xi1>, vector<1x128xf32>
    %c3_i32_340 = arith.constant 3 : i32
    %1129 = vector.broadcast %c3_i32_340 : i32 to vector<1x128xi32>
    %1130 = arith.select %1127, %1129, %1124 : vector<1x128xi1>, vector<1x128xi32>
    %1131 = vector.broadcast %9 : f32 to vector<1x128xf32>
    %1132 = arith.addf %1079, %1131 : vector<1x128xf32>
    %1133 = arith.cmpf ogt, %1132, %1128 : vector<1x128xf32>
    %1134 = arith.select %1133, %1132, %1128 : vector<1x128xi1>, vector<1x128xf32>
    %c4_i32_341 = arith.constant 4 : i32
    %1135 = vector.broadcast %c4_i32_341 : i32 to vector<1x128xi32>
    %1136 = arith.select %1133, %1135, %1130 : vector<1x128xi1>, vector<1x128xi32>
    %c57 = arith.constant 57 : index
    %c0_342 = arith.constant 0 : index
    %1137 = vector.load %arg4[%c57, %c0_342] : memref<64x128xi32, #tpu.memory_space<vmem>>, vector<1x128xi32>
    tpu.vector_store %arg4[%c57, %c0_342], %1136 {strides = array<i32>} : memref<64x128xi32, #tpu.memory_space<vmem>>, vector<1x128xi32>,
    %c57_343 = arith.constant 57 : index
    %c0_344 = arith.constant 0 : index
    %1138 = vector.load %arg1[%c57_343, %c0_344] : memref<64x128xf32, #tpu.memory_space<vmem>>, vector<1x128xf32>
    %1139 = arith.addf %1134, %1138 : vector<1x128xf32>
    %1140 = vector.broadcast %10 : f32 to vector<1x128xf32>
    %1141 = arith.addf %959, %1140 : vector<1x128xf32>
    %c0_i32_345 = arith.constant 0 : i32
    %1142 = vector.broadcast %c0_i32_345 : i32 to vector<1x128xi32>
    %1143 = vector.broadcast %11 : f32 to vector<1x128xf32>
    %1144 = arith.addf %989, %1143 : vector<1x128xf32>
    %1145 = arith.cmpf ogt, %1144, %1141 : vector<1x128xf32>
    %1146 = arith.select %1145, %1144, %1141 : vector<1x128xi1>, vector<1x128xf32>
    %c1_i32_346 = arith.constant 1 : i32
    %1147 = vector.broadcast %c1_i32_346 : i32 to vector<1x128xi32>
    %1148 = arith.select %1145, %1147, %1142 : vector<1x128xi1>, vector<1x128xi32>
    %1149 = vector.broadcast %12 : f32 to vector<1x128xf32>
    %1150 = arith.addf %1019, %1149 : vector<1x128xf32>
    %1151 = arith.cmpf ogt, %1150, %1146 : vector<1x128xf32>
    %1152 = arith.select %1151, %1150, %1146 : vector<1x128xi1>, vector<1x128xf32>
    %c2_i32_347 = arith.constant 2 : i32
    %1153 = vector.broadcast %c2_i32_347 : i32 to vector<1x128xi32>
    %1154 = arith.select %1151, %1153, %1148 : vector<1x128xi1>, vector<1x128xi32>
    %1155 = vector.broadcast %13 : f32 to vector<1x128xf32>
    %1156 = arith.addf %1049, %1155 : vector<1x128xf32>
    %1157 = arith.cmpf ogt, %1156, %1152 : vector<1x128xf32>
    %1158 = arith.select %1157, %1156, %1152 : vector<1x128xi1>, vector<1x128xf32>
    %c3_i32_348 = arith.constant 3 : i32
    %1159 = vector.broadcast %c3_i32_348 : i32 to vector<1x128xi32>
    %1160 = arith.select %1157, %1159, %1154 : vector<1x128xi1>, vector<1x128xi32>
    %1161 = vector.broadcast %14 : f32 to vector<1x128xf32>
    %1162 = arith.addf %1079, %1161 : vector<1x128xf32>
    %1163 = arith.cmpf ogt, %1162, %1158 : vector<1x128xf32>
    %1164 = arith.select %1163, %1162, %1158 : vector<1x128xi1>, vector<1x128xf32>
    %c4_i32_349 = arith.constant 4 : i32
    %1165 = vector.broadcast %c4_i32_349 : i32 to vector<1x128xi32>
    %1166 = arith.select %1163, %1165, %1160 : vector<1x128xi1>, vector<1x128xi32>
    %c58 = arith.constant 58 : index
    %c0_350 = arith.constant 0 : index
    %1167 = vector.load %arg4[%c58, %c0_350] : memref<64x128xi32, #tpu.memory_space<vmem>>, vector<1x128xi32>
    tpu.vector_store %arg4[%c58, %c0_350], %1166 {strides = array<i32>} : memref<64x128xi32, #tpu.memory_space<vmem>>, vector<1x128xi32>,
    %c58_351 = arith.constant 58 : index
    %c0_352 = arith.constant 0 : index
    %1168 = vector.load %arg1[%c58_351, %c0_352] : memref<64x128xf32, #tpu.memory_space<vmem>>, vector<1x128xf32>
    %1169 = arith.addf %1164, %1168 : vector<1x128xf32>
    %1170 = vector.broadcast %15 : f32 to vector<1x128xf32>
    %1171 = arith.addf %959, %1170 : vector<1x128xf32>
    %c0_i32_353 = arith.constant 0 : i32
    %1172 = vector.broadcast %c0_i32_353 : i32 to vector<1x128xi32>
    %1173 = vector.broadcast %16 : f32 to vector<1x128xf32>
    %1174 = arith.addf %989, %1173 : vector<1x128xf32>
    %1175 = arith.cmpf ogt, %1174, %1171 : vector<1x128xf32>
    %1176 = arith.select %1175, %1174, %1171 : vector<1x128xi1>, vector<1x128xf32>
    %c1_i32_354 = arith.constant 1 : i32
    %1177 = vector.broadcast %c1_i32_354 : i32 to vector<1x128xi32>
    %1178 = arith.select %1175, %1177, %1172 : vector<1x128xi1>, vector<1x128xi32>
    %1179 = vector.broadcast %17 : f32 to vector<1x128xf32>
    %1180 = arith.addf %1019, %1179 : vector<1x128xf32>
    %1181 = arith.cmpf ogt, %1180, %1176 : vector<1x128xf32>
    %1182 = arith.select %1181, %1180, %1176 : vector<1x128xi1>, vector<1x128xf32>
    %c2_i32_355 = arith.constant 2 : i32
    %1183 = vector.broadcast %c2_i32_355 : i32 to vector<1x128xi32>
    %1184 = arith.select %1181, %1183, %1178 : vector<1x128xi1>, vector<1x128xi32>
    %1185 = vector.broadcast %18 : f32 to vector<1x128xf32>
    %1186 = arith.addf %1049, %1185 : vector<1x128xf32>
    %1187 = arith.cmpf ogt, %1186, %1182 : vector<1x128xf32>
    %1188 = arith.select %1187, %1186, %1182 : vector<1x128xi1>, vector<1x128xf32>
    %c3_i32_356 = arith.constant 3 : i32
    %1189 = vector.broadcast %c3_i32_356 : i32 to vector<1x128xi32>
    %1190 = arith.select %1187, %1189, %1184 : vector<1x128xi1>, vector<1x128xi32>
    %1191 = vector.broadcast %19 : f32 to vector<1x128xf32>
    %1192 = arith.addf %1079, %1191 : vector<1x128xf32>
    %1193 = arith.cmpf ogt, %1192, %1188 : vector<1x128xf32>
    %1194 = arith.select %1193, %1192, %1188 : vector<1x128xi1>, vector<1x128xf32>
    %c4_i32_357 = arith.constant 4 : i32
    %1195 = vector.broadcast %c4_i32_357 : i32 to vector<1x128xi32>
    %1196 = arith.select %1193, %1195, %1190 : vector<1x128xi1>, vector<1x128xi32>
    %c59 = arith.constant 59 : index
    %c0_358 = arith.constant 0 : index
    %1197 = vector.load %arg4[%c59, %c0_358] : memref<64x128xi32, #tpu.memory_space<vmem>>, vector<1x128xi32>
    tpu.vector_store %arg4[%c59, %c0_358], %1196 {strides = array<i32>} : memref<64x128xi32, #tpu.memory_space<vmem>>, vector<1x128xi32>,
    %c59_359 = arith.constant 59 : index
    %c0_360 = arith.constant 0 : index
    %1198 = vector.load %arg1[%c59_359, %c0_360] : memref<64x128xf32, #tpu.memory_space<vmem>>, vector<1x128xf32>
    %1199 = arith.addf %1194, %1198 : vector<1x128xf32>
    %1200 = vector.broadcast %20 : f32 to vector<1x128xf32>
    %1201 = arith.addf %959, %1200 : vector<1x128xf32>
    %c0_i32_361 = arith.constant 0 : i32
    %1202 = vector.broadcast %c0_i32_361 : i32 to vector<1x128xi32>
    %1203 = vector.broadcast %21 : f32 to vector<1x128xf32>
    %1204 = arith.addf %989, %1203 : vector<1x128xf32>
    %1205 = arith.cmpf ogt, %1204, %1201 : vector<1x128xf32>
    %1206 = arith.select %1205, %1204, %1201 : vector<1x128xi1>, vector<1x128xf32>
    %c1_i32_362 = arith.constant 1 : i32
    %1207 = vector.broadcast %c1_i32_362 : i32 to vector<1x128xi32>
    %1208 = arith.select %1205, %1207, %1202 : vector<1x128xi1>, vector<1x128xi32>
    %1209 = vector.broadcast %22 : f32 to vector<1x128xf32>
    %1210 = arith.addf %1019, %1209 : vector<1x128xf32>
    %1211 = arith.cmpf ogt, %1210, %1206 : vector<1x128xf32>
    %1212 = arith.select %1211, %1210, %1206 : vector<1x128xi1>, vector<1x128xf32>
    %c2_i32_363 = arith.constant 2 : i32
    %1213 = vector.broadcast %c2_i32_363 : i32 to vector<1x128xi32>
    %1214 = arith.select %1211, %1213, %1208 : vector<1x128xi1>, vector<1x128xi32>
    %1215 = vector.broadcast %23 : f32 to vector<1x128xf32>
    %1216 = arith.addf %1049, %1215 : vector<1x128xf32>
    %1217 = arith.cmpf ogt, %1216, %1212 : vector<1x128xf32>
    %1218 = arith.select %1217, %1216, %1212 : vector<1x128xi1>, vector<1x128xf32>
    %c3_i32_364 = arith.constant 3 : i32
    %1219 = vector.broadcast %c3_i32_364 : i32 to vector<1x128xi32>
    %1220 = arith.select %1217, %1219, %1214 : vector<1x128xi1>, vector<1x128xi32>
    %1221 = vector.broadcast %24 : f32 to vector<1x128xf32>
    %1222 = arith.addf %1079, %1221 : vector<1x128xf32>
    %1223 = arith.cmpf ogt, %1222, %1218 : vector<1x128xf32>
    %1224 = arith.select %1223, %1222, %1218 : vector<1x128xi1>, vector<1x128xf32>
    %c4_i32_365 = arith.constant 4 : i32
    %1225 = vector.broadcast %c4_i32_365 : i32 to vector<1x128xi32>
    %1226 = arith.select %1223, %1225, %1220 : vector<1x128xi1>, vector<1x128xi32>
    %c60 = arith.constant 60 : index
    %c0_366 = arith.constant 0 : index
    %1227 = vector.load %arg4[%c60, %c0_366] : memref<64x128xi32, #tpu.memory_space<vmem>>, vector<1x128xi32>
    tpu.vector_store %arg4[%c60, %c0_366], %1226 {strides = array<i32>} : memref<64x128xi32, #tpu.memory_space<vmem>>, vector<1x128xi32>,
    %c60_367 = arith.constant 60 : index
    %c0_368 = arith.constant 0 : index
    %1228 = vector.load %arg1[%c60_367, %c0_368] : memref<64x128xf32, #tpu.memory_space<vmem>>, vector<1x128xf32>
    %1229 = arith.addf %1224, %1228 : vector<1x128xf32>
    %1230 = vector.broadcast %20 : f32 to vector<1x128xf32>
    %1231 = arith.addf %1109, %1230 : vector<1x128xf32>
    %c0_i32_369 = arith.constant 0 : i32
    %1232 = vector.broadcast %c0_i32_369 : i32 to vector<1x128xi32>
    %1233 = vector.broadcast %21 : f32 to vector<1x128xf32>
    %1234 = arith.addf %1139, %1233 : vector<1x128xf32>
    %1235 = arith.cmpf ogt, %1234, %1231 : vector<1x128xf32>
    %1236 = arith.select %1235, %1234, %1231 : vector<1x128xi1>, vector<1x128xf32>
    %c1_i32_370 = arith.constant 1 : i32
    %1237 = vector.broadcast %c1_i32_370 : i32 to vector<1x128xi32>
    %1238 = arith.select %1235, %1237, %1232 : vector<1x128xi1>, vector<1x128xi32>
    %1239 = vector.broadcast %22 : f32 to vector<1x128xf32>
    %1240 = arith.addf %1169, %1239 : vector<1x128xf32>
    %1241 = arith.cmpf ogt, %1240, %1236 : vector<1x128xf32>
    %1242 = arith.select %1241, %1240, %1236 : vector<1x128xi1>, vector<1x128xf32>
    %c2_i32_371 = arith.constant 2 : i32
    %1243 = vector.broadcast %c2_i32_371 : i32 to vector<1x128xi32>
    %1244 = arith.select %1241, %1243, %1238 : vector<1x128xi1>, vector<1x128xi32>
    %1245 = vector.broadcast %23 : f32 to vector<1x128xf32>
    %1246 = arith.addf %1199, %1245 : vector<1x128xf32>
    %1247 = arith.cmpf ogt, %1246, %1242 : vector<1x128xf32>
    %1248 = arith.select %1247, %1246, %1242 : vector<1x128xi1>, vector<1x128xf32>
    %c3_i32_372 = arith.constant 3 : i32
    %1249 = vector.broadcast %c3_i32_372 : i32 to vector<1x128xi32>
    %1250 = arith.select %1247, %1249, %1244 : vector<1x128xi1>, vector<1x128xi32>
    %1251 = vector.broadcast %24 : f32 to vector<1x128xf32>
    %1252 = arith.addf %1229, %1251 : vector<1x128xf32>
    %1253 = arith.cmpf ogt, %1252, %1248 : vector<1x128xf32>
    %1254 = arith.select %1253, %1252, %1248 : vector<1x128xi1>, vector<1x128xf32>
    %c4_i32_373 = arith.constant 4 : i32
    %1255 = vector.broadcast %c4_i32_373 : i32 to vector<1x128xi32>
    %1256 = arith.select %1253, %1255, %1250 : vector<1x128xi1>, vector<1x128xi32>
    %c0_i32_374 = arith.constant 0 : i32
    %1257 = vector.broadcast %c0_i32_374 : i32 to vector<16x128xi32>
    %c0_375 = arith.constant 0 : index
    %c0_376 = arith.constant 0 : index
    %1258 = vector.load %arg3[%c0_375, %c0_376] : memref<16x128xi32, #tpu.memory_space<vmem>>, vector<16x128xi32>
    tpu.vector_store %arg3[%c0_375, %c0_376], %1257 {strides = array<i32>} : memref<16x128xi32, #tpu.memory_space<vmem>>, vector<16x128xi32>,
    %c7 = arith.constant 7 : index
    %c0_377 = arith.constant 0 : index
    %1259 = vector.load %arg3[%c7, %c0_377] : memref<16x128xi32, #tpu.memory_space<vmem>>, vector<1x128xi32>
    tpu.vector_store %arg3[%c7, %c0_377], %1256 {strides = array<i32>} : memref<16x128xi32, #tpu.memory_space<vmem>>, vector<1x128xi32>,
    %c56_378 = arith.constant 56 : index
    %c0_379 = arith.constant 0 : index
    %1260 = vector.load %arg4[%c56_378, %c0_379] : memref<64x128xi32, #tpu.memory_space<vmem>>, vector<1x128xi32>
    %c1_i32_380 = arith.constant 1 : i32
    %1261 = vector.broadcast %c1_i32_380 : i32 to vector<1x128xi32>
    %1262 = arith.cmpi eq, %1256, %1261 : vector<1x128xi32>
    %c57_381 = arith.constant 57 : index
    %c0_382 = arith.constant 0 : index
    %1263 = vector.load %arg4[%c57_381, %c0_382] : memref<64x128xi32, #tpu.memory_space<vmem>>, vector<1x128xi32>
    %1264 = arith.select %1262, %1263, %1260 : vector<1x128xi1>, vector<1x128xi32>
    %c2_i32_383 = arith.constant 2 : i32
    %1265 = vector.broadcast %c2_i32_383 : i32 to vector<1x128xi32>
    %1266 = arith.cmpi eq, %1256, %1265 : vector<1x128xi32>
    %c58_384 = arith.constant 58 : index
    %c0_385 = arith.constant 0 : index
    %1267 = vector.load %arg4[%c58_384, %c0_385] : memref<64x128xi32, #tpu.memory_space<vmem>>, vector<1x128xi32>
    %1268 = arith.select %1266, %1267, %1264 : vector<1x128xi1>, vector<1x128xi32>
    %c3_i32_386 = arith.constant 3 : i32
    %1269 = vector.broadcast %c3_i32_386 : i32 to vector<1x128xi32>
    %1270 = arith.cmpi eq, %1256, %1269 : vector<1x128xi32>
    %c59_387 = arith.constant 59 : index
    %c0_388 = arith.constant 0 : index
    %1271 = vector.load %arg4[%c59_387, %c0_388] : memref<64x128xi32, #tpu.memory_space<vmem>>, vector<1x128xi32>
    %1272 = arith.select %1270, %1271, %1268 : vector<1x128xi1>, vector<1x128xi32>
    %c4_i32_389 = arith.constant 4 : i32
    %1273 = vector.broadcast %c4_i32_389 : i32 to vector<1x128xi32>
    %1274 = arith.cmpi eq, %1256, %1273 : vector<1x128xi32>
    %c60_390 = arith.constant 60 : index
    %c0_391 = arith.constant 0 : index
    %1275 = vector.load %arg4[%c60_390, %c0_391] : memref<64x128xi32, #tpu.memory_space<vmem>>, vector<1x128xi32>
    %1276 = arith.select %1274, %1275, %1272 : vector<1x128xi1>, vector<1x128xi32>
    %c6 = arith.constant 6 : index
    %c0_392 = arith.constant 0 : index
    %1277 = vector.load %arg3[%c6, %c0_392] : memref<16x128xi32, #tpu.memory_space<vmem>>, vector<1x128xi32>
    tpu.vector_store %arg3[%c6, %c0_392], %1276 {strides = array<i32>} : memref<16x128xi32, #tpu.memory_space<vmem>>, vector<1x128xi32>,
    %c48_393 = arith.constant 48 : index
    %c0_394 = arith.constant 0 : index
    %1278 = vector.load %arg4[%c48_393, %c0_394] : memref<64x128xi32, #tpu.memory_space<vmem>>, vector<1x128xi32>
    %c1_i32_395 = arith.constant 1 : i32
    %1279 = vector.broadcast %c1_i32_395 : i32 to vector<1x128xi32>
    %1280 = arith.cmpi eq, %1276, %1279 : vector<1x128xi32>
    %c49_396 = arith.constant 49 : index
    %c0_397 = arith.constant 0 : index
    %1281 = vector.load %arg4[%c49_396, %c0_397] : memref<64x128xi32, #tpu.memory_space<vmem>>, vector<1x128xi32>
    %1282 = arith.select %1280, %1281, %1278 : vector<1x128xi1>, vector<1x128xi32>
    %c2_i32_398 = arith.constant 2 : i32
    %1283 = vector.broadcast %c2_i32_398 : i32 to vector<1x128xi32>
    %1284 = arith.cmpi eq, %1276, %1283 : vector<1x128xi32>
    %c50_399 = arith.constant 50 : index
    %c0_400 = arith.constant 0 : index
    %1285 = vector.load %arg4[%c50_399, %c0_400] : memref<64x128xi32, #tpu.memory_space<vmem>>, vector<1x128xi32>
    %1286 = arith.select %1284, %1285, %1282 : vector<1x128xi1>, vector<1x128xi32>
    %c3_i32_401 = arith.constant 3 : i32
    %1287 = vector.broadcast %c3_i32_401 : i32 to vector<1x128xi32>
    %1288 = arith.cmpi eq, %1276, %1287 : vector<1x128xi32>
    %c51_402 = arith.constant 51 : index
    %c0_403 = arith.constant 0 : index
    %1289 = vector.load %arg4[%c51_402, %c0_403] : memref<64x128xi32, #tpu.memory_space<vmem>>, vector<1x128xi32>
    %1290 = arith.select %1288, %1289, %1286 : vector<1x128xi1>, vector<1x128xi32>
    %c4_i32_404 = arith.constant 4 : i32
    %1291 = vector.broadcast %c4_i32_404 : i32 to vector<1x128xi32>
    %1292 = arith.cmpi eq, %1276, %1291 : vector<1x128xi32>
    %c52_405 = arith.constant 52 : index
    %c0_406 = arith.constant 0 : index
    %1293 = vector.load %arg4[%c52_405, %c0_406] : memref<64x128xi32, #tpu.memory_space<vmem>>, vector<1x128xi32>
    %1294 = arith.select %1292, %1293, %1290 : vector<1x128xi1>, vector<1x128xi32>
    %c5 = arith.constant 5 : index
    %c0_407 = arith.constant 0 : index
    %1295 = vector.load %arg3[%c5, %c0_407] : memref<16x128xi32, #tpu.memory_space<vmem>>, vector<1x128xi32>
    tpu.vector_store %arg3[%c5, %c0_407], %1294 {strides = array<i32>} : memref<16x128xi32, #tpu.memory_space<vmem>>, vector<1x128xi32>,
    %c40_408 = arith.constant 40 : index
    %c0_409 = arith.constant 0 : index
    %1296 = vector.load %arg4[%c40_408, %c0_409] : memref<64x128xi32, #tpu.memory_space<vmem>>, vector<1x128xi32>
    %c1_i32_410 = arith.constant 1 : i32
    %1297 = vector.broadcast %c1_i32_410 : i32 to vector<1x128xi32>
    %1298 = arith.cmpi eq, %1294, %1297 : vector<1x128xi32>
    %c41_411 = arith.constant 41 : index
    %c0_412 = arith.constant 0 : index
    %1299 = vector.load %arg4[%c41_411, %c0_412] : memref<64x128xi32, #tpu.memory_space<vmem>>, vector<1x128xi32>
    %1300 = arith.select %1298, %1299, %1296 : vector<1x128xi1>, vector<1x128xi32>
    %c2_i32_413 = arith.constant 2 : i32
    %1301 = vector.broadcast %c2_i32_413 : i32 to vector<1x128xi32>
    %1302 = arith.cmpi eq, %1294, %1301 : vector<1x128xi32>
    %c42_414 = arith.constant 42 : index
    %c0_415 = arith.constant 0 : index
    %1303 = vector.load %arg4[%c42_414, %c0_415] : memref<64x128xi32, #tpu.memory_space<vmem>>, vector<1x128xi32>
    %1304 = arith.select %1302, %1303, %1300 : vector<1x128xi1>, vector<1x128xi32>
    %c3_i32_416 = arith.constant 3 : i32
    %1305 = vector.broadcast %c3_i32_416 : i32 to vector<1x128xi32>
    %1306 = arith.cmpi eq, %1294, %1305 : vector<1x128xi32>
    %c43_417 = arith.constant 43 : index
    %c0_418 = arith.constant 0 : index
    %1307 = vector.load %arg4[%c43_417, %c0_418] : memref<64x128xi32, #tpu.memory_space<vmem>>, vector<1x128xi32>
    %1308 = arith.select %1306, %1307, %1304 : vector<1x128xi1>, vector<1x128xi32>
    %c4_i32_419 = arith.constant 4 : i32
    %1309 = vector.broadcast %c4_i32_419 : i32 to vector<1x128xi32>
    %1310 = arith.cmpi eq, %1294, %1309 : vector<1x128xi32>
    %c44_420 = arith.constant 44 : index
    %c0_421 = arith.constant 0 : index
    %1311 = vector.load %arg4[%c44_420, %c0_421] : memref<64x128xi32, #tpu.memory_space<vmem>>, vector<1x128xi32>
    %1312 = arith.select %1310, %1311, %1308 : vector<1x128xi1>, vector<1x128xi32>
    %c4_422 = arith.constant 4 : index
    %c0_423 = arith.constant 0 : index
    %1313 = vector.load %arg3[%c4_422, %c0_423] : memref<16x128xi32, #tpu.memory_space<vmem>>, vector<1x128xi32>
    tpu.vector_store %arg3[%c4_422, %c0_423], %1312 {strides = array<i32>} : memref<16x128xi32, #tpu.memory_space<vmem>>, vector<1x128xi32>,
    %c32_424 = arith.constant 32 : index
    %c0_425 = arith.constant 0 : index
    %1314 = vector.load %arg4[%c32_424, %c0_425] : memref<64x128xi32, #tpu.memory_space<vmem>>, vector<1x128xi32>
    %c1_i32_426 = arith.constant 1 : i32
    %1315 = vector.broadcast %c1_i32_426 : i32 to vector<1x128xi32>
    %1316 = arith.cmpi eq, %1312, %1315 : vector<1x128xi32>
    %c33_427 = arith.constant 33 : index
    %c0_428 = arith.constant 0 : index
    %1317 = vector.load %arg4[%c33_427, %c0_428] : memref<64x128xi32, #tpu.memory_space<vmem>>, vector<1x128xi32>
    %1318 = arith.select %1316, %1317, %1314 : vector<1x128xi1>, vector<1x128xi32>
    %c2_i32_429 = arith.constant 2 : i32
    %1319 = vector.broadcast %c2_i32_429 : i32 to vector<1x128xi32>
    %1320 = arith.cmpi eq, %1312, %1319 : vector<1x128xi32>
    %c34_430 = arith.constant 34 : index
    %c0_431 = arith.constant 0 : index
    %1321 = vector.load %arg4[%c34_430, %c0_431] : memref<64x128xi32, #tpu.memory_space<vmem>>, vector<1x128xi32>
    %1322 = arith.select %1320, %1321, %1318 : vector<1x128xi1>, vector<1x128xi32>
    %c3_i32_432 = arith.constant 3 : i32
    %1323 = vector.broadcast %c3_i32_432 : i32 to vector<1x128xi32>
    %1324 = arith.cmpi eq, %1312, %1323 : vector<1x128xi32>
    %c35_433 = arith.constant 35 : index
    %c0_434 = arith.constant 0 : index
    %1325 = vector.load %arg4[%c35_433, %c0_434] : memref<64x128xi32, #tpu.memory_space<vmem>>, vector<1x128xi32>
    %1326 = arith.select %1324, %1325, %1322 : vector<1x128xi1>, vector<1x128xi32>
    %c4_i32_435 = arith.constant 4 : i32
    %1327 = vector.broadcast %c4_i32_435 : i32 to vector<1x128xi32>
    %1328 = arith.cmpi eq, %1312, %1327 : vector<1x128xi32>
    %c36_436 = arith.constant 36 : index
    %c0_437 = arith.constant 0 : index
    %1329 = vector.load %arg4[%c36_436, %c0_437] : memref<64x128xi32, #tpu.memory_space<vmem>>, vector<1x128xi32>
    %1330 = arith.select %1328, %1329, %1326 : vector<1x128xi1>, vector<1x128xi32>
    %c3_438 = arith.constant 3 : index
    %c0_439 = arith.constant 0 : index
    %1331 = vector.load %arg3[%c3_438, %c0_439] : memref<16x128xi32, #tpu.memory_space<vmem>>, vector<1x128xi32>
    tpu.vector_store %arg3[%c3_438, %c0_439], %1330 {strides = array<i32>} : memref<16x128xi32, #tpu.memory_space<vmem>>, vector<1x128xi32>,
    %c24_440 = arith.constant 24 : index
    %c0_441 = arith.constant 0 : index
    %1332 = vector.load %arg4[%c24_440, %c0_441] : memref<64x128xi32, #tpu.memory_space<vmem>>, vector<1x128xi32>
    %c1_i32_442 = arith.constant 1 : i32
    %1333 = vector.broadcast %c1_i32_442 : i32 to vector<1x128xi32>
    %1334 = arith.cmpi eq, %1330, %1333 : vector<1x128xi32>
    %c25_443 = arith.constant 25 : index
    %c0_444 = arith.constant 0 : index
    %1335 = vector.load %arg4[%c25_443, %c0_444] : memref<64x128xi32, #tpu.memory_space<vmem>>, vector<1x128xi32>
    %1336 = arith.select %1334, %1335, %1332 : vector<1x128xi1>, vector<1x128xi32>
    %c2_i32_445 = arith.constant 2 : i32
    %1337 = vector.broadcast %c2_i32_445 : i32 to vector<1x128xi32>
    %1338 = arith.cmpi eq, %1330, %1337 : vector<1x128xi32>
    %c26_446 = arith.constant 26 : index
    %c0_447 = arith.constant 0 : index
    %1339 = vector.load %arg4[%c26_446, %c0_447] : memref<64x128xi32, #tpu.memory_space<vmem>>, vector<1x128xi32>
    %1340 = arith.select %1338, %1339, %1336 : vector<1x128xi1>, vector<1x128xi32>
    %c3_i32_448 = arith.constant 3 : i32
    %1341 = vector.broadcast %c3_i32_448 : i32 to vector<1x128xi32>
    %1342 = arith.cmpi eq, %1330, %1341 : vector<1x128xi32>
    %c27_449 = arith.constant 27 : index
    %c0_450 = arith.constant 0 : index
    %1343 = vector.load %arg4[%c27_449, %c0_450] : memref<64x128xi32, #tpu.memory_space<vmem>>, vector<1x128xi32>
    %1344 = arith.select %1342, %1343, %1340 : vector<1x128xi1>, vector<1x128xi32>
    %c4_i32_451 = arith.constant 4 : i32
    %1345 = vector.broadcast %c4_i32_451 : i32 to vector<1x128xi32>
    %1346 = arith.cmpi eq, %1330, %1345 : vector<1x128xi32>
    %c28_452 = arith.constant 28 : index
    %c0_453 = arith.constant 0 : index
    %1347 = vector.load %arg4[%c28_452, %c0_453] : memref<64x128xi32, #tpu.memory_space<vmem>>, vector<1x128xi32>
    %1348 = arith.select %1346, %1347, %1344 : vector<1x128xi1>, vector<1x128xi32>
    %c2_454 = arith.constant 2 : index
    %c0_455 = arith.constant 0 : index
    %1349 = vector.load %arg3[%c2_454, %c0_455] : memref<16x128xi32, #tpu.memory_space<vmem>>, vector<1x128xi32>
    tpu.vector_store %arg3[%c2_454, %c0_455], %1348 {strides = array<i32>} : memref<16x128xi32, #tpu.memory_space<vmem>>, vector<1x128xi32>,
    %c16_456 = arith.constant 16 : index
    %c0_457 = arith.constant 0 : index
    %1350 = vector.load %arg4[%c16_456, %c0_457] : memref<64x128xi32, #tpu.memory_space<vmem>>, vector<1x128xi32>
    %c1_i32_458 = arith.constant 1 : i32
    %1351 = vector.broadcast %c1_i32_458 : i32 to vector<1x128xi32>
    %1352 = arith.cmpi eq, %1348, %1351 : vector<1x128xi32>
    %c17_459 = arith.constant 17 : index
    %c0_460 = arith.constant 0 : index
    %1353 = vector.load %arg4[%c17_459, %c0_460] : memref<64x128xi32, #tpu.memory_space<vmem>>, vector<1x128xi32>
    %1354 = arith.select %1352, %1353, %1350 : vector<1x128xi1>, vector<1x128xi32>
    %c2_i32_461 = arith.constant 2 : i32
    %1355 = vector.broadcast %c2_i32_461 : i32 to vector<1x128xi32>
    %1356 = arith.cmpi eq, %1348, %1355 : vector<1x128xi32>
    %c18_462 = arith.constant 18 : index
    %c0_463 = arith.constant 0 : index
    %1357 = vector.load %arg4[%c18_462, %c0_463] : memref<64x128xi32, #tpu.memory_space<vmem>>, vector<1x128xi32>
    %1358 = arith.select %1356, %1357, %1354 : vector<1x128xi1>, vector<1x128xi32>
    %c3_i32_464 = arith.constant 3 : i32
    %1359 = vector.broadcast %c3_i32_464 : i32 to vector<1x128xi32>
    %1360 = arith.cmpi eq, %1348, %1359 : vector<1x128xi32>
    %c19_465 = arith.constant 19 : index
    %c0_466 = arith.constant 0 : index
    %1361 = vector.load %arg4[%c19_465, %c0_466] : memref<64x128xi32, #tpu.memory_space<vmem>>, vector<1x128xi32>
    %1362 = arith.select %1360, %1361, %1358 : vector<1x128xi1>, vector<1x128xi32>
    %c4_i32_467 = arith.constant 4 : i32
    %1363 = vector.broadcast %c4_i32_467 : i32 to vector<1x128xi32>
    %1364 = arith.cmpi eq, %1348, %1363 : vector<1x128xi32>
    %c20_468 = arith.constant 20 : index
    %c0_469 = arith.constant 0 : index
    %1365 = vector.load %arg4[%c20_468, %c0_469] : memref<64x128xi32, #tpu.memory_space<vmem>>, vector<1x128xi32>
    %1366 = arith.select %1364, %1365, %1362 : vector<1x128xi1>, vector<1x128xi32>
    %c1_470 = arith.constant 1 : index
    %c0_471 = arith.constant 0 : index
    %1367 = vector.load %arg3[%c1_470, %c0_471] : memref<16x128xi32, #tpu.memory_space<vmem>>, vector<1x128xi32>
    tpu.vector_store %arg3[%c1_470, %c0_471], %1366 {strides = array<i32>} : memref<16x128xi32, #tpu.memory_space<vmem>>, vector<1x128xi32>,
    %c8_472 = arith.constant 8 : index
    %c0_473 = arith.constant 0 : index
    %1368 = vector.load %arg4[%c8_472, %c0_473] : memref<64x128xi32, #tpu.memory_space<vmem>>, vector<1x128xi32>
    %c1_i32_474 = arith.constant 1 : i32
    %1369 = vector.broadcast %c1_i32_474 : i32 to vector<1x128xi32>
    %1370 = arith.cmpi eq, %1366, %1369 : vector<1x128xi32>
    %c9_475 = arith.constant 9 : index
    %c0_476 = arith.constant 0 : index
    %1371 = vector.load %arg4[%c9_475, %c0_476] : memref<64x128xi32, #tpu.memory_space<vmem>>, vector<1x128xi32>
    %1372 = arith.select %1370, %1371, %1368 : vector<1x128xi1>, vector<1x128xi32>
    %c2_i32_477 = arith.constant 2 : i32
    %1373 = vector.broadcast %c2_i32_477 : i32 to vector<1x128xi32>
    %1374 = arith.cmpi eq, %1366, %1373 : vector<1x128xi32>
    %c10_478 = arith.constant 10 : index
    %c0_479 = arith.constant 0 : index
    %1375 = vector.load %arg4[%c10_478, %c0_479] : memref<64x128xi32, #tpu.memory_space<vmem>>, vector<1x128xi32>
    %1376 = arith.select %1374, %1375, %1372 : vector<1x128xi1>, vector<1x128xi32>
    %c3_i32_480 = arith.constant 3 : i32
    %1377 = vector.broadcast %c3_i32_480 : i32 to vector<1x128xi32>
    %1378 = arith.cmpi eq, %1366, %1377 : vector<1x128xi32>
    %c11_481 = arith.constant 11 : index
    %c0_482 = arith.constant 0 : index
    %1379 = vector.load %arg4[%c11_481, %c0_482] : memref<64x128xi32, #tpu.memory_space<vmem>>, vector<1x128xi32>
    %1380 = arith.select %1378, %1379, %1376 : vector<1x128xi1>, vector<1x128xi32>
    %c4_i32_483 = arith.constant 4 : i32
    %1381 = vector.broadcast %c4_i32_483 : i32 to vector<1x128xi32>
    %1382 = arith.cmpi eq, %1366, %1381 : vector<1x128xi32>
    %c12_484 = arith.constant 12 : index
    %c0_485 = arith.constant 0 : index
    %1383 = vector.load %arg4[%c12_484, %c0_485] : memref<64x128xi32, #tpu.memory_space<vmem>>, vector<1x128xi32>
    %1384 = arith.select %1382, %1383, %1380 : vector<1x128xi1>, vector<1x128xi32>
    %c0_486 = arith.constant 0 : index
    %c0_487 = arith.constant 0 : index
    %1385 = vector.load %arg3[%c0_486, %c0_487] : memref<16x128xi32, #tpu.memory_space<vmem>>, vector<1x128xi32>
    tpu.vector_store %arg3[%c0_486, %c0_487], %1384 {strides = array<i32>} : memref<16x128xi32, #tpu.memory_space<vmem>>, vector<1x128xi32>,
    %c0_488 = arith.constant 0 : index
    %c0_489 = arith.constant 0 : index
    %1386 = vector.load %arg4[%c0_488, %c0_489] : memref<64x128xi32, #tpu.memory_space<vmem>>, vector<1x128xi32>
    %c1_i32_490 = arith.constant 1 : i32
    %1387 = vector.broadcast %c1_i32_490 : i32 to vector<1x128xi32>
    %1388 = arith.cmpi eq, %1384, %1387 : vector<1x128xi32>
    %c1_491 = arith.constant 1 : index
    %c0_492 = arith.constant 0 : index
    %1389 = vector.load %arg4[%c1_491, %c0_492] : memref<64x128xi32, #tpu.memory_space<vmem>>, vector<1x128xi32>
    %1390 = arith.select %1388, %1389, %1386 : vector<1x128xi1>, vector<1x128xi32>
    %c2_i32_493 = arith.constant 2 : i32
    %1391 = vector.broadcast %c2_i32_493 : i32 to vector<1x128xi32>
    %1392 = arith.cmpi eq, %1384, %1391 : vector<1x128xi32>
    %c2_494 = arith.constant 2 : index
    %c0_495 = arith.constant 0 : index
    %1393 = vector.load %arg4[%c2_494, %c0_495] : memref<64x128xi32, #tpu.memory_space<vmem>>, vector<1x128xi32>
    %1394 = arith.select %1392, %1393, %1390 : vector<1x128xi1>, vector<1x128xi32>
    %c3_i32_496 = arith.constant 3 : i32
    %1395 = vector.broadcast %c3_i32_496 : i32 to vector<1x128xi32>
    %1396 = arith.cmpi eq, %1384, %1395 : vector<1x128xi32>
    %c3_497 = arith.constant 3 : index
    %c0_498 = arith.constant 0 : index
    %1397 = vector.load %arg4[%c3_497, %c0_498] : memref<64x128xi32, #tpu.memory_space<vmem>>, vector<1x128xi32>
    %1398 = arith.select %1396, %1397, %1394 : vector<1x128xi1>, vector<1x128xi32>
    %c4_i32_499 = arith.constant 4 : i32
    %1399 = vector.broadcast %c4_i32_499 : i32 to vector<1x128xi32>
    %1400 = arith.cmpi eq, %1384, %1399 : vector<1x128xi32>
    %c4_500 = arith.constant 4 : index
    %c0_501 = arith.constant 0 : index
    %1401 = vector.load %arg4[%c4_500, %c0_501] : memref<64x128xi32, #tpu.memory_space<vmem>>, vector<1x128xi32>
    %1402 = arith.select %1400, %1401, %1398 : vector<1x128xi1>, vector<1x128xi32>
    %c8_502 = arith.constant 8 : index
    %c0_503 = arith.constant 0 : index
    %1403 = vector.load %arg3[%c8_502, %c0_503] : memref<16x128xi32, #tpu.memory_space<vmem>>, vector<1x128xi32>
    tpu.vector_store %arg3[%c8_502, %c0_503], %1402 {strides = array<i32>} : memref<16x128xi32, #tpu.memory_space<vmem>>, vector<1x128xi32>,
    %1404 = tpu.bitcast %1254 : vector<1x128xf32> -> vector<1x128xi32>
    %c9_504 = arith.constant 9 : index
    %c0_505 = arith.constant 0 : index
    %1405 = vector.load %arg3[%c9_504, %c0_505] : memref<16x128xi32, #tpu.memory_space<vmem>>, vector<1x128xi32>
    tpu.vector_store %arg3[%c9_504, %c0_505], %1404 {strides = array<i32>} : memref<16x128xi32, #tpu.memory_space<vmem>>, vector<1x128xi32>,
    return
  }
  func.func @transform_0(%arg0: i32) -> (i32, i32) {
    %c0_i32 = arith.constant 0 : i32
    %c0_i32_0 = arith.constant 0 : i32
    return %c0_i32, %arg0 : i32, i32
  }
  func.func @transform_1(%arg0: i32) -> (i32, i32) {
    %c0_i32 = arith.constant 0 : i32
    %c0_i32_0 = arith.constant 0 : i32
    %c0_i32_1 = arith.constant 0 : i32
    return %c0_i32, %c0_i32_0 : i32, i32
  }
  func.func @transform_2(%arg0: i32) -> (i32, i32) {
    %c0_i32 = arith.constant 0 : i32
    %c0_i32_0 = arith.constant 0 : i32
    return %c0_i32, %arg0 : i32, i32
  }
}

</mosaic_0001>

<llo_original>
// kernel: decode.1
$region0: #{decode.1}
  #allocation0 [shape = 'u32[]', space=smem, size = 0x4, offset = 0x4, fixed_abs, tag = 'smem constant byte address 0x4 - core index']
  #allocation1 [shape = 'u32[72,128]{1,0:T(1,128)}', space=vmem, size = 0x9000, scoped, tag = 'internal scratch']
  #allocation2 [shape = 's32[64,128]{1,0:T(8,128)}', space=vmem, size = 0x8000, scoped, tag = 'scratch operand']
  %s0 = inlined_call_operand.vmem [shape: f32[64,256], index: 0, kind: input, shape index: {}]
  %s1 = inlined_call_operand.vmem [shape: f32[5,5], index: 1, kind: input, shape index: {}]
  %s2 = inlined_call_operand.vmem [shape: s32[16,256], index: 2, kind: output, shape index: {}]
  %s3 = sld [smem:[#allocation0]]
  $region117: #{decode.1} parent=0
    _
  %s5 = ssub.s32 1, %s3
  %s6 = scalar_select 0, %s5, %s3
  $region1: #{decode.1} parent=0
    #allocation3 [shape = 'u8[65536]{0}', space=vmem, size = 0x10000, scoped, tag = 'input window, operand 0']
    #allocation4 [shape = 'u8[4096]{0}', space=smem, size = 0x1000, scoped, tag = 'input window, operand 1, single buffered']
    #allocation5 [shape = 's32[2]{0}', space=sflag, size = 0x8, scoped, tag = 'scoped memory for decode.1']
    #allocation6 [shape = 'u8[16384]{0}', space=vmem, size = 0x4000, scoped, tag = 'output window, operand 0']
    %7 = vsyncpa [#allocation5], 0
    loop: start=0, step=1, limit=4
    $region2: #{decode.1} parent=1 // loop_pre_header
      _
    $region3: #{decode.1} parent=1 // loop_header
      %s9 = sphi 0, %s13
      %p10 = scmp.ge.s32.totalorder %s9, 4
      %s19 = sphi 0, %s21
      %s22 = sphi 0, %s19
      %s23 = sphi 0, %s22
      %s39 = sphi 0, %s23
      %s43 = sphi 0, %s43
      %s45 = sphi 0, %s43
      %s46 = sphi 0, %s45
      %s60 = sphi 0, %s46
      %s66 = sphi 0, %s68
      %s69 = sphi 0, %s66
      %s70 = sphi 0, %s69
      %s86 = sphi 0, %s70
    $region4: #{decode.1} parent=1 // loop_header_branch
      %12 = sbr.rel (%p10) target = $region8
    $region5: #{decode.1} parent=1 // loop_body
      %s14 = ssub.s32 %s9, 1
      %s15 = ssub.s32 %s9, 2
      %s16 = sadd.s32 %s9, 1
      %s17 = ssub.s32 %s9, %s16
      %p18 = scmp.eq.s32.totalorder %s17, 0
      %s20 = sadd.s32 %s19, 1
      %s21 = scalar_select %p18, %s19, %s20
      %p24 = pneg %p18
      %p25 = scmp.eq.s32.totalorder %s9, 1
      %p26 = por %p24, %p25
      %p27 = scmp.ne.s32.totalorder %s19, %s22
      %p28 = scmp.eq.s32.totalorder %s9, 0
      %p29 = por %p27, %p28
      %p30 = scmp.ne.s32.totalorder %s19, %s22
      %p31 = scmp.eq.s32.totalorder %s14, 1
      %p32 = por %p30, %p31
      %p33 = scmp.ne.s32.totalorder %s22, %s23
      %p34 = scmp.eq.s32.totalorder %s14, 0
      %p35 = por %p33, %p34
      %p36 = scmp.ne.s32.totalorder %s22, %s23
      %p37 = scmp.eq.s32.totalorder %s15, 1
      %p38 = por %p36, %p37
      %p40 = scmp.ne.s32.totalorder %s23, %s39
      %p41 = scmp.eq.s32.totalorder %s15, 0
      %p42 = por %p40, %p41
      %s44 = sadd.s32 %s43, 1
      %p47 = scmp.eq.s32.totalorder %s9, 1
      %p48 = scmp.ne.s32.totalorder %s43, %s45
      %p49 = scmp.eq.s32.totalorder %s9, 0
      %p50 = por %p48, %p49
      %p51 = scmp.ne.s32.totalorder %s43, %s45
      %p52 = scmp.eq.s32.totalorder %s14, 1
      %p53 = por %p51, %p52
      %p54 = scmp.ne.s32.totalorder %s45, %s46
      %p55 = scmp.eq.s32.totalorder %s14, 0
      %p56 = por %p54, %p55
      %p57 = scmp.ne.s32.totalorder %s45, %s46
      %p58 = scmp.eq.s32.totalorder %s15, 1
      %p59 = por %p57, %p58
      %p61 = scmp.ne.s32.totalorder %s46, %s60
      %p62 = scmp.eq.s32.totalorder %s15, 0
      %p63 = por %p61, %p62
      %s64 = ssub.s32 %s9, %s16
      %p65 = scmp.eq.s32.totalorder %s64, 0
      %s67 = sadd.s32 %s66, 1
      %s68 = scalar_select %p65, %s66, %s67
      %p71 = pneg %p65
      %p72 = scmp.eq.s32.totalorder %s9, 1
      %p73 = por %p71, %p72
      %p74 = scmp.ne.s32.totalorder %s66, %s69
      %p75 = scmp.eq.s32.totalorder %s9, 0
      %p76 = por %p74, %p75
      %p77 = scmp.ne.s32.totalorder %s66, %s69
      %p78 = scmp.eq.s32.totalorder %s14, 1
      %p79 = por %p77, %p78
      %p80 = scmp.ne.s32.totalorder %s69, %s70
      %p81 = scmp.eq.s32.totalorder %s14, 0
      %p82 = por %p80, %p81
      %p83 = scmp.ne.s32.totalorder %s69, %s70
      %p84 = scmp.eq.s32.totalorder %s15, 1
      %p85 = por %p83, %p84
      %p87 = scmp.ne.s32.totalorder %s70, %s86
      %p88 = scmp.eq.s32.totalorder %s15, 0
      %p89 = por %p87, %p88
      %p90 = scmp.le.s32.totalorder 1, %s9
      %p91 = scmp.lt.s32.totalorder %s9, 3
      %p92 = pnand %p90, %p91
      %p93 = pneg %p92
      // Predicated region
      $region9: #{decode.1} parent=5 // pred_check
        _
      $region10: #{decode.1} parent=5 // pred_check_branch
        %95 = sbr.rel (%p92) target = $region12
      $region11: #{decode.1} parent=5 // pred_region
        %s96 = ssub.s32 %s9, 1
        // Predicated region
        $region13: #{decode.1} parent=11 // pred_check
          %p97 = pneg %p56
        $region14: #{decode.1} parent=11 // pred_check_branch
          %99 = sbr.rel (%p97) target = $region16
        $region15: #{decode.1} parent=11 // pred_region
          %101 = vsyncadd [#allocation5], 0
          %s103 = sshll.u32 %s1, 4
          %s104 = int_to_ptr.vmem [resolvable:$true] %s103
          %106 = dma.vmem_to_smem %s104, 128, [#allocation4], [#allocation5]
        $region16: #{decode.1} parent=11 // pred_fallthru
          _
      $region12: #{decode.1} parent=5 // pred_fallthru
        _
      %p107 = scmp.lt.s32.totalorder %s9, 2
      // Predicated region
      $region17: #{decode.1} parent=5 // pred_check
        %p108 = pneg %p107
      $region18: #{decode.1} parent=5 // pred_check_branch
        %110 = sbr.rel (%p108) target = $region20
      $region19: #{decode.1} parent=5 // pred_region
        // Predicated region
        $region21: #{decode.1} parent=19 // pred_check
          %p111 = pneg %p29
        $region22: #{decode.1} parent=19 // pred_check_branch
          %113 = sbr.rel (%p111) target = $region24
        $region23: #{decode.1} parent=19 // pred_region
          %s114 = sand.u32 %s19, 1
          %s115 = sand.u32 %s19, 1
          %s116 = smul.addr %s115, 64
          %s117 = scalar_lea.vmem [#allocation3], %s116
          %s118 = smul.addr %s9, 8
          %s119 = scalar_lea.vmem %s0, %s118
          // Predicated region
          $region25: #{decode.1} parent=23 // pred_check
            _
          $region26: #{decode.1} parent=23 // pred_check_branch
            %121 = sbr.rel (0) target = $region28
          $region27: #{decode.1} parent=23 // pred_region
            // Predicated region
            $region29: #{decode.1} parent=27 // pred_check
              _
            $region30: #{decode.1} parent=27 // pred_check_branch
              %123 = sbr.rel (0) target = $region32
            $region31: #{decode.1} parent=27 // pred_region
              // Predicated region
              $region44: #{decode.1} parent=31 // pred_check
                _
              $region45: #{decode.1} parent=31 // pred_check_branch
                %153 = sbr.rel (0) target = $region47
              $region46: #{decode.1} parent=31 // pred_region
                loop: start=0, step=1, limit=1
                $region48: #{decode.1} parent=46 // loop_pre_header
                  _
                $region49: #{decode.1} parent=46 // loop_header
                  %s155 = sphi 0, %s159
                  %p156 = scmp.ge.s32.totalorder %s155, 1
                  %s160 = sphi %s119, %s119
                  %s161 = sphi %s117, %s117
                $region50: #{decode.1} parent=46 // loop_header_branch
                  %158 = sbr.rel (%p156) target = $region54
                $region51: #{decode.1} parent=46 // loop_body
                  %v162 = vld [vmem:[%s160] sm:$0xff]
                  %163 = vst [vmem:[%s161] sm:$0xff] %v162
                  %v164 = vld [vmem:[%s160 + $0x10] sm:$0xff]
                  %165 = vst [vmem:[%s161 + $0x8] sm:$0xff] %v164
                  %v166 = vld [vmem:[%s160 + $0x20] sm:$0xff]
                  %167 = vst [vmem:[%s161 + $0x10] sm:$0xff] %v166
                  %v168 = vld [vmem:[%s160 + $0x30] sm:$0xff]
                  %169 = vst [vmem:[%s161 + $0x18] sm:$0xff] %v168
                  %v170 = vld [vmem:[%s160 + $0x40] sm:$0xff]
                  %171 = vst [vmem:[%s161 + $0x20] sm:$0xff] %v170
                  %v172 = vld [vmem:[%s160 + $0x50] sm:$0xff]
                  %173 = vst [vmem:[%s161 + $0x28] sm:$0xff] %v172
                  %v174 = vld [vmem:[%s160 + $0x60] sm:$0xff]
                  %175 = vst [vmem:[%s161 + $0x30] sm:$0xff] %v174
                  %v176 = vld [vmem:[%s160 + $0x70] sm:$0xff]
                  %177 = vst [vmem:[%s161 + $0x38] sm:$0xff] %v176
                $region52: #{decode.1} parent=46 // loop_footer
                  %s159 = sadd.s32 1, %s155
                $region53: #{decode.1} parent=46 // loop_footer_branch
                  %154 = sbr.rel target = $region49
                $region54: #{decode.1} parent=46 // loop_exit
                  _
              $region47: #{decode.1} parent=31 // pred_fallthru
                _
              // Predicated region
              $region55: #{decode.1} parent=31 // pred_check
                _
              $region56: #{decode.1} parent=31 // pred_check_branch
                %179 = sbr.rel target = $region58
              $region57: #{decode.1} parent=31 // pred_region
                _
              $region58: #{decode.1} parent=31 // pred_fallthru
                _
            $region32: #{decode.1} parent=27 // pred_fallthru
              _
            // Predicated region
            $region33: #{decode.1} parent=27 // pred_check
              _
            $region34: #{decode.1} parent=27 // pred_check_branch
              %125 = sbr.rel target = $region36
            $region35: #{decode.1} parent=27 // pred_region
              %s127 = ssub.s32 256, 1
              loop: start=0, step=1, limit=1
              $region37: #{decode.1} parent=35 // loop_pre_header
                _
              $region38: #{decode.1} parent=35 // loop_header
                %s129 = sphi 0, %s133
                %p130 = scmp.ge.s32.totalorder %s129, 1
                %s134 = sphi %s119, %s119
                %s135 = sphi %s117, %s117
              $region39: #{decode.1} parent=35 // loop_header_branch
                %132 = sbr.rel (%p130) target = $region43
              $region40: #{decode.1} parent=35 // loop_body
                %v136 = vld [vmem:[%s134] sm:%s127]
                %137 = vst [vmem:[%s135] sm:%s127] %v136
                %v138 = vld [vmem:[%s134 + $0x10] sm:%s127]
                %139 = vst [vmem:[%s135 + $0x8] sm:%s127] %v138
                %v140 = vld [vmem:[%s134 + $0x20] sm:%s127]
                %141 = vst [vmem:[%s135 + $0x10] sm:%s127] %v140
                %v142 = vld [vmem:[%s134 + $0x30] sm:%s127]
                %143 = vst [vmem:[%s135 + $0x18] sm:%s127] %v142
                %v144 = vld [vmem:[%s134 + $0x40] sm:%s127]
                %145 = vst [vmem:[%s135 + $0x20] sm:%s127] %v144
                %v146 = vld [vmem:[%s134 + $0x50] sm:%s127]
                %147 = vst [vmem:[%s135 + $0x28] sm:%s127] %v146
                %v148 = vld [vmem:[%s134 + $0x60] sm:%s127]
                %149 = vst [vmem:[%s135 + $0x30] sm:%s127] %v148
                %v150 = vld [vmem:[%s134 + $0x70] sm:%s127]
                %151 = vst [vmem:[%s135 + $0x38] sm:%s127] %v150
              $region41: #{decode.1} parent=35 // loop_footer
                %s133 = sadd.s32 1, %s129
              $region42: #{decode.1} parent=35 // loop_footer_branch
                %128 = sbr.rel target = $region38
              $region43: #{decode.1} parent=35 // loop_exit
                _
            $region36: #{decode.1} parent=27 // pred_fallthru
              _
          $region28: #{decode.1} parent=23 // pred_fallthru
            _
          %180 = vnop
        $region24: #{decode.1} parent=19 // pred_fallthru
          _
      $region20: #{decode.1} parent=5 // pred_fallthru
        _
      %p181 = scmp.le.s32.totalorder 1, %s9
      %p182 = scmp.lt.s32.totalorder %s9, 3
      %p183 = pnand %p181, %p182
      %p184 = pneg %p183
      // Predicated region
      $region59: #{decode.1} parent=5 // pred_check
        _
      $region60: #{decode.1} parent=5 // pred_check_branch
        %186 = sbr.rel (%p183) target = $region62
      $region61: #{decode.1} parent=5 // pred_region
        %s187 = ssub.s32 %s9, 1
        %s188 = sand.u32 %s22, 1
        %s189 = sand.u32 %s22, 1
        %s190 = smul.addr %s189, 64
        %s191 = scalar_lea.vmem [#allocation3], %s190
        // Predicated region
        $region63: #{decode.1} parent=61 // pred_check
          %p192 = pneg %p35
        $region64: #{decode.1} parent=61 // pred_check_branch
          %194 = sbr.rel (%p192) target = $region66
        $region65: #{decode.1} parent=61 // pred_region
          _
        $region66: #{decode.1} parent=61 // pred_fallthru
          _
        // Predicated region
        $region67: #{decode.1} parent=61 // pred_check
          %p195 = pneg %p56
        $region68: #{decode.1} parent=61 // pred_check_branch
          %197 = sbr.rel (%p195) target = $region70
        $region69: #{decode.1} parent=61 // pred_region
          %199 = dma.done [#allocation5], 128
        $region70: #{decode.1} parent=61 // pred_fallthru
          _
        %200 = sfence
        %s201 = sand.u32 %s22, 1
        %s202 = sand.u32 %s22, 1
        %s203 = smul.addr %s202, 64
        %s204 = scalar_lea.vmem [#allocation3], %s203
        %p205 = pneg %p35
        %p206 = pneg %p32
        %p207 = pneg %p56
        %p208 = pneg %p53
        %p209 = pneg %p82
        %p210 = pneg %p79
        %s211 = sand.u32 %s69, 1
        %s212 = sand.u32 %s69, 1
        %s213 = smul.addr %s212, 16
        %s214 = scalar_lea.vmem [#allocation6], %s213
        %s215 = sld [smem:[#allocation4]]
        %s216 = sld [smem:[#allocation4 + $0x1]]
        %s217 = sld [smem:[#allocation4 + $0x2]]
        %s218 = sld [smem:[#allocation4 + $0x3]]
        %s219 = sld [smem:[#allocation4 + $0x4]]
        %s220 = sld [smem:[#allocation4 + $0x80]]
        %s221 = sld [smem:[#allocation4 + $0x81]]
        %s222 = sld [smem:[#allocation4 + $0x82]]
        %s223 = sld [smem:[#allocation4 + $0x83]]
        %s224 = sld [smem:[#allocation4 + $0x84]]
        %s225 = sld [smem:[#allocation4 + $0x100]]
        %s226 = sld [smem:[#allocation4 + $0x101]]
        %s227 = sld [smem:[#allocation4 + $0x102]]
        %s228 = sld [smem:[#allocation4 + $0x103]]
        %s229 = sld [smem:[#allocation4 + $0x104]]
        %s230 = sld [smem:[#allocation4 + $0x180]]
        %s231 = sld [smem:[#allocation4 + $0x181]]
        %s232 = sld [smem:[#allocation4 + $0x182]]
        %s233 = sld [smem:[#allocation4 + $0x183]]
        %s234 = sld [smem:[#allocation4 + $0x184]]
        %s235 = sld [smem:[#allocation4 + $0x200]]
        %s236 = sld [smem:[#allocation4 + $0x201]]
        %s237 = sld [smem:[#allocation4 + $0x202]]
        %s238 = sld [smem:[#allocation4 + $0x203]]
        %s239 = sld [smem:[#allocation4 + $0x204]]
        %v240 = vstv %s215
        %v241 = vadd.f32 %v240, -10000.0
        %v242 = vstv %s216
        %v243 = vadd.f32 %v242, -10000.0
        %vm244 = vcmp.gt.f32.partialorder %v243, %v241
        %v245 = vsel %vm244, %v243, %v241
        %v246 = vsel %vm244, 1, 0
        %v247 = vstv %s217
        %v248 = vadd.f32 %v247, -10000.0
        %vm249 = vcmp.gt.f32.partialorder %v248, %v245
        %v250 = vsel %vm249, %v248, %v245
        %v251 = vsel %vm249, 2, %v246
        %v252 = vstv %s218
        %v253 = vadd.f32 %v252, 0.0
        %vm254 = vcmp.gt.f32.partialorder %v253, %v250
        %v255 = vsel %vm254, %v253, %v250
        %v256 = vsel %vm254, 3, %v251
        %v257 = vstv %s219
        %v258 = vadd.f32 %v257, -10000.0
        %vm259 = vcmp.gt.f32.partialorder %v258, %v255
        %v260 = vsel %vm259, %v258, %v255
        %v261 = vsel %vm259, 4, %v256
        %262 = vst [vmem:[#allocation2] sm:$0x1] %v261
        %v263 = vld [vmem:[%s191] sm:$0x1]
        %v264 = vadd.f32 %v260, %v263
        %v265 = vstv %s220
        %v266 = vadd.f32 %v265, -10000.0
        %v267 = vstv %s221
        %v268 = vadd.f32 %v267, -10000.0
        %vm269 = vcmp.gt.f32.partialorder %v268, %v266
        %v270 = vsel %vm269, %v268, %v266
        %v271 = vsel %vm269, 1, 0
        %v272 = vstv %s222
        %v273 = vadd.f32 %v272, -10000.0
        %vm274 = vcmp.gt.f32.partialorder %v273, %v270
        %v275 = vsel %vm274, %v273, %v270
        %v276 = vsel %vm274, 2, %v271
        %v277 = vstv %s223
        %v278 = vadd.f32 %v277, 0.0
        %vm279 = vcmp.gt.f32.partialorder %v278, %v275
        %v280 = vsel %vm279, %v278, %v275
        %v281 = vsel %vm279, 3, %v276
        %v282 = vstv %s224
        %v283 = vadd.f32 %v282, -10000.0
        %vm284 = vcmp.gt.f32.partialorder %v283, %v280
        %v285 = vsel %vm284, %v283, %v280
        %v286 = vsel %vm284, 4, %v281
        %287 = vst [vmem:[#allocation2 + $0x1] sm:$0x1] %v286
        %v288 = vld [vmem:[%s191 + $0x1] sm:$0x1]
        %v289 = vadd.f32 %v285, %v288
        %v290 = vstv %s225
        %v291 = vadd.f32 %v290, -10000.0
        %v292 = vstv %s226
        %v293 = vadd.f32 %v292, -10000.0
        %vm294 = vcmp.gt.f32.partialorder %v293, %v291
        %v295 = vsel %vm294, %v293, %v291
        %v296 = vsel %vm294, 1, 0
        %v297 = vstv %s227
        %v298 = vadd.f32 %v297, -10000.0
        %vm299 = vcmp.gt.f32.partialorder %v298, %v295
        %v300 = vsel %vm299, %v298, %v295
        %v301 = vsel %vm299, 2, %v296
        %v302 = vstv %s228
        %v303 = vadd.f32 %v302, 0.0
        %vm304 = vcmp.gt.f32.partialorder %v303, %v300
        %v305 = vsel %vm304, %v303, %v300
        %v306 = vsel %vm304, 3, %v301
        %v307 = vstv %s229
        %v308 = vadd.f32 %v307, -10000.0
        %vm309 = vcmp.gt.f32.partialorder %v308, %v305
        %v310 = vsel %vm309, %v308, %v305
        %v311 = vsel %vm309, 4, %v306
        %312 = vst [vmem:[#allocation2 + $0x2] sm:$0x1] %v311
        %v313 = vld [vmem:[%s191 + $0x2] sm:$0x1]
        %v314 = vadd.f32 %v310, %v313
        %v315 = vstv %s230
        %v316 = vadd.f32 %v315, -10000.0
        %v317 = vstv %s231
        %v318 = vadd.f32 %v317, -10000.0
        %vm319 = vcmp.gt.f32.partialorder %v318, %v316
        %v320 = vsel %vm319, %v318, %v316
        %v321 = vsel %vm319, 1, 0
        %v322 = vstv %s232
        %v323 = vadd.f32 %v322, -10000.0
        %vm324 = vcmp.gt.f32.partialorder %v323, %v320
        %v325 = vsel %vm324, %v323, %v320
        %v326 = vsel %vm324, 2, %v321
        %v327 = vstv %s233
        %v328 = vadd.f32 %v327, 0.0
        %vm329 = vcmp.gt.f32.partialorder %v328, %v325
        %v330 = vsel %vm329, %v328, %v325
        %v331 = vsel %vm329, 3, %v326
        %v332 = vstv %s234
        %v333 = vadd.f32 %v332, -10000.0
        %vm334 = vcmp.gt.f32.partialorder %v333, %v330
        %v335 = vsel %vm334, %v333, %v330
        %v336 = vsel %vm334, 4, %v331
        %337 = vst [vmem:[#allocation2 + $0x3] sm:$0x1] %v336
        %v338 = vld [vmem:[%s191 + $0x3] sm:$0x1]
        %v339 = vadd.f32 %v335, %v338
        %v340 = vstv %s235
        %v341 = vadd.f32 %v340, -10000.0
        %v342 = vstv %s236
        %v343 = vadd.f32 %v342, -10000.0
        %vm344 = vcmp.gt.f32.partialorder %v343, %v341
        %v345 = vsel %vm344, %v343, %v341
        %v346 = vsel %vm344, 1, 0
        %v347 = vstv %s237
        %v348 = vadd.f32 %v347, -10000.0
        %vm349 = vcmp.gt.f32.partialorder %v348, %v345
        %v350 = vsel %vm349, %v348, %v345
        %v351 = vsel %vm349, 2, %v346
        %v352 = vstv %s238
        %v353 = vadd.f32 %v352, 0.0
        %vm354 = vcmp.gt.f32.partialorder %v353, %v350
        %v355 = vsel %vm354, %v353, %v350
        %v356 = vsel %vm354, 3, %v351
        %v357 = vstv %s239
        %v358 = vadd.f32 %v357, -10000.0
        %vm359 = vcmp.gt.f32.partialorder %v358, %v355
        %v360 = vsel %vm359, %v358, %v355
        %v361 = vsel %vm359, 4, %v356
        %362 = vst [vmem:[#allocation2 + $0x4] sm:$0x1] %v361
        %v363 = vld [vmem:[%s191 + $0x4] sm:$0x1]
        %v364 = vadd.f32 %v360, %v363
        %v365 = vadd.f32 %v264, %v240
        %v366 = vadd.f32 %v289, %v242
        %vm367 = vcmp.gt.f32.partialorder %v366, %v365
        %v368 = vsel %vm367, %v366, %v365
        %v369 = vsel %vm367, 1, 0
        %v370 = vadd.f32 %v314, %v247
        %vm371 = vcmp.gt.f32.partialorder %v370, %v368
        %v372 = vsel %vm371, %v370, %v368
        %v373 = vsel %vm371, 2, %v369
        %v374 = vadd.f32 %v339, %v252
        %vm375 = vcmp.gt.f32.partialorder %v374, %v372
        %v376 = vsel %vm375, %v374, %v372
        %v377 = vsel %vm375, 3, %v373
        %v378 = vadd.f32 %v364, %v257
        %vm379 = vcmp.gt.f32.partialorder %v378, %v376
        %v380 = vsel %vm379, %v378, %v376
        %v381 = vsel %vm379, 4, %v377
        %382 = vst [vmem:[#allocation2 + $0x8] sm:$0x1] %v381
        %v383 = vld [vmem:[%s191 + $0x8] sm:$0x1]
        %v384 = vadd.f32 %v380, %v383
        %v385 = vadd.f32 %v264, %v265
        %v386 = vadd.f32 %v289, %v267
        %vm387 = vcmp.gt.f32.partialorder %v386, %v385
        %v388 = vsel %vm387, %v386, %v385
        %v389 = vsel %vm387, 1, 0
        %v390 = vadd.f32 %v314, %v272
        %vm391 = vcmp.gt.f32.partialorder %v390, %v388
        %v392 = vsel %vm391, %v390, %v388
        %v393 = vsel %vm391, 2, %v389
        %v394 = vadd.f32 %v339, %v277
        %vm395 = vcmp.gt.f32.partialorder %v394, %v392
        %v396 = vsel %vm395, %v394, %v392
        %v397 = vsel %vm395, 3, %v393
        %v398 = vadd.f32 %v364, %v282
        %vm399 = vcmp.gt.f32.partialorder %v398, %v396
        %v400 = vsel %vm399, %v398, %v396
        %v401 = vsel %vm399, 4, %v397
        %402 = vst [vmem:[#allocation2 + $0x9] sm:$0x1] %v401
        %v403 = vld [vmem:[%s191 + $0x9] sm:$0x1]
        %v404 = vadd.f32 %v400, %v403
        %v405 = vadd.f32 %v264, %v290
        %v406 = vadd.f32 %v289, %v292
        %vm407 = vcmp.gt.f32.partialorder %v406, %v405
        %v408 = vsel %vm407, %v406, %v405
        %v409 = vsel %vm407, 1, 0
        %v410 = vadd.f32 %v314, %v297
        %vm411 = vcmp.gt.f32.partialorder %v410, %v408
        %v412 = vsel %vm411, %v410, %v408
        %v413 = vsel %vm411, 2, %v409
        %v414 = vadd.f32 %v339, %v302
        %vm415 = vcmp.gt.f32.partialorder %v414, %v412
        %v416 = vsel %vm415, %v414, %v412
        %v417 = vsel %vm415, 3, %v413
        %v418 = vadd.f32 %v364, %v307
        %vm419 = vcmp.gt.f32.partialorder %v418, %v416
        %v420 = vsel %vm419, %v418, %v416
        %v421 = vsel %vm419, 4, %v417
        %422 = vst [vmem:[#allocation2 + $0xa] sm:$0x1] %v421
        %v423 = vld [vmem:[%s191 + $0xa] sm:$0x1]
        %v424 = vadd.f32 %v420, %v423
        %v425 = vadd.f32 %v264, %v315
        %v426 = vadd.f32 %v289, %v317
        %vm427 = vcmp.gt.f32.partialorder %v426, %v425
        %v428 = vsel %vm427, %v426, %v425
        %v429 = vsel %vm427, 1, 0
        %v430 = vadd.f32 %v314, %v322
        %vm431 = vcmp.gt.f32.partialorder %v430, %v428
        %v432 = vsel %vm431, %v430, %v428
        %v433 = vsel %vm431, 2, %v429
        %v434 = vadd.f32 %v339, %v327
        %vm435 = vcmp.gt.f32.partialorder %v434, %v432
        %v436 = vsel %vm435, %v434, %v432
        %v437 = vsel %vm435, 3, %v433
        %v438 = vadd.f32 %v364, %v332
        %vm439 = vcmp.gt.f32.partialorder %v438, %v436
        %v440 = vsel %vm439, %v438, %v436
        %v441 = vsel %vm439, 4, %v437
        %442 = vst [vmem:[#allocation2 + $0xb] sm:$0x1] %v441
        %v443 = vld [vmem:[%s191 + $0xb] sm:$0x1]
        %v444 = vadd.f32 %v440, %v443
        %v445 = vadd.f32 %v264, %v340
        %v446 = vadd.f32 %v289, %v342
        %vm447 = vcmp.gt.f32.partialorder %v446, %v445
        %v448 = vsel %vm447, %v446, %v445
        %v449 = vsel %vm447, 1, 0
        %v450 = vadd.f32 %v314, %v347
        %vm451 = vcmp.gt.f32.partialorder %v450, %v448
        %v452 = vsel %vm451, %v450, %v448
        %v453 = vsel %vm451, 2, %v449
        %v454 = vadd.f32 %v339, %v352
        %vm455 = vcmp.gt.f32.partialorder %v454, %v452
        %v456 = vsel %vm455, %v454, %v452
        %v457 = vsel %vm455, 3, %v453
        %v458 = vadd.f32 %v364, %v357
        %vm459 = vcmp.gt.f32.partialorder %v458, %v456
        %v460 = vsel %vm459, %v458, %v456
        %v461 = vsel %vm459, 4, %v457
        %462 = vst [vmem:[#allocation2 + $0xc] sm:$0x1] %v461
        %v463 = vld [vmem:[%s191 + $0xc] sm:$0x1]
        %v464 = vadd.f32 %v460, %v463
        %v465 = vadd.f32 %v384, %v240
        %v466 = vadd.f32 %v404, %v242
        %vm467 = vcmp.gt.f32.partialorder %v466, %v465
        %v468 = vsel %vm467, %v466, %v465
        %v469 = vsel %vm467, 1, 0
        %v470 = vadd.f32 %v424, %v247
        %vm471 = vcmp.gt.f32.partialorder %v470, %v468
        %v472 = vsel %vm471, %v470, %v468
        %v473 = vsel %vm471, 2, %v469
        %v474 = vadd.f32 %v444, %v252
        %vm475 = vcmp.gt.f32.partialorder %v474, %v472
        %v476 = vsel %vm475, %v474, %v472
        %v477 = vsel %vm475, 3, %v473
        %v478 = vadd.f32 %v464, %v257
        %vm479 = vcmp.gt.f32.partialorder %v478, %v476
        %v480 = vsel %vm479, %v478, %v476
        %v481 = vsel %vm479, 4, %v477
        %482 = vst [vmem:[#allocation2 + $0x10] sm:$0x1] %v481
        %v483 = vld [vmem:[%s191 + $0x10] sm:$0x1]
        %v484 = vadd.f32 %v480, %v483
        %v485 = vadd.f32 %v384, %v265
        %v486 = vadd.f32 %v404, %v267
        %vm487 = vcmp.gt.f32.partialorder %v486, %v485
        %v488 = vsel %vm487, %v486, %v485
        %v489 = vsel %vm487, 1, 0
        %v490 = vadd.f32 %v424, %v272
        %vm491 = vcmp.gt.f32.partialorder %v490, %v488
        %v492 = vsel %vm491, %v490, %v488
        %v493 = vsel %vm491, 2, %v489
        %v494 = vadd.f32 %v444, %v277
        %vm495 = vcmp.gt.f32.partialorder %v494, %v492
        %v496 = vsel %vm495, %v494, %v492
        %v497 = vsel %vm495, 3, %v493
        %v498 = vadd.f32 %v464, %v282
        %vm499 = vcmp.gt.f32.partialorder %v498, %v496
        %v500 = vsel %vm499, %v498, %v496
        %v501 = vsel %vm499, 4, %v497
        %502 = vst [vmem:[#allocation2 + $0x11] sm:$0x1] %v501
        %v503 = vld [vmem:[%s191 + $0x11] sm:$0x1]
        %v504 = vadd.f32 %v500, %v503
        %v505 = vadd.f32 %v384, %v290
        %v506 = vadd.f32 %v404, %v292
        %vm507 = vcmp.gt.f32.partialorder %v506, %v505
        %v508 = vsel %vm507, %v506, %v505
        %v509 = vsel %vm507, 1, 0
        %v510 = vadd.f32 %v424, %v297
        %vm511 = vcmp.gt.f32.partialorder %v510, %v508
        %v512 = vsel %vm511, %v510, %v508
        %v513 = vsel %vm511, 2, %v509
        %v514 = vadd.f32 %v444, %v302
        %vm515 = vcmp.gt.f32.partialorder %v514, %v512
        %v516 = vsel %vm515, %v514, %v512
        %v517 = vsel %vm515, 3, %v513
        %v518 = vadd.f32 %v464, %v307
        %vm519 = vcmp.gt.f32.partialorder %v518, %v516
        %v520 = vsel %vm519, %v518, %v516
        %v521 = vsel %vm519, 4, %v517
        %522 = vst [vmem:[#allocation2 + $0x12] sm:$0x1] %v521
        %v523 = vld [vmem:[%s191 + $0x12] sm:$0x1]
        %v524 = vadd.f32 %v520, %v523
        %v525 = vadd.f32 %v384, %v315
        %v526 = vadd.f32 %v404, %v317
        %vm527 = vcmp.gt.f32.partialorder %v526, %v525
        %v528 = vsel %vm527, %v526, %v525
        %v529 = vsel %vm527, 1, 0
        %v530 = vadd.f32 %v424, %v322
        %vm531 = vcmp.gt.f32.partialorder %v530, %v528
        %v532 = vsel %vm531, %v530, %v528
        %v533 = vsel %vm531, 2, %v529
        %v534 = vadd.f32 %v444, %v327
        %vm535 = vcmp.gt.f32.partialorder %v534, %v532
        %v536 = vsel %vm535, %v534, %v532
        %v537 = vsel %vm535, 3, %v533
        %v538 = vadd.f32 %v464, %v332
        %vm539 = vcmp.gt.f32.partialorder %v538, %v536
        %v540 = vsel %vm539, %v538, %v536
        %v541 = vsel %vm539, 4, %v537
        %542 = vst [vmem:[#allocation2 + $0x13] sm:$0x1] %v541
        %v543 = vld [vmem:[%s191 + $0x13] sm:$0x1]
        %v544 = vadd.f32 %v540, %v543
        %v545 = vadd.f32 %v384, %v340
        %v546 = vadd.f32 %v404, %v342
        %vm547 = vcmp.gt.f32.partialorder %v546, %v545
        %v548 = vsel %vm547, %v546, %v545
        %v549 = vsel %vm547, 1, 0
        %v550 = vadd.f32 %v424, %v347
        %vm551 = vcmp.gt.f32.partialorder %v550, %v548
        %v552 = vsel %vm551, %v550, %v548
        %v553 = vsel %vm551, 2, %v549
        %v554 = vadd.f32 %v444, %v352
        %vm555 = vcmp.gt.f32.partialorder %v554, %v552
        %v556 = vsel %vm555, %v554, %v552
        %v557 = vsel %vm555, 3, %v553
        %v558 = vadd.f32 %v464, %v357
        %vm559 = vcmp.gt.f32.partialorder %v558, %v556
        %v560 = vsel %vm559, %v558, %v556
        %v561 = vsel %vm559, 4, %v557
        %562 = vst [vmem:[#allocation2 + $0x14] sm:$0x1] %v561
        %v563 = vld [vmem:[%s191 + $0x14] sm:$0x1]
        %v564 = vadd.f32 %v560, %v563
        %v565 = vadd.f32 %v484, %v240
        %v566 = vadd.f32 %v504, %v242
        %vm567 = vcmp.gt.f32.partialorder %v566, %v565
        %v568 = vsel %vm567, %v566, %v565
        %v569 = vsel %vm567, 1, 0
        %v570 = vadd.f32 %v524, %v247
        %vm571 = vcmp.gt.f32.partialorder %v570, %v568
        %v572 = vsel %vm571, %v570, %v568
        %v573 = vsel %vm571, 2, %v569
        %v574 = vadd.f32 %v544, %v252
        %vm575 = vcmp.gt.f32.partialorder %v574, %v572
        %v576 = vsel %vm575, %v574, %v572
        %v577 = vsel %vm575, 3, %v573
        %v578 = vadd.f32 %v564, %v257
        %vm579 = vcmp.gt.f32.partialorder %v578, %v576
        %v580 = vsel %vm579, %v578, %v576
        %v581 = vsel %vm579, 4, %v577
        %582 = vst [vmem:[#allocation2 + $0x18] sm:$0x1] %v581
        %v583 = vld [vmem:[%s191 + $0x18] sm:$0x1]
        %v584 = vadd.f32 %v580, %v583
        %v585 = vadd.f32 %v484, %v265
        %v586 = vadd.f32 %v504, %v267
        %vm587 = vcmp.gt.f32.partialorder %v586, %v585
        %v588 = vsel %vm587, %v586, %v585
        %v589 = vsel %vm587, 1, 0
        %v590 = vadd.f32 %v524, %v272
        %vm591 = vcmp.gt.f32.partialorder %v590, %v588
        %v592 = vsel %vm591, %v590, %v588
        %v593 = vsel %vm591, 2, %v589
        %v594 = vadd.f32 %v544, %v277
        %vm595 = vcmp.gt.f32.partialorder %v594, %v592
        %v596 = vsel %vm595, %v594, %v592
        %v597 = vsel %vm595, 3, %v593
        %v598 = vadd.f32 %v564, %v282
        %vm599 = vcmp.gt.f32.partialorder %v598, %v596
        %v600 = vsel %vm599, %v598, %v596
        %v601 = vsel %vm599, 4, %v597
        %602 = vst [vmem:[#allocation2 + $0x19] sm:$0x1] %v601
        %v603 = vld [vmem:[%s191 + $0x19] sm:$0x1]
        %v604 = vadd.f32 %v600, %v603
        %v605 = vadd.f32 %v484, %v290
        %v606 = vadd.f32 %v504, %v292
        %vm607 = vcmp.gt.f32.partialorder %v606, %v605
        %v608 = vsel %vm607, %v606, %v605
        %v609 = vsel %vm607, 1, 0
        %v610 = vadd.f32 %v524, %v297
        %vm611 = vcmp.gt.f32.partialorder %v610, %v608
        %v612 = vsel %vm611, %v610, %v608
        %v613 = vsel %vm611, 2, %v609
        %v614 = vadd.f32 %v544, %v302
        %vm615 = vcmp.gt.f32.partialorder %v614, %v612
        %v616 = vsel %vm615, %v614, %v612
        %v617 = vsel %vm615, 3, %v613
        %v618 = vadd.f32 %v564, %v307
        %vm619 = vcmp.gt.f32.partialorder %v618, %v616
        %v620 = vsel %vm619, %v618, %v616
        %v621 = vsel %vm619, 4, %v617
        %622 = vst [vmem:[#allocation2 + $0x1a] sm:$0x1] %v621
        %v623 = vld [vmem:[%s191 + $0x1a] sm:$0x1]
        %v624 = vadd.f32 %v620, %v623
        %v625 = vadd.f32 %v484, %v315
        %v626 = vadd.f32 %v504, %v317
        %vm627 = vcmp.gt.f32.partialorder %v626, %v625
        %v628 = vsel %vm627, %v626, %v625
        %v629 = vsel %vm627, 1, 0
        %v630 = vadd.f32 %v524, %v322
        %vm631 = vcmp.gt.f32.partialorder %v630, %v628
        %v632 = vsel %vm631, %v630, %v628
        %v633 = vsel %vm631, 2, %v629
        %v634 = vadd.f32 %v544, %v327
        %vm635 = vcmp.gt.f32.partialorder %v634, %v632
        %v636 = vsel %vm635, %v634, %v632
        %v637 = vsel %vm635, 3, %v633
        %v638 = vadd.f32 %v564, %v332
        %vm639 = vcmp.gt.f32.partialorder %v638, %v636
        %v640 = vsel %vm639, %v638, %v636
        %v641 = vsel %vm639, 4, %v637
        %642 = vst [vmem:[#allocation2 + $0x1b] sm:$0x1] %v641
        %v643 = vld [vmem:[%s191 + $0x1b] sm:$0x1]
        %v644 = vadd.f32 %v640, %v643
        %v645 = vadd.f32 %v484, %v340
        %v646 = vadd.f32 %v504, %v342
        %vm647 = vcmp.gt.f32.partialorder %v646, %v645
        %v648 = vsel %vm647, %v646, %v645
        %v649 = vsel %vm647, 1, 0
        %v650 = vadd.f32 %v524, %v347
        %vm651 = vcmp.gt.f32.partialorder %v650, %v648
        %v652 = vsel %vm651, %v650, %v648
        %v653 = vsel %vm651, 2, %v649
        %v654 = vadd.f32 %v544, %v352
        %vm655 = vcmp.gt.f32.partialorder %v654, %v652
        %v656 = vsel %vm655, %v654, %v652
        %v657 = vsel %vm655, 3, %v653
        %v658 = vadd.f32 %v564, %v357
        %vm659 = vcmp.gt.f32.partialorder %v658, %v656
        %v660 = vsel %vm659, %v658, %v656
        %v661 = vsel %vm659, 4, %v657
        %662 = vst [vmem:[#allocation2 + $0x1c] sm:$0x1] %v661
        %v663 = vld [vmem:[%s191 + $0x1c] sm:$0x1]
        %v664 = vadd.f32 %v660, %v663
        %v665 = vadd.f32 %v584, %v240
        %v666 = vadd.f32 %v604, %v242
        %vm667 = vcmp.gt.f32.partialorder %v666, %v665
        %v668 = vsel %vm667, %v666, %v665
        %v669 = vsel %vm667, 1, 0
        %v670 = vadd.f32 %v624, %v247
        %vm671 = vcmp.gt.f32.partialorder %v670, %v668
        %v672 = vsel %vm671, %v670, %v668
        %v673 = vsel %vm671, 2, %v669
        %v674 = vadd.f32 %v644, %v252
        %vm675 = vcmp.gt.f32.partialorder %v674, %v672
        %v676 = vsel %vm675, %v674, %v672
        %v677 = vsel %vm675, 3, %v673
        %v678 = vadd.f32 %v664, %v257
        %vm679 = vcmp.gt.f32.partialorder %v678, %v676
        %v680 = vsel %vm679, %v678, %v676
        %v681 = vsel %vm679, 4, %v677
        %682 = vst [vmem:[#allocation2 + $0x20] sm:$0x1] %v681
        %v683 = vld [vmem:[%s191 + $0x20] sm:$0x1]
        %v684 = vadd.f32 %v680, %v683
        %v685 = vadd.f32 %v584, %v265
        %v686 = vadd.f32 %v604, %v267
        %vm687 = vcmp.gt.f32.partialorder %v686, %v685
        %v688 = vsel %vm687, %v686, %v685
        %v689 = vsel %vm687, 1, 0
        %v690 = vadd.f32 %v624, %v272
        %vm691 = vcmp.gt.f32.partialorder %v690, %v688
        %v692 = vsel %vm691, %v690, %v688
        %v693 = vsel %vm691, 2, %v689
        %v694 = vadd.f32 %v644, %v277
        %vm695 = vcmp.gt.f32.partialorder %v694, %v692
        %v696 = vsel %vm695, %v694, %v692
        %v697 = vsel %vm695, 3, %v693
        %v698 = vadd.f32 %v664, %v282
        %vm699 = vcmp.gt.f32.partialorder %v698, %v696
        %v700 = vsel %vm699, %v698, %v696
        %v701 = vsel %vm699, 4, %v697
        %702 = vst [vmem:[#allocation2 + $0x21] sm:$0x1] %v701
        %v703 = vld [vmem:[%s191 + $0x21] sm:$0x1]
        %v704 = vadd.f32 %v700, %v703
        %v705 = vadd.f32 %v584, %v290
        %v706 = vadd.f32 %v604, %v292
        %vm707 = vcmp.gt.f32.partialorder %v706, %v705
        %v708 = vsel %vm707, %v706, %v705
        %v709 = vsel %vm707, 1, 0
        %v710 = vadd.f32 %v624, %v297
        %vm711 = vcmp.gt.f32.partialorder %v710, %v708
        %v712 = vsel %vm711, %v710, %v708
        %v713 = vsel %vm711, 2, %v709
        %v714 = vadd.f32 %v644, %v302
        %vm715 = vcmp.gt.f32.partialorder %v714, %v712
        %v716 = vsel %vm715, %v714, %v712
        %v717 = vsel %vm715, 3, %v713
        %v718 = vadd.f32 %v664, %v307
        %vm719 = vcmp.gt.f32.partialorder %v718, %v716
        %v720 = vsel %vm719, %v718, %v716
        %v721 = vsel %vm719, 4, %v717
        %722 = vst [vmem:[#allocation2 + $0x22] sm:$0x1] %v721
        %v723 = vld [vmem:[%s191 + $0x22] sm:$0x1]
        %v724 = vadd.f32 %v720, %v723
        %v725 = vadd.f32 %v584, %v315
        %v726 = vadd.f32 %v604, %v317
        %vm727 = vcmp.gt.f32.partialorder %v726, %v725
        %v728 = vsel %vm727, %v726, %v725
        %v729 = vsel %vm727, 1, 0
        %v730 = vadd.f32 %v624, %v322
        %vm731 = vcmp.gt.f32.partialorder %v730, %v728
        %v732 = vsel %vm731, %v730, %v728
        %v733 = vsel %vm731, 2, %v729
        %v734 = vadd.f32 %v644, %v327
        %vm735 = vcmp.gt.f32.partialorder %v734, %v732
        %v736 = vsel %vm735, %v734, %v732
        %v737 = vsel %vm735, 3, %v733
        %v738 = vadd.f32 %v664, %v332
        %vm739 = vcmp.gt.f32.partialorder %v738, %v736
        %v740 = vsel %vm739, %v738, %v736
        %v741 = vsel %vm739, 4, %v737
        %742 = vst [vmem:[#allocation2 + $0x23] sm:$0x1] %v741
        %v743 = vld [vmem:[%s191 + $0x23] sm:$0x1]
        %v744 = vadd.f32 %v740, %v743
        %v745 = vadd.f32 %v584, %v340
        %v746 = vadd.f32 %v604, %v342
        %vm747 = vcmp.gt.f32.partialorder %v746, %v745
        %v748 = vsel %vm747, %v746, %v745
        %v749 = vsel %vm747, 1, 0
        %v750 = vadd.f32 %v624, %v347
        %vm751 = vcmp.gt.f32.partialorder %v750, %v748
        %v752 = vsel %vm751, %v750, %v748
        %v753 = vsel %vm751, 2, %v749
        %v754 = vadd.f32 %v644, %v352
        %vm755 = vcmp.gt.f32.partialorder %v754, %v752
        %v756 = vsel %vm755, %v754, %v752
        %v757 = vsel %vm755, 3, %v753
        %v758 = vadd.f32 %v664, %v357
        %vm759 = vcmp.gt.f32.partialorder %v758, %v756
        %v760 = vsel %vm759, %v758, %v756
        %v761 = vsel %vm759, 4, %v757
        %762 = vst [vmem:[#allocation2 + $0x24] sm:$0x1] %v761
        %v763 = vld [vmem:[%s191 + $0x24] sm:$0x1]
        %v764 = vadd.f32 %v760, %v763
        %v765 = vadd.f32 %v684, %v240
        %v766 = vadd.f32 %v704, %v242
        %vm767 = vcmp.gt.f32.partialorder %v766, %v765
        %v768 = vsel %vm767, %v766, %v765
        %v769 = vsel %vm767, 1, 0
        %v770 = vadd.f32 %v724, %v247
        %vm771 = vcmp.gt.f32.partialorder %v770, %v768
        %v772 = vsel %vm771, %v770, %v768
        %v773 = vsel %vm771, 2, %v769
        %v774 = vadd.f32 %v744, %v252
        %vm775 = vcmp.gt.f32.partialorder %v774, %v772
        %v776 = vsel %vm775, %v774, %v772
        %v777 = vsel %vm775, 3, %v773
        %v778 = vadd.f32 %v764, %v257
        %vm779 = vcmp.gt.f32.partialorder %v778, %v776
        %v780 = vsel %vm779, %v778, %v776
        %v781 = vsel %vm779, 4, %v777
        %782 = vst [vmem:[#allocation2 + $0x28] sm:$0x1] %v781
        %v783 = vld [vmem:[%s191 + $0x28] sm:$0x1]
        %v784 = vadd.f32 %v780, %v783
        %v785 = vadd.f32 %v684, %v265
        %v786 = vadd.f32 %v704, %v267
        %vm787 = vcmp.gt.f32.partialorder %v786, %v785
        %v788 = vsel %vm787, %v786, %v785
        %v789 = vsel %vm787, 1, 0
        %v790 = vadd.f32 %v724, %v272
        %vm791 = vcmp.gt.f32.partialorder %v790, %v788
        %v792 = vsel %vm791, %v790, %v788
        %v793 = vsel %vm791, 2, %v789
        %v794 = vadd.f32 %v744, %v277
        %vm795 = vcmp.gt.f32.partialorder %v794, %v792
        %v796 = vsel %vm795, %v794, %v792
        %v797 = vsel %vm795, 3, %v793
        %v798 = vadd.f32 %v764, %v282
        %vm799 = vcmp.gt.f32.partialorder %v798, %v796
        %v800 = vsel %vm799, %v798, %v796
        %v801 = vsel %vm799, 4, %v797
        %802 = vst [vmem:[#allocation2 + $0x29] sm:$0x1] %v801
        %v803 = vld [vmem:[%s191 + $0x29] sm:$0x1]
        %v804 = vadd.f32 %v800, %v803
        %v805 = vadd.f32 %v684, %v290
        %v806 = vadd.f32 %v704, %v292
        %vm807 = vcmp.gt.f32.partialorder %v806, %v805
        %v808 = vsel %vm807, %v806, %v805
        %v809 = vsel %vm807, 1, 0
        %v810 = vadd.f32 %v724, %v297
        %vm811 = vcmp.gt.f32.partialorder %v810, %v808
        %v812 = vsel %vm811, %v810, %v808
        %v813 = vsel %vm811, 2, %v809
        %v814 = vadd.f32 %v744, %v302
        %vm815 = vcmp.gt.f32.partialorder %v814, %v812
        %v816 = vsel %vm815, %v814, %v812
        %v817 = vsel %vm815, 3, %v813
        %v818 = vadd.f32 %v764, %v307
        %vm819 = vcmp.gt.f32.partialorder %v818, %v816
        %v820 = vsel %vm819, %v818, %v816
        %v821 = vsel %vm819, 4, %v817
        %822 = vst [vmem:[#allocation2 + $0x2a] sm:$0x1] %v821
        %v823 = vld [vmem:[%s191 + $0x2a] sm:$0x1]
        %v824 = vadd.f32 %v820, %v823
        %v825 = vadd.f32 %v684, %v315
        %v826 = vadd.f32 %v704, %v317
        %vm827 = vcmp.gt.f32.partialorder %v826, %v825
        %v828 = vsel %vm827, %v826, %v825
        %v829 = vsel %vm827, 1, 0
        %v830 = vadd.f32 %v724, %v322
        %vm831 = vcmp.gt.f32.partialorder %v830, %v828
        %v832 = vsel %vm831, %v830, %v828
        %v833 = vsel %vm831, 2, %v829
        %v834 = vadd.f32 %v744, %v327
        %vm835 = vcmp.gt.f32.partialorder %v834, %v832
        %v836 = vsel %vm835, %v834, %v832
        %v837 = vsel %vm835, 3, %v833
        %v838 = vadd.f32 %v764, %v332
        %vm839 = vcmp.gt.f32.partialorder %v838, %v836
        %v840 = vsel %vm839, %v838, %v836
        %v841 = vsel %vm839, 4, %v837
        %842 = vst [vmem:[#allocation2 + $0x2b] sm:$0x1] %v841
        %v843 = vld [vmem:[%s191 + $0x2b] sm:$0x1]
        %v844 = vadd.f32 %v840, %v843
        %v845 = vadd.f32 %v684, %v340
        %v846 = vadd.f32 %v704, %v342
        %vm847 = vcmp.gt.f32.partialorder %v846, %v845
        %v848 = vsel %vm847, %v846, %v845
        %v849 = vsel %vm847, 1, 0
        %v850 = vadd.f32 %v724, %v347
        %vm851 = vcmp.gt.f32.partialorder %v850, %v848
        %v852 = vsel %vm851, %v850, %v848
        %v853 = vsel %vm851, 2, %v849
        %v854 = vadd.f32 %v744, %v352
        %vm855 = vcmp.gt.f32.partialorder %v854, %v852
        %v856 = vsel %vm855, %v854, %v852
        %v857 = vsel %vm855, 3, %v853
        %v858 = vadd.f32 %v764, %v357
        %vm859 = vcmp.gt.f32.partialorder %v858, %v856
        %v860 = vsel %vm859, %v858, %v856
        %v861 = vsel %vm859, 4, %v857
        %862 = vst [vmem:[#allocation2 + $0x2c] sm:$0x1] %v861
        %v863 = vld [vmem:[%s191 + $0x2c] sm:$0x1]
        %v864 = vadd.f32 %v860, %v863
        %v865 = vadd.f32 %v784, %v240
        %v866 = vadd.f32 %v804, %v242
        %vm867 = vcmp.gt.f32.partialorder %v866, %v865
        %v868 = vsel %vm867, %v866, %v865
        %v869 = vsel %vm867, 1, 0
        %v870 = vadd.f32 %v824, %v247
        %vm871 = vcmp.gt.f32.partialorder %v870, %v868
        %v872 = vsel %vm871, %v870, %v868
        %v873 = vsel %vm871, 2, %v869
        %v874 = vadd.f32 %v844, %v252
        %vm875 = vcmp.gt.f32.partialorder %v874, %v872
        %v876 = vsel %vm875, %v874, %v872
        %v877 = vsel %vm875, 3, %v873
        %v878 = vadd.f32 %v864, %v257
        %vm879 = vcmp.gt.f32.partialorder %v878, %v876
        %v880 = vsel %vm879, %v878, %v876
        %v881 = vsel %vm879, 4, %v877
        %882 = vst [vmem:[#allocation2 + $0x30] sm:$0x1] %v881
        %v883 = vld [vmem:[%s191 + $0x30] sm:$0x1]
        %v884 = vadd.f32 %v880, %v883
        %v885 = vadd.f32 %v784, %v265
        %v886 = vadd.f32 %v804, %v267
        %vm887 = vcmp.gt.f32.partialorder %v886, %v885
        %v888 = vsel %vm887, %v886, %v885
        %v889 = vsel %vm887, 1, 0
        %v890 = vadd.f32 %v824, %v272
        %vm891 = vcmp.gt.f32.partialorder %v890, %v888
        %v892 = vsel %vm891, %v890, %v888
        %v893 = vsel %vm891, 2, %v889
        %v894 = vadd.f32 %v844, %v277
        %vm895 = vcmp.gt.f32.partialorder %v894, %v892
        %v896 = vsel %vm895, %v894, %v892
        %v897 = vsel %vm895, 3, %v893
        %v898 = vadd.f32 %v864, %v282
        %vm899 = vcmp.gt.f32.partialorder %v898, %v896
        %v900 = vsel %vm899, %v898, %v896
        %v901 = vsel %vm899, 4, %v897
        %902 = vst [vmem:[#allocation2 + $0x31] sm:$0x1] %v901
        %v903 = vld [vmem:[%s191 + $0x31] sm:$0x1]
        %v904 = vadd.f32 %v900, %v903
        %v905 = vadd.f32 %v784, %v290
        %v906 = vadd.f32 %v804, %v292
        %vm907 = vcmp.gt.f32.partialorder %v906, %v905
        %v908 = vsel %vm907, %v906, %v905
        %v909 = vsel %vm907, 1, 0
        %v910 = vadd.f32 %v824, %v297
        %vm911 = vcmp.gt.f32.partialorder %v910, %v908
        %v912 = vsel %vm911, %v910, %v908
        %v913 = vsel %vm911, 2, %v909
        %v914 = vadd.f32 %v844, %v302
        %vm915 = vcmp.gt.f32.partialorder %v914, %v912
        %v916 = vsel %vm915, %v914, %v912
        %v917 = vsel %vm915, 3, %v913
        %v918 = vadd.f32 %v864, %v307
        %vm919 = vcmp.gt.f32.partialorder %v918, %v916
        %v920 = vsel %vm919, %v918, %v916
        %v921 = vsel %vm919, 4, %v917
        %922 = vst [vmem:[#allocation2 + $0x32] sm:$0x1] %v921
        %v923 = vld [vmem:[%s191 + $0x32] sm:$0x1]
        %v924 = vadd.f32 %v920, %v923
        %v925 = vadd.f32 %v784, %v315
        %v926 = vadd.f32 %v804, %v317
        %vm927 = vcmp.gt.f32.partialorder %v926, %v925
        %v928 = vsel %vm927, %v926, %v925
        %v929 = vsel %vm927, 1, 0
        %v930 = vadd.f32 %v824, %v322
        %vm931 = vcmp.gt.f32.partialorder %v930, %v928
        %v932 = vsel %vm931, %v930, %v928
        %v933 = vsel %vm931, 2, %v929
        %v934 = vadd.f32 %v844, %v327
        %vm935 = vcmp.gt.f32.partialorder %v934, %v932
        %v936 = vsel %vm935, %v934, %v932
        %v937 = vsel %vm935, 3, %v933
        %v938 = vadd.f32 %v864, %v332
        %vm939 = vcmp.gt.f32.partialorder %v938, %v936
        %v940 = vsel %vm939, %v938, %v936
        %v941 = vsel %vm939, 4, %v937
        %942 = vst [vmem:[#allocation2 + $0x33] sm:$0x1] %v941
        %v943 = vld [vmem:[%s191 + $0x33] sm:$0x1]
        %v944 = vadd.f32 %v940, %v943
        %v945 = vadd.f32 %v784, %v340
        %v946 = vadd.f32 %v804, %v342
        %vm947 = vcmp.gt.f32.partialorder %v946, %v945
        %v948 = vsel %vm947, %v946, %v945
        %v949 = vsel %vm947, 1, 0
        %v950 = vadd.f32 %v824, %v347
        %vm951 = vcmp.gt.f32.partialorder %v950, %v948
        %v952 = vsel %vm951, %v950, %v948
        %v953 = vsel %vm951, 2, %v949
        %v954 = vadd.f32 %v844, %v352
        %vm955 = vcmp.gt.f32.partialorder %v954, %v952
        %v956 = vsel %vm955, %v954, %v952
        %v957 = vsel %vm955, 3, %v953
        %v958 = vadd.f32 %v864, %v357
        %vm959 = vcmp.gt.f32.partialorder %v958, %v956
        %v960 = vsel %vm959, %v958, %v956
        %v961 = vsel %vm959, 4, %v957
        %962 = vst [vmem:[#allocation2 + $0x34] sm:$0x1] %v961
        %v963 = vld [vmem:[%s191 + $0x34] sm:$0x1]
        %v964 = vadd.f32 %v960, %v963
        %v965 = vadd.f32 %v884, %v240
        %v966 = vadd.f32 %v904, %v242
        %vm967 = vcmp.gt.f32.partialorder %v966, %v965
        %v968 = vsel %vm967, %v966, %v965
        %v969 = vsel %vm967, 1, 0
        %v970 = vadd.f32 %v924, %v247
        %vm971 = vcmp.gt.f32.partialorder %v970, %v968
        %v972 = vsel %vm971, %v970, %v968
        %v973 = vsel %vm971, 2, %v969
        %v974 = vadd.f32 %v944, %v252
        %vm975 = vcmp.gt.f32.partialorder %v974, %v972
        %v976 = vsel %vm975, %v974, %v972
        %v977 = vsel %vm975, 3, %v973
        %v978 = vadd.f32 %v964, %v257
        %vm979 = vcmp.gt.f32.partialorder %v978, %v976
        %v980 = vsel %vm979, %v978, %v976
        %v981 = vsel %vm979, 4, %v977
        %982 = vst [vmem:[#allocation2 + $0x38] sm:$0x1] %v981
        %v983 = vld [vmem:[%s191 + $0x38] sm:$0x1]
        %v984 = vadd.f32 %v980, %v983
        %v985 = vadd.f32 %v884, %v265
        %v986 = vadd.f32 %v904, %v267
        %vm987 = vcmp.gt.f32.partialorder %v986, %v985
        %v988 = vsel %vm987, %v986, %v985
        %v989 = vsel %vm987, 1, 0
        %v990 = vadd.f32 %v924, %v272
        %vm991 = vcmp.gt.f32.partialorder %v990, %v988
        %v992 = vsel %vm991, %v990, %v988
        %v993 = vsel %vm991, 2, %v989
        %v994 = vadd.f32 %v944, %v277
        %vm995 = vcmp.gt.f32.partialorder %v994, %v992
        %v996 = vsel %vm995, %v994, %v992
        %v997 = vsel %vm995, 3, %v993
        %v998 = vadd.f32 %v964, %v282
        %vm999 = vcmp.gt.f32.partialorder %v998, %v996
        %v1000 = vsel %vm999, %v998, %v996
        %v1001 = vsel %vm999, 4, %v997
        %1002 = vst [vmem:[#allocation2 + $0x39] sm:$0x1] %v1001
        %v1003 = vld [vmem:[%s191 + $0x39] sm:$0x1]
        %v1004 = vadd.f32 %v1000, %v1003
        %v1005 = vadd.f32 %v884, %v290
        %v1006 = vadd.f32 %v904, %v292
        %vm1007 = vcmp.gt.f32.partialorder %v1006, %v1005
        %v1008 = vsel %vm1007, %v1006, %v1005
        %v1009 = vsel %vm1007, 1, 0
        %v1010 = vadd.f32 %v924, %v297
        %vm1011 = vcmp.gt.f32.partialorder %v1010, %v1008
        %v1012 = vsel %vm1011, %v1010, %v1008
        %v1013 = vsel %vm1011, 2, %v1009
        %v1014 = vadd.f32 %v944, %v302
        %vm1015 = vcmp.gt.f32.partialorder %v1014, %v1012
        %v1016 = vsel %vm1015, %v1014, %v1012
        %v1017 = vsel %vm1015, 3, %v1013
        %v1018 = vadd.f32 %v964, %v307
        %vm1019 = vcmp.gt.f32.partialorder %v1018, %v1016
        %v1020 = vsel %vm1019, %v1018, %v1016
        %v1021 = vsel %vm1019, 4, %v1017
        %1022 = vst [vmem:[#allocation2 + $0x3a] sm:$0x1] %v1021
        %v1023 = vld [vmem:[%s191 + $0x3a] sm:$0x1]
        %v1024 = vadd.f32 %v1020, %v1023
        %v1025 = vadd.f32 %v884, %v315
        %v1026 = vadd.f32 %v904, %v317
        %vm1027 = vcmp.gt.f32.partialorder %v1026, %v1025
        %v1028 = vsel %vm1027, %v1026, %v1025
        %v1029 = vsel %vm1027, 1, 0
        %v1030 = vadd.f32 %v924, %v322
        %vm1031 = vcmp.gt.f32.partialorder %v1030, %v1028
        %v1032 = vsel %vm1031, %v1030, %v1028
        %v1033 = vsel %vm1031, 2, %v1029
        %v1034 = vadd.f32 %v944, %v327
        %vm1035 = vcmp.gt.f32.partialorder %v1034, %v1032
        %v1036 = vsel %vm1035, %v1034, %v1032
        %v1037 = vsel %vm1035, 3, %v1033
        %v1038 = vadd.f32 %v964, %v332
        %vm1039 = vcmp.gt.f32.partialorder %v1038, %v1036
        %v1040 = vsel %vm1039, %v1038, %v1036
        %v1041 = vsel %vm1039, 4, %v1037
        %1042 = vst [vmem:[#allocation2 + $0x3b] sm:$0x1] %v1041
        %v1043 = vld [vmem:[%s191 + $0x3b] sm:$0x1]
        %v1044 = vadd.f32 %v1040, %v1043
        %v1045 = vadd.f32 %v884, %v340
        %v1046 = vadd.f32 %v904, %v342
        %vm1047 = vcmp.gt.f32.partialorder %v1046, %v1045
        %v1048 = vsel %vm1047, %v1046, %v1045
        %v1049 = vsel %vm1047, 1, 0
        %v1050 = vadd.f32 %v924, %v347
        %vm1051 = vcmp.gt.f32.partialorder %v1050, %v1048
        %v1052 = vsel %vm1051, %v1050, %v1048
        %v1053 = vsel %vm1051, 2, %v1049
        %v1054 = vadd.f32 %v944, %v352
        %vm1055 = vcmp.gt.f32.partialorder %v1054, %v1052
        %v1056 = vsel %vm1055, %v1054, %v1052
        %v1057 = vsel %vm1055, 3, %v1053
        %v1058 = vadd.f32 %v964, %v357
        %vm1059 = vcmp.gt.f32.partialorder %v1058, %v1056
        %v1060 = vsel %vm1059, %v1058, %v1056
        %v1061 = vsel %vm1059, 4, %v1057
        %1062 = vst [vmem:[#allocation2 + $0x3c] sm:$0x1] %v1061
        %v1063 = vld [vmem:[%s191 + $0x3c] sm:$0x1]
        %v1064 = vadd.f32 %v1060, %v1063
        %v1065 = vadd.f32 %v984, %v340
        %v1066 = vadd.f32 %v1004, %v342
        %vm1067 = vcmp.gt.f32.partialorder %v1066, %v1065
        %v1068 = vsel %vm1067, %v1066, %v1065
        %v1069 = vsel %vm1067, 1, 0
        %v1070 = vadd.f32 %v1024, %v347
        %vm1071 = vcmp.gt.f32.partialorder %v1070, %v1068
        %v1072 = vsel %vm1071, %v1070, %v1068
        %v1073 = vsel %vm1071, 2, %v1069
        %v1074 = vadd.f32 %v1044, %v352
        %vm1075 = vcmp.gt.f32.partialorder %v1074, %v1072
        %v1076 = vsel %vm1075, %v1074, %v1072
        %v1077 = vsel %vm1075, 3, %v1073
        %v1078 = vadd.f32 %v1064, %v357
        %vm1079 = vcmp.gt.f32.partialorder %v1078, %v1076
        %v1080 = vsel %vm1079, %v1078, %v1076
        %v1081 = vsel %vm1079, 4, %v1077
        %1082 = vst [vmem:[%s214] sm:$0xff] 0
        %1083 = vst [vmem:[%s214 + $0x8] sm:$0xff] 0
        %1084 = vst [vmem:[%s214 + $0x7] sm:$0x1] %v1081
        %v1085 = vld [vmem:[#allocation2 + $0x38] sm:$0x1]
        %vm1086 = vcmp.eq.s32.totalorder %v1081, 1
        %v1087 = vld [vmem:[#allocation2 + $0x39] sm:$0x1]
        %v1088 = vsel %vm1086, %v1087, %v1085
        %vm1089 = vcmp.eq.s32.totalorder %v1081, 2
        %v1090 = vld [vmem:[#allocation2 + $0x3a] sm:$0x1]
        %v1091 = vsel %vm1089, %v1090, %v1088
        %vm1092 = vcmp.eq.s32.totalorder %v1081, 3
        %v1093 = vld [vmem:[#allocation2 + $0x3b] sm:$0x1]
        %v1094 = vsel %vm1092, %v1093, %v1091
        %vm1095 = vcmp.eq.s32.totalorder %v1081, 4
        %v1096 = vld [vmem:[#allocation2 + $0x3c] sm:$0x1]
        %v1097 = vsel %vm1095, %v1096, %v1094
        %1098 = vst [vmem:[%s214 + $0x6] sm:$0x1] %v1097
        %v1099 = vld [vmem:[#allocation2 + $0x30] sm:$0x1]
        %vm1100 = vcmp.eq.s32.totalorder %v1097, 1
        %v1101 = vld [vmem:[#allocation2 + $0x31] sm:$0x1]
        %v1102 = vsel %vm1100, %v1101, %v1099
        %vm1103 = vcmp.eq.s32.totalorder %v1097, 2
        %v1104 = vld [vmem:[#allocation2 + $0x32] sm:$0x1]
        %v1105 = vsel %vm1103, %v1104, %v1102
        %vm1106 = vcmp.eq.s32.totalorder %v1097, 3
        %v1107 = vld [vmem:[#allocation2 + $0x33] sm:$0x1]
        %v1108 = vsel %vm1106, %v1107, %v1105
        %vm1109 = vcmp.eq.s32.totalorder %v1097, 4
        %v1110 = vld [vmem:[#allocation2 + $0x34] sm:$0x1]
        %v1111 = vsel %vm1109, %v1110, %v1108
        %1112 = vst [vmem:[%s214 + $0x5] sm:$0x1] %v1111
        %v1113 = vld [vmem:[#allocation2 + $0x28] sm:$0x1]
        %vm1114 = vcmp.eq.s32.totalorder %v1111, 1
        %v1115 = vld [vmem:[#allocation2 + $0x29] sm:$0x1]
        %v1116 = vsel %vm1114, %v1115, %v1113
        %vm1117 = vcmp.eq.s32.totalorder %v1111, 2
        %v1118 = vld [vmem:[#allocation2 + $0x2a] sm:$0x1]
        %v1119 = vsel %vm1117, %v1118, %v1116
        %vm1120 = vcmp.eq.s32.totalorder %v1111, 3
        %v1121 = vld [vmem:[#allocation2 + $0x2b] sm:$0x1]
        %v1122 = vsel %vm1120, %v1121, %v1119
        %vm1123 = vcmp.eq.s32.totalorder %v1111, 4
        %v1124 = vld [vmem:[#allocation2 + $0x2c] sm:$0x1]
        %v1125 = vsel %vm1123, %v1124, %v1122
        %1126 = vst [vmem:[%s214 + $0x4] sm:$0x1] %v1125
        %v1127 = vld [vmem:[#allocation2 + $0x20] sm:$0x1]
        %vm1128 = vcmp.eq.s32.totalorder %v1125, 1
        %v1129 = vld [vmem:[#allocation2 + $0x21] sm:$0x1]
        %v1130 = vsel %vm1128, %v1129, %v1127
        %vm1131 = vcmp.eq.s32.totalorder %v1125, 2
        %v1132 = vld [vmem:[#allocation2 + $0x22] sm:$0x1]
        %v1133 = vsel %vm1131, %v1132, %v1130
        %vm1134 = vcmp.eq.s32.totalorder %v1125, 3
        %v1135 = vld [vmem:[#allocation2 + $0x23] sm:$0x1]
        %v1136 = vsel %vm1134, %v1135, %v1133
        %vm1137 = vcmp.eq.s32.totalorder %v1125, 4
        %v1138 = vld [vmem:[#allocation2 + $0x24] sm:$0x1]
        %v1139 = vsel %vm1137, %v1138, %v1136
        %1140 = vst [vmem:[%s214 + $0x3] sm:$0x1] %v1139
        %v1141 = vld [vmem:[#allocation2 + $0x18] sm:$0x1]
        %vm1142 = vcmp.eq.s32.totalorder %v1139, 1
        %v1143 = vld [vmem:[#allocation2 + $0x19] sm:$0x1]
        %v1144 = vsel %vm1142, %v1143, %v1141
        %vm1145 = vcmp.eq.s32.totalorder %v1139, 2
        %v1146 = vld [vmem:[#allocation2 + $0x1a] sm:$0x1]
        %v1147 = vsel %vm1145, %v1146, %v1144
        %vm1148 = vcmp.eq.s32.totalorder %v1139, 3
        %v1149 = vld [vmem:[#allocation2 + $0x1b] sm:$0x1]
        %v1150 = vsel %vm1148, %v1149, %v1147
        %vm1151 = vcmp.eq.s32.totalorder %v1139, 4
        %v1152 = vld [vmem:[#allocation2 + $0x1c] sm:$0x1]
        %v1153 = vsel %vm1151, %v1152, %v1150
        %1154 = vst [vmem:[%s214 + $0x2] sm:$0x1] %v1153
        %v1155 = vld [vmem:[#allocation2 + $0x10] sm:$0x1]
        %vm1156 = vcmp.eq.s32.totalorder %v1153, 1
        %v1157 = vld [vmem:[#allocation2 + $0x11] sm:$0x1]
        %v1158 = vsel %vm1156, %v1157, %v1155
        %vm1159 = vcmp.eq.s32.totalorder %v1153, 2
        %v1160 = vld [vmem:[#allocation2 + $0x12] sm:$0x1]
        %v1161 = vsel %vm1159, %v1160, %v1158
        %vm1162 = vcmp.eq.s32.totalorder %v1153, 3
        %v1163 = vld [vmem:[#allocation2 + $0x13] sm:$0x1]
        %v1164 = vsel %vm1162, %v1163, %v1161
        %vm1165 = vcmp.eq.s32.totalorder %v1153, 4
        %v1166 = vld [vmem:[#allocation2 + $0x14] sm:$0x1]
        %v1167 = vsel %vm1165, %v1166, %v1164
        %1168 = vst [vmem:[%s214 + $0x1] sm:$0x1] %v1167
        %v1169 = vld [vmem:[#allocation2 + $0x8] sm:$0x1]
        %vm1170 = vcmp.eq.s32.totalorder %v1167, 1
        %v1171 = vld [vmem:[#allocation2 + $0x9] sm:$0x1]
        %v1172 = vsel %vm1170, %v1171, %v1169
        %vm1173 = vcmp.eq.s32.totalorder %v1167, 2
        %v1174 = vld [vmem:[#allocation2 + $0xa] sm:$0x1]
        %v1175 = vsel %vm1173, %v1174, %v1172
        %vm1176 = vcmp.eq.s32.totalorder %v1167, 3
        %v1177 = vld [vmem:[#allocation2 + $0xb] sm:$0x1]
        %v1178 = vsel %vm1176, %v1177, %v1175
        %vm1179 = vcmp.eq.s32.totalorder %v1167, 4
        %v1180 = vld [vmem:[#allocation2 + $0xc] sm:$0x1]
        %v1181 = vsel %vm1179, %v1180, %v1178
        %1182 = vst [vmem:[%s214] sm:$0x1] %v1181
        %v1183 = vld [vmem:[#allocation2] sm:$0x1]
        %vm1184 = vcmp.eq.s32.totalorder %v1181, 1
        %v1185 = vld [vmem:[#allocation2 + $0x1] sm:$0x1]
        %v1186 = vsel %vm1184, %v1185, %v1183
        %vm1187 = vcmp.eq.s32.totalorder %v1181, 2
        %v1188 = vld [vmem:[#allocation2 + $0x2] sm:$0x1]
        %v1189 = vsel %vm1187, %v1188, %v1186
        %vm1190 = vcmp.eq.s32.totalorder %v1181, 3
        %v1191 = vld [vmem:[#allocation2 + $0x3] sm:$0x1]
        %v1192 = vsel %vm1190, %v1191, %v1189
        %vm1193 = vcmp.eq.s32.totalorder %v1181, 4
        %v1194 = vld [vmem:[#allocation2 + $0x4] sm:$0x1]
        %v1195 = vsel %vm1193, %v1194, %v1192
        %1196 = vst [vmem:[%s214 + $0x8] sm:$0x1] %v1195
        %1198 = vst [vmem:[%s214 + $0x9] sm:$0x1] %v1080
        %s1199 = sand.u32 %s69, 1
        %s1200 = sand.u32 %s69, 1
        %s1201 = smul.addr %s1200, 16
        %s1202 = scalar_lea.vmem [#allocation6], %s1201
        // Predicated region
        $region71: #{decode.1} parent=61 // pred_check
          %p1203 = pneg %p79
        $region72: #{decode.1} parent=61 // pred_check_branch
          %1205 = sbr.rel (%p1203) target = $region74
        $region73: #{decode.1} parent=61 // pred_region
          %s1206 = smul.addr %s14, 8
          %s1207 = scalar_lea.vmem %s2, %s1206
          // Predicated region
          $region75: #{decode.1} parent=73 // pred_check
            _
          $region76: #{decode.1} parent=73 // pred_check_branch
            %1209 = sbr.rel (0) target = $region78
          $region77: #{decode.1} parent=73 // pred_region
            // Predicated region
            $region79: #{decode.1} parent=77 // pred_check
              _
            $region80: #{decode.1} parent=77 // pred_check_branch
              %1211 = sbr.rel (0) target = $region82
            $region81: #{decode.1} parent=77 // pred_region
              // Predicated region
              $region94: #{decode.1} parent=81 // pred_check
                _
              $region95: #{decode.1} parent=81 // pred_check_branch
                %1229 = sbr.rel (0) target = $region97
              $region96: #{decode.1} parent=81 // pred_region
                loop: start=0, step=1, limit=1
                $region98: #{decode.1} parent=96 // loop_pre_header
                  _
                $region99: #{decode.1} parent=96 // loop_header
                  %s1231 = sphi 0, %s1235
                  %p1232 = scmp.ge.s32.totalorder %s1231, 1
                  %s1236 = sphi %s1202, %s1202
                  %s1237 = sphi %s1207, %s1207
                $region100: #{decode.1} parent=96 // loop_header_branch
                  %1234 = sbr.rel (%p1232) target = $region104
                $region101: #{decode.1} parent=96 // loop_body
                  %v1238 = vld [vmem:[%s1236] sm:$0xff]
                  %1239 = vst [vmem:[%s1237] sm:$0xff] %v1238
                  %v1240 = vld [vmem:[%s1236 + $0x8] sm:$0xff]
                  %1241 = vst [vmem:[%s1237 + $0x10] sm:$0xff] %v1240
                $region102: #{decode.1} parent=96 // loop_footer
                  %s1235 = sadd.s32 1, %s1231
                $region103: #{decode.1} parent=96 // loop_footer_branch
                  %1230 = sbr.rel target = $region99
                $region104: #{decode.1} parent=96 // loop_exit
                  _
              $region97: #{decode.1} parent=81 // pred_fallthru
                _
              // Predicated region
              $region105: #{decode.1} parent=81 // pred_check
                _
              $region106: #{decode.1} parent=81 // pred_check_branch
                %1243 = sbr.rel target = $region108
              $region107: #{decode.1} parent=81 // pred_region
                _
              $region108: #{decode.1} parent=81 // pred_fallthru
                _
            $region82: #{decode.1} parent=77 // pred_fallthru
              _
            // Predicated region
            $region83: #{decode.1} parent=77 // pred_check
              _
            $region84: #{decode.1} parent=77 // pred_check_branch
              %1213 = sbr.rel target = $region86
            $region85: #{decode.1} parent=77 // pred_region
              %s1215 = ssub.s32 256, 1
              loop: start=0, step=1, limit=1
              $region87: #{decode.1} parent=85 // loop_pre_header
                _
              $region88: #{decode.1} parent=85 // loop_header
                %s1217 = sphi 0, %s1221
                %p1218 = scmp.ge.s32.totalorder %s1217, 1
                %s1222 = sphi %s1202, %s1202
                %s1223 = sphi %s1207, %s1207
              $region89: #{decode.1} parent=85 // loop_header_branch
                %1220 = sbr.rel (%p1218) target = $region93
              $region90: #{decode.1} parent=85 // loop_body
                %v1224 = vld [vmem:[%s1222] sm:%s1215]
                %1225 = vst [vmem:[%s1223] sm:%s1215] %v1224
                %v1226 = vld [vmem:[%s1222 + $0x8] sm:%s1215]
                %1227 = vst [vmem:[%s1223 + $0x10] sm:%s1215] %v1226
              $region91: #{decode.1} parent=85 // loop_footer
                %s1221 = sadd.s32 1, %s1217
              $region92: #{decode.1} parent=85 // loop_footer_branch
                %1216 = sbr.rel target = $region88
              $region93: #{decode.1} parent=85 // loop_exit
                _
            $region86: #{decode.1} parent=77 // pred_fallthru
              _
          $region78: #{decode.1} parent=73 // pred_fallthru
            _
          %1244 = vnop
        $region74: #{decode.1} parent=61 // pred_fallthru
          _
      $region62: #{decode.1} parent=5 // pred_fallthru
        _
      %p1245 = scmp.le.s32.totalorder 2, %s9
      // Predicated region
      $region109: #{decode.1} parent=5 // pred_check
        %p1246 = pneg %p1245
      $region110: #{decode.1} parent=5 // pred_check_branch
        %1248 = sbr.rel (%p1246) target = $region112
      $region111: #{decode.1} parent=5 // pred_region
        %s1249 = ssub.s32 %s9, 2
        // Predicated region
        $region113: #{decode.1} parent=111 // pred_check
          %p1250 = pneg %p85
        $region114: #{decode.1} parent=111 // pred_check_branch
          %1252 = sbr.rel (%p1250) target = $region116
        $region115: #{decode.1} parent=111 // pred_region
          %s1253 = sand.u32 %s70, 1
          %s1254 = sand.u32 %s70, 1
          %s1255 = smul.addr %s1254, 16
          %s1256 = scalar_lea.vmem [#allocation6], %s1255
        $region116: #{decode.1} parent=111 // pred_fallthru
          _
      $region112: #{decode.1} parent=5 // pred_fallthru
        _
    $region6: #{decode.1} parent=1 // loop_footer
      %s13 = sadd.s32 1, %s9
    $region7: #{decode.1} parent=1 // loop_footer_branch
      %8 = sbr.rel target = $region3
    $region8: #{decode.1} parent=1 // loop_exit
      _
    %1257 = vsyncpa [#allocation5], 1
    %s1258 = scalar_lea.sflag [#allocation5], 1
    %1259 = vsyncpa %s1258, 1

</llo_original>
